<compile_context>
chip_gen: v6e
topology: v6e:2x2x1
jax: 0.10.0
libtpu: 0.0.40
codegen_flags: <defaults>
</compile_context>

<pallas_src>
import functools

import jax
import jax.numpy as jnp
from jax.experimental import pallas as pl
from jax.experimental.pallas import tpu as pltpu

DEPTH_STR = "ikikii"
NEG_SLOPE = 0.1  # LeakyReLU slope inside ConvBlock


def _round_up(x, m):
    return (x + m - 1) // m * m


# --------------------- fused ConvBlock Pallas kernel --------------------------
#
# Buffer layout: buffer[c, j] with j = s0 + (y_pad*(W+2) + x_pad) over the zero-padded image.
# A 3x3 conv becomes one GEMM per layer on a stacked-tap RHS:
#   rhs[(ky*3+kx)*Cin + c, o] = buffer[c, o + ky*(W+2) + kx + s0],   o = y*(W+2) + x'
#   out = W_layer (Cout, 9*Cin) @ rhs (9*Cin, Ho)
# The "extended" output has W+2 columns per row; columns x' >= W are wrap-around garbage and are
# zeroed before being written back (re-padded) at offset off_int for the next layer.

def _make_convblock_kernel(n_layers, H, W, Lbuf, s0, neg_slope=NEG_SLOPE):
    Wp = W + 2
    Ho = H * Wp                   # extended output length per image
    off_int = s0 + W + 3          # flat offset of image pixel (0,0); multiple of 128 by construction

    def kernel(*refs):
        x_ref = refs[0]                         # (1, Cin_pad, Lbuf) f32  zero-padded input
        wb = refs[1:1 + 2 * n_layers]           # w0,b0,...,w_{n-1},b_{n-1}  (VMEM-resident)
        o_ref = refs[1 + 2 * n_layers]          # (1, Cout, Ho) f32  extended output
        act_ref = refs[2 + 2 * n_layers]        # (nf, Lbuf) bf16    padded activation buffer
        rhs_ref = refs[3 + 2 * n_layers]        # (9*K, Ho)  bf16    stacked-tap GEMM RHS

        nf = act_ref.shape[0]
        cout_last = o_ref.shape[1]

        # ---- ring-only zeroing of the activation padding (not the full scratch) ----
        # The interior and the within-row pad columns are rewritten every layer; only the top pad
        # row (plus alignment prefix) and the bottom pad row (plus tail) must be pre-zeroed.
        act_ref[:, 0:off_int] = jnp.zeros((nf, off_int), jnp.bfloat16)
        act_ref[:, off_int + Ho:Lbuf] = jnp.zeros((nf, Lbuf - off_int - Ho), jnp.bfloat16)

        # columns x' >= W of each extended row are wrap-around garbage
        cols = jax.lax.broadcasted_iota(jnp.int32, (1, Ho), 1) % Wp
        valid = cols < W

        x_full = x_ref[0]                        # (Cin_pad, Lbuf) f32
        x_bf16 = x_full.astype(jnp.bfloat16)     # cast hoisted out of the tap loop (done once)

        def layer(li, from_input):
            w_ref, b_ref = wb[2 * li], wb[2 * li + 1]
            cin = w_ref.shape[1] // 9
            # build the stacked (9*cin, Ho) RHS: tap t=(ky,kx) occupies rows [t*cin, (t+1)*cin)
            for t in range(9):
                ky, kx = divmod(t, 3)
                off = s0 + ky * Wp + kx
                if from_input:
                    rhs_ref[t * cin:(t + 1) * cin, :] = x_bf16[:, off:off + Ho]
                else:
                    rhs_ref[t * cin:(t + 1) * cin, :] = act_ref[:, off:off + Ho]
            return jnp.dot(w_ref[...], rhs_ref[0:9 * cin, :],
                           preferred_element_type=jnp.float32) + b_ref[...]

        # first + middle layers: conv -> LeakyReLU -> zero garbage columns -> write back padded
        for li in range(n_layers - 1):
            h = layer(li, from_input=(li == 0))
            h = jnp.where(h >= 0, h, neg_slope * h)              # LeakyReLU(0.1)
            h = jnp.where(valid, h, 0.0)                         # keep the padding ring zero
            act_ref[:, off_int:off_int + Ho] = h.astype(jnp.bfloat16)

        # last conv (no activation) + residual with the original (unpadded-channel) input
        h = layer(n_layers - 1, from_input=False)
        res = x_full[0:cout_last, off_int:off_int + Ho]          # lane-aligned f32 slice
        o_ref[...] = (h + res)[None]

    return kernel


def conv_block_apply(block_params, x):
    """x: (B, C, H, W) channel-major f32.  Returns x + ConvBlock(x), same shape/layout."""
    B, cin, H, W = x.shape
    n_layers = len(block_params)
    nf = block_params[0][0].shape[0]               # first conv: cin -> nf
    cout = block_params[-1][0].shape[0]
    assert cout == cin, "residual add requires in_chans == out_chans"

    Wp = W + 2
    Lp = (H + 2) * Wp
    Ho = H * Wp
    s0 = (-(W + 3)) % 128                          # makes the interior VMEM writes lane-aligned
    Lbuf = _round_up(s0 + Lp + 2, 128)             # +2: last garbage column reads 2 past Lp

    # Pad layer-0 input channels to a full bf16 sublane pack so the stacked-RHS tap writes land on
    # aligned row groups; pad the first-layer weights to match (extra channels contribute zero).
    cin_p = _round_up(cin, 16)
    w0, b0 = block_params[0]
    if cin_p != cin:
        w0 = jnp.pad(w0.reshape(nf, 9, cin), ((0, 0), (0, 0), (0, cin_p - cin)))
        w0 = w0.reshape(nf, 9 * cin_p)
    layer_params = [(w0, b0)] + list(block_params[1:])

    # zero-pad: channels -> cin_p, spatial halo of 1, flatten, left-pad by s0 so the interior
    # starts on a 128-lane boundary (channel-major already, so no transposes here).
    xp = jnp.pad(x, ((0, 0), (0, cin_p - cin), (1, 1), (1, 1)))
    xp = xp.reshape(B, cin_p, Lp)
    xp = jnp.pad(xp, ((0, 0), (0, 0), (s0, Lbuf - Lp - s0)))

    in_specs = [pl.BlockSpec((1, cin_p, Lbuf), lambda b: (b, 0, 0))]
    args = [xp]
    flops = 0
    w_bytes = 0
    for (w, bias) in layer_params:                 # weights/biases resident (constant index map)
        in_specs.append(pl.BlockSpec(w.shape, lambda b: (0, 0)))
        in_specs.append(pl.BlockSpec(bias.shape, lambda b: (0, 0)))
        args.append(w)
        args.append(bias)
        flops += 2 * w.shape[0] * w.shape[1] * H * W * B
        w_bytes += w.size * w.dtype.itemsize + bias.size * bias.dtype.itemsize

    cost = pl.CostEstimate(
        flops=int(flops), transcendentals=0,
        bytes_accessed=int(xp.size * 4 + B * cout * Ho * 4 + w_bytes))

    out = pl.pallas_call(
        _make_convblock_kernel(n_layers, H, W, Lbuf, s0),
        out_shape=jax.ShapeDtypeStruct((B, cout, Ho), jnp.float32),
        grid=(B,),
        in_specs=in_specs,
        out_specs=pl.BlockSpec((1, cout, Ho), lambda b: (b, 0, 0)),
        scratch_shapes=[pltpu.VMEM((nf, Lbuf), jnp.bfloat16),
                        pltpu.VMEM((9 * max(nf, cin_p), Ho), jnp.bfloat16)],
        compiler_params=pltpu.CompilerParams(dimension_semantics=("parallel",)),
        cost_estimate=cost,
    )(*args)

    # drop the 2 wrap-around columns per row; stay channel-major
    return out.reshape(B, cout, H, Wp)[:, :, :, :W]


# ------------------------- data consistency kernel ----------------------------
# Lane-dense layout: k-space flattened to (B, 2, H*W), mask un-broadcast as (B, 1, H*W) and
# broadcast over the (sublane) channel dim inside the kernel.

def _dc_kernel(f_ref, m_ref, k0_ref, o_ref):
    # kspace = fft * (1 - mask) + k0   (exact module formula; k0 assumed pre-masked upstream)
    o_ref[...] = f_ref[...] * (1.0 - m_ref[...]) + k0_ref[...]


def data_consistency(f, mask, k0):
    """f, k0: (B, C, L) flattened k-space (lane-dense); mask: (B, 1, L)."""
    B, C, L = f.shape
    cost = pl.CostEstimate(flops=3 * B * C * L, transcendentals=0,
                           bytes_accessed=(3 * C + 1) * B * L * 4)
    return pl.pallas_call(
        _dc_kernel,
        out_shape=jax.ShapeDtypeStruct((B, C, L), jnp.float32),
        grid=(B,),
        in_specs=[pl.BlockSpec((1, C, L), lambda b: (b, 0, 0)),
                  pl.BlockSpec((1, 1, L), lambda b: (b, 0, 0)),
                  pl.BlockSpec((1, C, L), lambda b: (b, 0, 0))],
        out_specs=pl.BlockSpec((1, C, L), lambda b: (b, 0, 0)),
        compiler_params=pltpu.CompilerParams(dimension_semantics=("parallel",)),
        cost_estimate=cost,
    )(f, mask, k0)


# -------------------------------- FFT glue -------------------------------------

def fft2c_cm(x):
    # legacy torch Tensor.fft(2, normalized=True): 2D FFT over (H, W), ortho norm; channel-major in/out
    # TODO(synk): no clean Pallas FFT; plain jnp here, fused by XLA with surrounding elementwise ops.
    c = jax.lax.complex(x[:, 0], x[:, 1])
    f = jnp.fft.fft2(c, axes=(-2, -1), norm="ortho")
    return jnp.stack([jnp.real(f), jnp.imag(f)], axis=1).astype(jnp.float32)


def ifft2c_cm(x):
    c = jax.lax.complex(x[:, 0], x[:, 1])
    f = jnp.fft.ifft2(c, axes=(-2, -1), norm="ortho")
    return jnp.stack([jnp.real(f), jnp.imag(f)], axis=1).astype(jnp.float32)


# ---------------------------- Hybird_Net forward -------------------------------

def hybird_net_forward(params, x, k0, mask, depth_str=DEPTH_STR):
    # x, k0: (B, H, W, 2); mask: (B, H, W, 1)   (same inputs as the PyTorch module)
    B, H, W, _ = x.shape
    image = jnp.transpose(x, (0, 3, 1, 2))                        # channel-major for the whole cascade
    k0_cm = jnp.transpose(k0, (0, 3, 1, 2)).reshape(B, 2, H * W)
    mask_cm = mask[..., 0].reshape(B, 1, H * W)

    for ii, block_params in zip(depth_str, params):
        if ii == "i":
            image = conv_block_apply(block_params, image)         # image + ConvBlock(image)
            ksp = fft2c_cm(image).reshape(B, 2, H * W)
            ksp = data_consistency(ksp, mask_cm, k0_cm).reshape(B, 2, H, W)
            image = ifft2c_cm(ksp)
        else:
            ksp = fft2c_cm(image)
            ksp = conv_block_apply(block_params, ksp)             # kspace + ConvBlock(kspace)
            ksp = data_consistency(ksp.reshape(B, 2, H * W), mask_cm, k0_cm).reshape(B, 2, H, W)
            image = ifft2c_cm(ksp)
    return jnp.transpose(image, (0, 2, 3, 1))


# ------------------------ deterministic parameter init -------------------------

def init_params(key, depth_str=DEPTH_STR, nd=5, nf=32, in_chans=2, out_chans=2):
    # weights stored bf16 as (Cout, 9*Cin), flat index (ky*3+kx)*Cin + cin; biases f32 as (Cout, 1)
    params = []
    chans = [in_chans] + [nf] * (nd - 1) + [out_chans]
    for _ in range(len(depth_str)):
        block = []
        for li in range(nd):
            cin, cout = chans[li], chans[li + 1]
            key, kw, kb = jax.random.split(key, 3)
            fan_in = 9 * cin
            w = (jax.random.normal(kw, (cout, 9 * cin), jnp.float32)
                 / jnp.sqrt(float(fan_in))).astype(jnp.bfloat16)
            b = jax.random.normal(kb, (cout, 1), jnp.float32) * 0.01
            block.append((w, b))
        params.append(block)
    return params


# -------------------- bf16-matched ConvBlock reference (for checking) ----------

def _conv_block_reference(block_params, x):
    # Same weight values, bf16-quantized inputs/activations, f32 accumulation -> matches the Pallas
    # kernel up to accumulation-order noise, so a tight relative tolerance catches tap/offset bugs.
    h = x
    n = len(block_params)
    for li, (w, b) in enumerate(block_params):
        cout = w.shape[0]
        cin = w.shape[1] // 9
        wf = jnp.asarray(w, jnp.float32).reshape(cout, 3, 3, cin)
        wf = jnp.transpose(wf, (1, 2, 3, 0))                     # HWIO
        hin = h.astype(jnp.bfloat16).astype(jnp.float32)
        y = jax.lax.conv_general_dilated(
            hin, wf, window_strides=(1, 1), padding=((1, 1), (1, 1)),
            dimension_numbers=("NCHW", "HWIO", "NCHW"),
            precision=jax.lax.Precision.HIGHEST)
        y = y + jnp.asarray(b, jnp.float32).reshape(1, -1, 1, 1)
        if li < n - 1:
            y = jnp.where(y >= 0, y, NEG_SLOPE * y)
            h = y.astype(jnp.bfloat16).astype(jnp.float32)       # kernel stores activations in bf16
        else:
            h = y
    return x + h


# ----------------------------------- main ---------------------------------------

if __name__ == "__main__":
    key = jax.random.PRNGKey(0)
    kx_, kk, km, kp = jax.random.split(key, 4)

    B, H, W = 2, 16, 16
    x = jax.random.normal(kx_, (B, H, W, 2), jnp.float32)         # zero-filled complex image
    k0 = jax.random.normal(kk, (B, H, W, 2), jnp.float32)         # measured k-space
    mask = (jax.random.uniform(km, (B, H, W, 1)) > 0.5).astype(jnp.float32)  # sampling mask

    params = init_params(kp)

    # check the fused ConvBlock kernel against a bf16-matched conv reference (relative tolerance)
    x_cm = jnp.transpose(x, (0, 3, 1, 2))
    ref = _conv_block_reference(params[0], x_cm)
    got = conv_block_apply(params[0], x_cm)
    err = float(jnp.max(jnp.abs(got - ref)))
    scale = float(jnp.max(jnp.abs(ref)))
    assert err <= 5e-3 * scale + 1e-4, ("fused ConvBlock kernel mismatch", err, scale)

    fwd = jax.jit(functools.partial(hybird_net_forward, params))
    out = fwd(x, k0, mask)
    jax.block_until_ready(out)

    assert out.shape == (B, H, W, 2), out.shape
    assert out.dtype == jnp.float32
    print("KERNEL_OK")
</pallas_src>

<mosaic_0001>
module attributes {stable_mosaic.version = 11 : i64} {
  func.func @kernel(%arg0: i32, %arg1: memref<1x16x512xf32, #tpu.memory_space<vmem>>, %arg2: memref<32x144xbf16, #tpu.memory_space<vmem>>, %arg3: memref<32x1xf32, #tpu.memory_space<vmem>>, %arg4: memref<32x288xbf16, #tpu.memory_space<vmem>>, %arg5: memref<32x1xf32, #tpu.memory_space<vmem>>, %arg6: memref<32x288xbf16, #tpu.memory_space<vmem>>, %arg7: memref<32x1xf32, #tpu.memory_space<vmem>>, %arg8: memref<32x288xbf16, #tpu.memory_space<vmem>>, %arg9: memref<32x1xf32, #tpu.memory_space<vmem>>, %arg10: memref<2x288xbf16, #tpu.memory_space<vmem>>, %arg11: memref<2x1xf32, #tpu.memory_space<vmem>>, %arg12: memref<1x2x288xf32, #tpu.memory_space<vmem>>, %arg13: memref<32x512xbf16, #tpu.memory_space<vmem>>, %arg14: memref<288x288xbf16, #tpu.memory_space<vmem>>) attributes {dimension_semantics = [#tpu.dimension_semantics<parallel>], iteration_bounds = array<i64: 2>, scalar_prefetch = 0 : i64, scratch_operands = 2 : i64, tpu.core_type = #tpu.core_type<tc>, window_params = [{transform_indices = @transform_0, window_bounds = array<i64: 1, 16, 512>}, {pipeline_mode = #tpu.pipeline_mode<synchronous>, transform_indices = @transform_1, window_bounds = array<i64: 32, 144>}, {pipeline_mode = #tpu.pipeline_mode<synchronous>, transform_indices = @transform_2, window_bounds = array<i64: 32, 1>}, {pipeline_mode = #tpu.pipeline_mode<synchronous>, transform_indices = @transform_3, window_bounds = array<i64: 32, 288>}, {pipeline_mode = #tpu.pipeline_mode<synchronous>, transform_indices = @transform_4, window_bounds = array<i64: 32, 1>}, {pipeline_mode = #tpu.pipeline_mode<synchronous>, transform_indices = @transform_5, window_bounds = array<i64: 32, 288>}, {pipeline_mode = #tpu.pipeline_mode<synchronous>, transform_indices = @transform_6, window_bounds = array<i64: 32, 1>}, {pipeline_mode = #tpu.pipeline_mode<synchronous>, transform_indices = @transform_7, window_bounds = array<i64: 32, 288>}, {pipeline_mode = #tpu.pipeline_mode<synchronous>, transform_indices = @transform_8, window_bounds = array<i64: 32, 1>}, {pipeline_mode = #tpu.pipeline_mode<synchronous>, transform_indices = @transform_9, window_bounds = array<i64: 2, 288>}, {pipeline_mode = #tpu.pipeline_mode<synchronous>, transform_indices = @transform_10, window_bounds = array<i64: 2, 1>}, {transform_indices = @transform_11, window_bounds = array<i64: 1, 2, 288>}]} {
    %cst = arith.constant 0.000000e+00 : bf16
    %0 = vector.broadcast %cst : bf16 to vector<32x128xbf16>
    %c0 = arith.constant 0 : index
    %c0_0 = arith.constant 0 : index
    %1 = vector.load %arg13[%c0, %c0_0] : memref<32x512xbf16, #tpu.memory_space<vmem>>, vector<32x128xbf16>
    tpu.vector_store %arg13[%c0, %c0_0], %0 {strides = array<i32>} : memref<32x512xbf16, #tpu.memory_space<vmem>>, vector<32x128xbf16>,
    %cst_1 = arith.constant 0.000000e+00 : bf16
    %2 = vector.broadcast %cst_1 : bf16 to vector<32x96xbf16>
    %c0_2 = arith.constant 0 : index
    %c416 = arith.constant 416 : index
    %3 = vector.load %arg13[%c0_2, %c416] : memref<32x512xbf16, #tpu.memory_space<vmem>>, vector<32x96xbf16>
    tpu.vector_store %arg13[%c0_2, %c416], %2 {strides = array<i32>} : memref<32x512xbf16, #tpu.memory_space<vmem>>, vector<32x96xbf16>,
    %4 = tpu.iota {dimensions = array<i32: 1>} : vector<1x288xi32>
    %c18_i32 = arith.constant 18 : i32
    %c0_i32 = arith.constant 0 : i32
    %5 = arith.cmpi eq, %c18_i32, %c0_i32 : i32
    %c1_i32 = arith.constant 1 : i32
    %6 = arith.select %5, %c1_i32, %c18_i32 : i32
    %7 = vector.broadcast %6 : i32 to vector<1x288xi32>
    %8 = arith.remsi %4, %7 : vector<1x288xi32>
    %c0_i32_3 = arith.constant 0 : i32
    %9 = vector.broadcast %c0_i32_3 : i32 to vector<1x288xi32>
    %10 = arith.cmpi ne, %8, %9 : vector<1x288xi32>
    %c0_i32_4 = arith.constant 0 : i32
    %11 = vector.broadcast %c0_i32_4 : i32 to vector<1x288xi32>
    %12 = arith.cmpi slt, %8, %11 : vector<1x288xi32>
    %c0_i32_5 = arith.constant 0 : i32
    %13 = arith.cmpi slt, %6, %c0_i32_5 : i32
    %14 = vector.broadcast %13 : i1 to vector<1x288xi1>
    %15 = vector.broadcast %14 : vector<1x288xi1> to vector<1x288xi1>
    %16 = arith.xori %12, %15 : vector<1x288xi1>
    %17 = arith.andi %16, %10 : vector<1x288xi1>
    %18 = vector.broadcast %6 : i32 to vector<1x288xi32>
    %19 = arith.addi %8, %18 : vector<1x288xi32>
    %20 = arith.select %17, %19, %8 : vector<1x288xi1>, vector<1x288xi32>
    %c16_i32 = arith.constant 16 : i32
    %21 = vector.broadcast %c16_i32 : i32 to vector<1x288xi32>
    %22 = arith.cmpi slt, %20, %21 : vector<1x288xi32>
    %c0_6 = arith.constant 0 : index
    %c0_7 = arith.constant 0 : index
    %c0_8 = arith.constant 0 : index
    %23 = vector.load %arg1[%c0_6, %c0_7, %c0_8] : memref<1x16x512xf32, #tpu.memory_space<vmem>>, vector<1x16x512xf32>
    %24 = vector.shape_cast %23 : vector<1x16x512xf32> to vector<16x512xf32>
    %25 = arith.truncf %24 : vector<16x512xf32> to vector<16x512xbf16>
    %26 = vector.extract_strided_slice %25 {offsets = [0, 109], sizes = [16, 288], strides = [1, 1]} : vector<16x512xbf16> to vector<16x288xbf16>
    %c0_9 = arith.constant 0 : index
    %c0_10 = arith.constant 0 : index
    %27 = vector.load %arg14[%c0_9, %c0_10] : memref<288x288xbf16, #tpu.memory_space<vmem>>, vector<16x288xbf16>
    tpu.vector_store %arg14[%c0_9, %c0_10], %26 {strides = array<i32>} : memref<288x288xbf16, #tpu.memory_space<vmem>>, vector<16x288xbf16>,
    %28 = vector.extract_strided_slice %25 {offsets = [0, 110], sizes = [16, 288], strides = [1, 1]} : vector<16x512xbf16> to vector<16x288xbf16>
    %c16 = arith.constant 16 : index
    %c0_11 = arith.constant 0 : index
    %29 = vector.load %arg14[%c16, %c0_11] : memref<288x288xbf16, #tpu.memory_space<vmem>>, vector<16x288xbf16>
    tpu.vector_store %arg14[%c16, %c0_11], %28 {strides = array<i32>} : memref<288x288xbf16, #tpu.memory_space<vmem>>, vector<16x288xbf16>,
    %30 = vector.extract_strided_slice %25 {offsets = [0, 111], sizes = [16, 288], strides = [1, 1]} : vector<16x512xbf16> to vector<16x288xbf16>
    %c32 = arith.constant 32 : index
    %c0_12 = arith.constant 0 : index
    %31 = vector.load %arg14[%c32, %c0_12] : memref<288x288xbf16, #tpu.memory_space<vmem>>, vector<16x288xbf16>
    tpu.vector_store %arg14[%c32, %c0_12], %30 {strides = array<i32>} : memref<288x288xbf16, #tpu.memory_space<vmem>>, vector<16x288xbf16>,
    %32 = vector.extract_strided_slice %25 {offsets = [0, 127], sizes = [16, 288], strides = [1, 1]} : vector<16x512xbf16> to vector<16x288xbf16>
    %c48 = arith.constant 48 : index
    %c0_13 = arith.constant 0 : index
    %33 = vector.load %arg14[%c48, %c0_13] : memref<288x288xbf16, #tpu.memory_space<vmem>>, vector<16x288xbf16>
    tpu.vector_store %arg14[%c48, %c0_13], %32 {strides = array<i32>} : memref<288x288xbf16, #tpu.memory_space<vmem>>, vector<16x288xbf16>,
    %34 = vector.extract_strided_slice %25 {offsets = [0, 128], sizes = [16, 288], strides = [1, 1]} : vector<16x512xbf16> to vector<16x288xbf16>
    %c64 = arith.constant 64 : index
    %c0_14 = arith.constant 0 : index
    %35 = vector.load %arg14[%c64, %c0_14] : memref<288x288xbf16, #tpu.memory_space<vmem>>, vector<16x288xbf16>
    tpu.vector_store %arg14[%c64, %c0_14], %34 {strides = array<i32>} : memref<288x288xbf16, #tpu.memory_space<vmem>>, vector<16x288xbf16>,
    %36 = vector.extract_strided_slice %25 {offsets = [0, 129], sizes = [16, 288], strides = [1, 1]} : vector<16x512xbf16> to vector<16x288xbf16>
    %c80 = arith.constant 80 : index
    %c0_15 = arith.constant 0 : index
    %37 = vector.load %arg14[%c80, %c0_15] : memref<288x288xbf16, #tpu.memory_space<vmem>>, vector<16x288xbf16>
    tpu.vector_store %arg14[%c80, %c0_15], %36 {strides = array<i32>} : memref<288x288xbf16, #tpu.memory_space<vmem>>, vector<16x288xbf16>,
    %38 = vector.extract_strided_slice %25 {offsets = [0, 145], sizes = [16, 288], strides = [1, 1]} : vector<16x512xbf16> to vector<16x288xbf16>
    %c96 = arith.constant 96 : index
    %c0_16 = arith.constant 0 : index
    %39 = vector.load %arg14[%c96, %c0_16] : memref<288x288xbf16, #tpu.memory_space<vmem>>, vector<16x288xbf16>
    tpu.vector_store %arg14[%c96, %c0_16], %38 {strides = array<i32>} : memref<288x288xbf16, #tpu.memory_space<vmem>>, vector<16x288xbf16>,
    %40 = vector.extract_strided_slice %25 {offsets = [0, 146], sizes = [16, 288], strides = [1, 1]} : vector<16x512xbf16> to vector<16x288xbf16>
    %c112 = arith.constant 112 : index
    %c0_17 = arith.constant 0 : index
    %41 = vector.load %arg14[%c112, %c0_17] : memref<288x288xbf16, #tpu.memory_space<vmem>>, vector<16x288xbf16>
    tpu.vector_store %arg14[%c112, %c0_17], %40 {strides = array<i32>} : memref<288x288xbf16, #tpu.memory_space<vmem>>, vector<16x288xbf16>,
    %42 = vector.extract_strided_slice %25 {offsets = [0, 147], sizes = [16, 288], strides = [1, 1]} : vector<16x512xbf16> to vector<16x288xbf16>
    %c128 = arith.constant 128 : index
    %c0_18 = arith.constant 0 : index
    %43 = vector.load %arg14[%c128, %c0_18] : memref<288x288xbf16, #tpu.memory_space<vmem>>, vector<16x288xbf16>
    tpu.vector_store %arg14[%c128, %c0_18], %42 {strides = array<i32>} : memref<288x288xbf16, #tpu.memory_space<vmem>>, vector<16x288xbf16>,
    %c0_19 = arith.constant 0 : index
    %c0_20 = arith.constant 0 : index
    %44 = vector.load %arg2[%c0_19, %c0_20] : memref<32x144xbf16, #tpu.memory_space<vmem>>, vector<32x144xbf16>
    %c0_21 = arith.constant 0 : index
    %c0_22 = arith.constant 0 : index
    %45 = vector.load %arg14[%c0_21, %c0_22] : memref<288x288xbf16, #tpu.memory_space<vmem>>, vector<144x288xbf16>
    %cst_23 = arith.constant dense<0.000000e+00> : vector<32x288xf32>
    %46 = tpu.matmul %44, %45, %cst_23 {dimension_numbers = #tpu.dot_dimension_numbers<[1], [0], [0], [1], [0, 0, 1, 1], [], []>} : vector<32x144xbf16>, vector<144x288xbf16>, vector<32x288xf32> -> vector<32x288xf32>
    %c0_24 = arith.constant 0 : index
    %c0_25 = arith.constant 0 : index
    %47 = vector.load %arg3[%c0_24, %c0_25] : memref<32x1xf32, #tpu.memory_space<vmem>>, vector<32x1xf32>
    %48 = vector.broadcast %47 : vector<32x1xf32> to vector<32x288xf32>
    %49 = arith.addf %46, %48 : vector<32x288xf32>
    %cst_26 = arith.constant 0.000000e+00 : f32
    %50 = vector.broadcast %cst_26 : f32 to vector<32x288xf32>
    %51 = arith.cmpf oge, %49, %50 : vector<32x288xf32>
    %cst_27 = arith.constant 1.000000e-01 : f32
    %52 = vector.broadcast %cst_27 : f32 to vector<32x288xf32>
    %53 = arith.mulf %52, %49 : vector<32x288xf32>
    %54 = arith.select %51, %49, %53 : vector<32x288xi1>, vector<32x288xf32>
    %cst_28 = arith.constant 0.000000e+00 : f32
    %55 = vector.shape_cast %22 : vector<1x288xi1> to vector<1x288xi1>
    %56 = vector.broadcast %55 : vector<1x288xi1> to vector<32x288xi1>
    %57 = vector.broadcast %cst_28 : f32 to vector<32x288xf32>
    %58 = arith.select %56, %54, %57 : vector<32x288xi1>, vector<32x288xf32>
    %59 = arith.truncf %58 : vector<32x288xf32> to vector<32x288xbf16>
    %c0_29 = arith.constant 0 : index
    %c128_30 = arith.constant 128 : index
    %60 = vector.load %arg13[%c0_29, %c128_30] : memref<32x512xbf16, #tpu.memory_space<vmem>>, vector<32x288xbf16>
    tpu.vector_store %arg13[%c0_29, %c128_30], %59 {strides = array<i32>} : memref<32x512xbf16, #tpu.memory_space<vmem>>, vector<32x288xbf16>,
    %c0_31 = arith.constant 0 : index
    %c109 = arith.constant 109 : index
    %61 = vector.load %arg13[%c0_31, %c109] : memref<32x512xbf16, #tpu.memory_space<vmem>>, vector<32x288xbf16>
    %c0_32 = arith.constant 0 : index
    %c0_33 = arith.constant 0 : index
    %62 = vector.load %arg14[%c0_32, %c0_33] : memref<288x288xbf16, #tpu.memory_space<vmem>>, vector<32x288xbf16>
    tpu.vector_store %arg14[%c0_32, %c0_33], %61 {strides = array<i32>} : memref<288x288xbf16, #tpu.memory_space<vmem>>, vector<32x288xbf16>,
    %c0_34 = arith.constant 0 : index
    %c110 = arith.constant 110 : index
    %63 = vector.load %arg13[%c0_34, %c110] : memref<32x512xbf16, #tpu.memory_space<vmem>>, vector<32x288xbf16>
    %c32_35 = arith.constant 32 : index
    %c0_36 = arith.constant 0 : index
    %64 = vector.load %arg14[%c32_35, %c0_36] : memref<288x288xbf16, #tpu.memory_space<vmem>>, vector<32x288xbf16>
    tpu.vector_store %arg14[%c32_35, %c0_36], %63 {strides = array<i32>} : memref<288x288xbf16, #tpu.memory_space<vmem>>, vector<32x288xbf16>,
    %c0_37 = arith.constant 0 : index
    %c111 = arith.constant 111 : index
    %65 = vector.load %arg13[%c0_37, %c111] : memref<32x512xbf16, #tpu.memory_space<vmem>>, vector<32x288xbf16>
    %c64_38 = arith.constant 64 : index
    %c0_39 = arith.constant 0 : index
    %66 = vector.load %arg14[%c64_38, %c0_39] : memref<288x288xbf16, #tpu.memory_space<vmem>>, vector<32x288xbf16>
    tpu.vector_store %arg14[%c64_38, %c0_39], %65 {strides = array<i32>} : memref<288x288xbf16, #tpu.memory_space<vmem>>, vector<32x288xbf16>,
    %c0_40 = arith.constant 0 : index
    %c127 = arith.constant 127 : index
    %67 = vector.load %arg13[%c0_40, %c127] : memref<32x512xbf16, #tpu.memory_space<vmem>>, vector<32x288xbf16>
    %c96_41 = arith.constant 96 : index
    %c0_42 = arith.constant 0 : index
    %68 = vector.load %arg14[%c96_41, %c0_42] : memref<288x288xbf16, #tpu.memory_space<vmem>>, vector<32x288xbf16>
    tpu.vector_store %arg14[%c96_41, %c0_42], %67 {strides = array<i32>} : memref<288x288xbf16, #tpu.memory_space<vmem>>, vector<32x288xbf16>,
    %c0_43 = arith.constant 0 : index
    %c128_44 = arith.constant 128 : index
    %69 = vector.load %arg13[%c0_43, %c128_44] : memref<32x512xbf16, #tpu.memory_space<vmem>>, vector<32x288xbf16>
    %c128_45 = arith.constant 128 : index
    %c0_46 = arith.constant 0 : index
    %70 = vector.load %arg14[%c128_45, %c0_46] : memref<288x288xbf16, #tpu.memory_space<vmem>>, vector<32x288xbf16>
    tpu.vector_store %arg14[%c128_45, %c0_46], %69 {strides = array<i32>} : memref<288x288xbf16, #tpu.memory_space<vmem>>, vector<32x288xbf16>,
    %c0_47 = arith.constant 0 : index
    %c129 = arith.constant 129 : index
    %71 = vector.load %arg13[%c0_47, %c129] : memref<32x512xbf16, #tpu.memory_space<vmem>>, vector<32x288xbf16>
    %c160 = arith.constant 160 : index
    %c0_48 = arith.constant 0 : index
    %72 = vector.load %arg14[%c160, %c0_48] : memref<288x288xbf16, #tpu.memory_space<vmem>>, vector<32x288xbf16>
    tpu.vector_store %arg14[%c160, %c0_48], %71 {strides = array<i32>} : memref<288x288xbf16, #tpu.memory_space<vmem>>, vector<32x288xbf16>,
    %c0_49 = arith.constant 0 : index
    %c145 = arith.constant 145 : index
    %73 = vector.load %arg13[%c0_49, %c145] : memref<32x512xbf16, #tpu.memory_space<vmem>>, vector<32x288xbf16>
    %c192 = arith.constant 192 : index
    %c0_50 = arith.constant 0 : index
    %74 = vector.load %arg14[%c192, %c0_50] : memref<288x288xbf16, #tpu.memory_space<vmem>>, vector<32x288xbf16>
    tpu.vector_store %arg14[%c192, %c0_50], %73 {strides = array<i32>} : memref<288x288xbf16, #tpu.memory_space<vmem>>, vector<32x288xbf16>,
    %c0_51 = arith.constant 0 : index
    %c146 = arith.constant 146 : index
    %75 = vector.load %arg13[%c0_51, %c146] : memref<32x512xbf16, #tpu.memory_space<vmem>>, vector<32x288xbf16>
    %c224 = arith.constant 224 : index
    %c0_52 = arith.constant 0 : index
    %76 = vector.load %arg14[%c224, %c0_52] : memref<288x288xbf16, #tpu.memory_space<vmem>>, vector<32x288xbf16>
    tpu.vector_store %arg14[%c224, %c0_52], %75 {strides = array<i32>} : memref<288x288xbf16, #tpu.memory_space<vmem>>, vector<32x288xbf16>,
    %c0_53 = arith.constant 0 : index
    %c147 = arith.constant 147 : index
    %77 = vector.load %arg13[%c0_53, %c147] : memref<32x512xbf16, #tpu.memory_space<vmem>>, vector<32x288xbf16>
    %c256 = arith.constant 256 : index
    %c0_54 = arith.constant 0 : index
    %78 = vector.load %arg14[%c256, %c0_54] : memref<288x288xbf16, #tpu.memory_space<vmem>>, vector<32x288xbf16>
    tpu.vector_store %arg14[%c256, %c0_54], %77 {strides = array<i32>} : memref<288x288xbf16, #tpu.memory_space<vmem>>, vector<32x288xbf16>,
    %c0_55 = arith.constant 0 : index
    %c0_56 = arith.constant 0 : index
    %79 = vector.load %arg4[%c0_55, %c0_56] : memref<32x288xbf16, #tpu.memory_space<vmem>>, vector<32x288xbf16>
    %c0_57 = arith.constant 0 : index
    %c0_58 = arith.constant 0 : index
    %80 = vector.load %arg14[%c0_57, %c0_58] : memref<288x288xbf16, #tpu.memory_space<vmem>>, vector<288x288xbf16>
    %cst_59 = arith.constant dense<0.000000e+00> : vector<32x288xf32>
    %81 = tpu.matmul %79, %80, %cst_59 {dimension_numbers = #tpu.dot_dimension_numbers<[1], [0], [0], [1], [0, 0, 1, 1], [], []>} : vector<32x288xbf16>, vector<288x288xbf16>, vector<32x288xf32> -> vector<32x288xf32>
    %c0_60 = arith.constant 0 : index
    %c0_61 = arith.constant 0 : index
    %82 = vector.load %arg5[%c0_60, %c0_61] : memref<32x1xf32, #tpu.memory_space<vmem>>, vector<32x1xf32>
    %83 = vector.broadcast %82 : vector<32x1xf32> to vector<32x288xf32>
    %84 = arith.addf %81, %83 : vector<32x288xf32>
    %cst_62 = arith.constant 0.000000e+00 : f32
    %85 = vector.broadcast %cst_62 : f32 to vector<32x288xf32>
    %86 = arith.cmpf oge, %84, %85 : vector<32x288xf32>
    %cst_63 = arith.constant 1.000000e-01 : f32
    %87 = vector.broadcast %cst_63 : f32 to vector<32x288xf32>
    %88 = arith.mulf %87, %84 : vector<32x288xf32>
    %89 = arith.select %86, %84, %88 : vector<32x288xi1>, vector<32x288xf32>
    %cst_64 = arith.constant 0.000000e+00 : f32
    %90 = vector.shape_cast %22 : vector<1x288xi1> to vector<1x288xi1>
    %91 = vector.broadcast %90 : vector<1x288xi1> to vector<32x288xi1>
    %92 = vector.broadcast %cst_64 : f32 to vector<32x288xf32>
    %93 = arith.select %91, %89, %92 : vector<32x288xi1>, vector<32x288xf32>
    %94 = arith.truncf %93 : vector<32x288xf32> to vector<32x288xbf16>
    %c0_65 = arith.constant 0 : index
    %c128_66 = arith.constant 128 : index
    %95 = vector.load %arg13[%c0_65, %c128_66] : memref<32x512xbf16, #tpu.memory_space<vmem>>, vector<32x288xbf16>
    tpu.vector_store %arg13[%c0_65, %c128_66], %94 {strides = array<i32>} : memref<32x512xbf16, #tpu.memory_space<vmem>>, vector<32x288xbf16>,
    %c0_67 = arith.constant 0 : index
    %c109_68 = arith.constant 109 : index
    %96 = vector.load %arg13[%c0_67, %c109_68] : memref<32x512xbf16, #tpu.memory_space<vmem>>, vector<32x288xbf16>
    %c0_69 = arith.constant 0 : index
    %c0_70 = arith.constant 0 : index
    %97 = vector.load %arg14[%c0_69, %c0_70] : memref<288x288xbf16, #tpu.memory_space<vmem>>, vector<32x288xbf16>
    tpu.vector_store %arg14[%c0_69, %c0_70], %96 {strides = array<i32>} : memref<288x288xbf16, #tpu.memory_space<vmem>>, vector<32x288xbf16>,
    %c0_71 = arith.constant 0 : index
    %c110_72 = arith.constant 110 : index
    %98 = vector.load %arg13[%c0_71, %c110_72] : memref<32x512xbf16, #tpu.memory_space<vmem>>, vector<32x288xbf16>
    %c32_73 = arith.constant 32 : index
    %c0_74 = arith.constant 0 : index
    %99 = vector.load %arg14[%c32_73, %c0_74] : memref<288x288xbf16, #tpu.memory_space<vmem>>, vector<32x288xbf16>
    tpu.vector_store %arg14[%c32_73, %c0_74], %98 {strides = array<i32>} : memref<288x288xbf16, #tpu.memory_space<vmem>>, vector<32x288xbf16>,
    %c0_75 = arith.constant 0 : index
    %c111_76 = arith.constant 111 : index
    %100 = vector.load %arg13[%c0_75, %c111_76] : memref<32x512xbf16, #tpu.memory_space<vmem>>, vector<32x288xbf16>
    %c64_77 = arith.constant 64 : index
    %c0_78 = arith.constant 0 : index
    %101 = vector.load %arg14[%c64_77, %c0_78] : memref<288x288xbf16, #tpu.memory_space<vmem>>, vector<32x288xbf16>
    tpu.vector_store %arg14[%c64_77, %c0_78], %100 {strides = array<i32>} : memref<288x288xbf16, #tpu.memory_space<vmem>>, vector<32x288xbf16>,
    %c0_79 = arith.constant 0 : index
    %c127_80 = arith.constant 127 : index
    %102 = vector.load %arg13[%c0_79, %c127_80] : memref<32x512xbf16, #tpu.memory_space<vmem>>, vector<32x288xbf16>
    %c96_81 = arith.constant 96 : index
    %c0_82 = arith.constant 0 : index
    %103 = vector.load %arg14[%c96_81, %c0_82] : memref<288x288xbf16, #tpu.memory_space<vmem>>, vector<32x288xbf16>
    tpu.vector_store %arg14[%c96_81, %c0_82], %102 {strides = array<i32>} : memref<288x288xbf16, #tpu.memory_space<vmem>>, vector<32x288xbf16>,
    %c0_83 = arith.constant 0 : index
    %c128_84 = arith.constant 128 : index
    %104 = vector.load %arg13[%c0_83, %c128_84] : memref<32x512xbf16, #tpu.memory_space<vmem>>, vector<32x288xbf16>
    %c128_85 = arith.constant 128 : index
    %c0_86 = arith.constant 0 : index
    %105 = vector.load %arg14[%c128_85, %c0_86] : memref<288x288xbf16, #tpu.memory_space<vmem>>, vector<32x288xbf16>
    tpu.vector_store %arg14[%c128_85, %c0_86], %104 {strides = array<i32>} : memref<288x288xbf16, #tpu.memory_space<vmem>>, vector<32x288xbf16>,
    %c0_87 = arith.constant 0 : index
    %c129_88 = arith.constant 129 : index
    %106 = vector.load %arg13[%c0_87, %c129_88] : memref<32x512xbf16, #tpu.memory_space<vmem>>, vector<32x288xbf16>
    %c160_89 = arith.constant 160 : index
    %c0_90 = arith.constant 0 : index
    %107 = vector.load %arg14[%c160_89, %c0_90] : memref<288x288xbf16, #tpu.memory_space<vmem>>, vector<32x288xbf16>
    tpu.vector_store %arg14[%c160_89, %c0_90], %106 {strides = array<i32>} : memref<288x288xbf16, #tpu.memory_space<vmem>>, vector<32x288xbf16>,
    %c0_91 = arith.constant 0 : index
    %c145_92 = arith.constant 145 : index
    %108 = vector.load %arg13[%c0_91, %c145_92] : memref<32x512xbf16, #tpu.memory_space<vmem>>, vector<32x288xbf16>
    %c192_93 = arith.constant 192 : index
    %c0_94 = arith.constant 0 : index
    %109 = vector.load %arg14[%c192_93, %c0_94] : memref<288x288xbf16, #tpu.memory_space<vmem>>, vector<32x288xbf16>
    tpu.vector_store %arg14[%c192_93, %c0_94], %108 {strides = array<i32>} : memref<288x288xbf16, #tpu.memory_space<vmem>>, vector<32x288xbf16>,
    %c0_95 = arith.constant 0 : index
    %c146_96 = arith.constant 146 : index
    %110 = vector.load %arg13[%c0_95, %c146_96] : memref<32x512xbf16, #tpu.memory_space<vmem>>, vector<32x288xbf16>
    %c224_97 = arith.constant 224 : index
    %c0_98 = arith.constant 0 : index
    %111 = vector.load %arg14[%c224_97, %c0_98] : memref<288x288xbf16, #tpu.memory_space<vmem>>, vector<32x288xbf16>
    tpu.vector_store %arg14[%c224_97, %c0_98], %110 {strides = array<i32>} : memref<288x288xbf16, #tpu.memory_space<vmem>>, vector<32x288xbf16>,
    %c0_99 = arith.constant 0 : index
    %c147_100 = arith.constant 147 : index
    %112 = vector.load %arg13[%c0_99, %c147_100] : memref<32x512xbf16, #tpu.memory_space<vmem>>, vector<32x288xbf16>
    %c256_101 = arith.constant 256 : index
    %c0_102 = arith.constant 0 : index
    %113 = vector.load %arg14[%c256_101, %c0_102] : memref<288x288xbf16, #tpu.memory_space<vmem>>, vector<32x288xbf16>
    tpu.vector_store %arg14[%c256_101, %c0_102], %112 {strides = array<i32>} : memref<288x288xbf16, #tpu.memory_space<vmem>>, vector<32x288xbf16>,
    %c0_103 = arith.constant 0 : index
    %c0_104 = arith.constant 0 : index
    %114 = vector.load %arg6[%c0_103, %c0_104] : memref<32x288xbf16, #tpu.memory_space<vmem>>, vector<32x288xbf16>
    %c0_105 = arith.constant 0 : index
    %c0_106 = arith.constant 0 : index
    %115 = vector.load %arg14[%c0_105, %c0_106] : memref<288x288xbf16, #tpu.memory_space<vmem>>, vector<288x288xbf16>
    %cst_107 = arith.constant dense<0.000000e+00> : vector<32x288xf32>
    %116 = tpu.matmul %114, %115, %cst_107 {dimension_numbers = #tpu.dot_dimension_numbers<[1], [0], [0], [1], [0, 0, 1, 1], [], []>} : vector<32x288xbf16>, vector<288x288xbf16>, vector<32x288xf32> -> vector<32x288xf32>
    %c0_108 = arith.constant 0 : index
    %c0_109 = arith.constant 0 : index
    %117 = vector.load %arg7[%c0_108, %c0_109] : memref<32x1xf32, #tpu.memory_space<vmem>>, vector<32x1xf32>
    %118 = vector.broadcast %117 : vector<32x1xf32> to vector<32x288xf32>
    %119 = arith.addf %116, %118 : vector<32x288xf32>
    %cst_110 = arith.constant 0.000000e+00 : f32
    %120 = vector.broadcast %cst_110 : f32 to vector<32x288xf32>
    %121 = arith.cmpf oge, %119, %120 : vector<32x288xf32>
    %cst_111 = arith.constant 1.000000e-01 : f32
    %122 = vector.broadcast %cst_111 : f32 to vector<32x288xf32>
    %123 = arith.mulf %122, %119 : vector<32x288xf32>
    %124 = arith.select %121, %119, %123 : vector<32x288xi1>, vector<32x288xf32>
    %cst_112 = arith.constant 0.000000e+00 : f32
    %125 = vector.shape_cast %22 : vector<1x288xi1> to vector<1x288xi1>
    %126 = vector.broadcast %125 : vector<1x288xi1> to vector<32x288xi1>
    %127 = vector.broadcast %cst_112 : f32 to vector<32x288xf32>
    %128 = arith.select %126, %124, %127 : vector<32x288xi1>, vector<32x288xf32>
    %129 = arith.truncf %128 : vector<32x288xf32> to vector<32x288xbf16>
    %c0_113 = arith.constant 0 : index
    %c128_114 = arith.constant 128 : index
    %130 = vector.load %arg13[%c0_113, %c128_114] : memref<32x512xbf16, #tpu.memory_space<vmem>>, vector<32x288xbf16>
    tpu.vector_store %arg13[%c0_113, %c128_114], %129 {strides = array<i32>} : memref<32x512xbf16, #tpu.memory_space<vmem>>, vector<32x288xbf16>,
    %c0_115 = arith.constant 0 : index
    %c109_116 = arith.constant 109 : index
    %131 = vector.load %arg13[%c0_115, %c109_116] : memref<32x512xbf16, #tpu.memory_space<vmem>>, vector<32x288xbf16>
    %c0_117 = arith.constant 0 : index
    %c0_118 = arith.constant 0 : index
    %132 = vector.load %arg14[%c0_117, %c0_118] : memref<288x288xbf16, #tpu.memory_space<vmem>>, vector<32x288xbf16>
    tpu.vector_store %arg14[%c0_117, %c0_118], %131 {strides = array<i32>} : memref<288x288xbf16, #tpu.memory_space<vmem>>, vector<32x288xbf16>,
    %c0_119 = arith.constant 0 : index
    %c110_120 = arith.constant 110 : index
    %133 = vector.load %arg13[%c0_119, %c110_120] : memref<32x512xbf16, #tpu.memory_space<vmem>>, vector<32x288xbf16>
    %c32_121 = arith.constant 32 : index
    %c0_122 = arith.constant 0 : index
    %134 = vector.load %arg14[%c32_121, %c0_122] : memref<288x288xbf16, #tpu.memory_space<vmem>>, vector<32x288xbf16>
    tpu.vector_store %arg14[%c32_121, %c0_122], %133 {strides = array<i32>} : memref<288x288xbf16, #tpu.memory_space<vmem>>, vector<32x288xbf16>,
    %c0_123 = arith.constant 0 : index
    %c111_124 = arith.constant 111 : index
    %135 = vector.load %arg13[%c0_123, %c111_124] : memref<32x512xbf16, #tpu.memory_space<vmem>>, vector<32x288xbf16>
    %c64_125 = arith.constant 64 : index
    %c0_126 = arith.constant 0 : index
    %136 = vector.load %arg14[%c64_125, %c0_126] : memref<288x288xbf16, #tpu.memory_space<vmem>>, vector<32x288xbf16>
    tpu.vector_store %arg14[%c64_125, %c0_126], %135 {strides = array<i32>} : memref<288x288xbf16, #tpu.memory_space<vmem>>, vector<32x288xbf16>,
    %c0_127 = arith.constant 0 : index
    %c127_128 = arith.constant 127 : index
    %137 = vector.load %arg13[%c0_127, %c127_128] : memref<32x512xbf16, #tpu.memory_space<vmem>>, vector<32x288xbf16>
    %c96_129 = arith.constant 96 : index
    %c0_130 = arith.constant 0 : index
    %138 = vector.load %arg14[%c96_129, %c0_130] : memref<288x288xbf16, #tpu.memory_space<vmem>>, vector<32x288xbf16>
    tpu.vector_store %arg14[%c96_129, %c0_130], %137 {strides = array<i32>} : memref<288x288xbf16, #tpu.memory_space<vmem>>, vector<32x288xbf16>,
    %c0_131 = arith.constant 0 : index
    %c128_132 = arith.constant 128 : index
    %139 = vector.load %arg13[%c0_131, %c128_132] : memref<32x512xbf16, #tpu.memory_space<vmem>>, vector<32x288xbf16>
    %c128_133 = arith.constant 128 : index
    %c0_134 = arith.constant 0 : index
    %140 = vector.load %arg14[%c128_133, %c0_134] : memref<288x288xbf16, #tpu.memory_space<vmem>>, vector<32x288xbf16>
    tpu.vector_store %arg14[%c128_133, %c0_134], %139 {strides = array<i32>} : memref<288x288xbf16, #tpu.memory_space<vmem>>, vector<32x288xbf16>,
    %c0_135 = arith.constant 0 : index
    %c129_136 = arith.constant 129 : index
    %141 = vector.load %arg13[%c0_135, %c129_136] : memref<32x512xbf16, #tpu.memory_space<vmem>>, vector<32x288xbf16>
    %c160_137 = arith.constant 160 : index
    %c0_138 = arith.constant 0 : index
    %142 = vector.load %arg14[%c160_137, %c0_138] : memref<288x288xbf16, #tpu.memory_space<vmem>>, vector<32x288xbf16>
    tpu.vector_store %arg14[%c160_137, %c0_138], %141 {strides = array<i32>} : memref<288x288xbf16, #tpu.memory_space<vmem>>, vector<32x288xbf16>,
    %c0_139 = arith.constant 0 : index
    %c145_140 = arith.constant 145 : index
    %143 = vector.load %arg13[%c0_139, %c145_140] : memref<32x512xbf16, #tpu.memory_space<vmem>>, vector<32x288xbf16>
    %c192_141 = arith.constant 192 : index
    %c0_142 = arith.constant 0 : index
    %144 = vector.load %arg14[%c192_141, %c0_142] : memref<288x288xbf16, #tpu.memory_space<vmem>>, vector<32x288xbf16>
    tpu.vector_store %arg14[%c192_141, %c0_142], %143 {strides = array<i32>} : memref<288x288xbf16, #tpu.memory_space<vmem>>, vector<32x288xbf16>,
    %c0_143 = arith.constant 0 : index
    %c146_144 = arith.constant 146 : index
    %145 = vector.load %arg13[%c0_143, %c146_144] : memref<32x512xbf16, #tpu.memory_space<vmem>>, vector<32x288xbf16>
    %c224_145 = arith.constant 224 : index
    %c0_146 = arith.constant 0 : index
    %146 = vector.load %arg14[%c224_145, %c0_146] : memref<288x288xbf16, #tpu.memory_space<vmem>>, vector<32x288xbf16>
    tpu.vector_store %arg14[%c224_145, %c0_146], %145 {strides = array<i32>} : memref<288x288xbf16, #tpu.memory_space<vmem>>, vector<32x288xbf16>,
    %c0_147 = arith.constant 0 : index
    %c147_148 = arith.constant 147 : index
    %147 = vector.load %arg13[%c0_147, %c147_148] : memref<32x512xbf16, #tpu.memory_space<vmem>>, vector<32x288xbf16>
    %c256_149 = arith.constant 256 : index
    %c0_150 = arith.constant 0 : index
    %148 = vector.load %arg14[%c256_149, %c0_150] : memref<288x288xbf16, #tpu.memory_space<vmem>>, vector<32x288xbf16>
    tpu.vector_store %arg14[%c256_149, %c0_150], %147 {strides = array<i32>} : memref<288x288xbf16, #tpu.memory_space<vmem>>, vector<32x288xbf16>,
    %c0_151 = arith.constant 0 : index
    %c0_152 = arith.constant 0 : index
    %149 = vector.load %arg8[%c0_151, %c0_152] : memref<32x288xbf16, #tpu.memory_space<vmem>>, vector<32x288xbf16>
    %c0_153 = arith.constant 0 : index
    %c0_154 = arith.constant 0 : index
    %150 = vector.load %arg14[%c0_153, %c0_154] : memref<288x288xbf16, #tpu.memory_space<vmem>>, vector<288x288xbf16>
    %cst_155 = arith.constant dense<0.000000e+00> : vector<32x288xf32>
    %151 = tpu.matmul %149, %150, %cst_155 {dimension_numbers = #tpu.dot_dimension_numbers<[1], [0], [0], [1], [0, 0, 1, 1], [], []>} : vector<32x288xbf16>, vector<288x288xbf16>, vector<32x288xf32> -> vector<32x288xf32>
    %c0_156 = arith.constant 0 : index
    %c0_157 = arith.constant 0 : index
    %152 = vector.load %arg9[%c0_156, %c0_157] : memref<32x1xf32, #tpu.memory_space<vmem>>, vector<32x1xf32>
    %153 = vector.broadcast %152 : vector<32x1xf32> to vector<32x288xf32>
    %154 = arith.addf %151, %153 : vector<32x288xf32>
    %cst_158 = arith.constant 0.000000e+00 : f32
    %155 = vector.broadcast %cst_158 : f32 to vector<32x288xf32>
    %156 = arith.cmpf oge, %154, %155 : vector<32x288xf32>
    %cst_159 = arith.constant 1.000000e-01 : f32
    %157 = vector.broadcast %cst_159 : f32 to vector<32x288xf32>
    %158 = arith.mulf %157, %154 : vector<32x288xf32>
    %159 = arith.select %156, %154, %158 : vector<32x288xi1>, vector<32x288xf32>
    %cst_160 = arith.constant 0.000000e+00 : f32
    %160 = vector.shape_cast %22 : vector<1x288xi1> to vector<1x288xi1>
    %161 = vector.broadcast %160 : vector<1x288xi1> to vector<32x288xi1>
    %162 = vector.broadcast %cst_160 : f32 to vector<32x288xf32>
    %163 = arith.select %161, %159, %162 : vector<32x288xi1>, vector<32x288xf32>
    %164 = arith.truncf %163 : vector<32x288xf32> to vector<32x288xbf16>
    %c0_161 = arith.constant 0 : index
    %c128_162 = arith.constant 128 : index
    %165 = vector.load %arg13[%c0_161, %c128_162] : memref<32x512xbf16, #tpu.memory_space<vmem>>, vector<32x288xbf16>
    tpu.vector_store %arg13[%c0_161, %c128_162], %164 {strides = array<i32>} : memref<32x512xbf16, #tpu.memory_space<vmem>>, vector<32x288xbf16>,
    %c0_163 = arith.constant 0 : index
    %c109_164 = arith.constant 109 : index
    %166 = vector.load %arg13[%c0_163, %c109_164] : memref<32x512xbf16, #tpu.memory_space<vmem>>, vector<32x288xbf16>
    %c0_165 = arith.constant 0 : index
    %c0_166 = arith.constant 0 : index
    %167 = vector.load %arg14[%c0_165, %c0_166] : memref<288x288xbf16, #tpu.memory_space<vmem>>, vector<32x288xbf16>
    tpu.vector_store %arg14[%c0_165, %c0_166], %166 {strides = array<i32>} : memref<288x288xbf16, #tpu.memory_space<vmem>>, vector<32x288xbf16>,
    %c0_167 = arith.constant 0 : index
    %c110_168 = arith.constant 110 : index
    %168 = vector.load %arg13[%c0_167, %c110_168] : memref<32x512xbf16, #tpu.memory_space<vmem>>, vector<32x288xbf16>
    %c32_169 = arith.constant 32 : index
    %c0_170 = arith.constant 0 : index
    %169 = vector.load %arg14[%c32_169, %c0_170] : memref<288x288xbf16, #tpu.memory_space<vmem>>, vector<32x288xbf16>
    tpu.vector_store %arg14[%c32_169, %c0_170], %168 {strides = array<i32>} : memref<288x288xbf16, #tpu.memory_space<vmem>>, vector<32x288xbf16>,
    %c0_171 = arith.constant 0 : index
    %c111_172 = arith.constant 111 : index
    %170 = vector.load %arg13[%c0_171, %c111_172] : memref<32x512xbf16, #tpu.memory_space<vmem>>, vector<32x288xbf16>
    %c64_173 = arith.constant 64 : index
    %c0_174 = arith.constant 0 : index
    %171 = vector.load %arg14[%c64_173, %c0_174] : memref<288x288xbf16, #tpu.memory_space<vmem>>, vector<32x288xbf16>
    tpu.vector_store %arg14[%c64_173, %c0_174], %170 {strides = array<i32>} : memref<288x288xbf16, #tpu.memory_space<vmem>>, vector<32x288xbf16>,
    %c0_175 = arith.constant 0 : index
    %c127_176 = arith.constant 127 : index
    %172 = vector.load %arg13[%c0_175, %c127_176] : memref<32x512xbf16, #tpu.memory_space<vmem>>, vector<32x288xbf16>
    %c96_177 = arith.constant 96 : index
    %c0_178 = arith.constant 0 : index
    %173 = vector.load %arg14[%c96_177, %c0_178] : memref<288x288xbf16, #tpu.memory_space<vmem>>, vector<32x288xbf16>
    tpu.vector_store %arg14[%c96_177, %c0_178], %172 {strides = array<i32>} : memref<288x288xbf16, #tpu.memory_space<vmem>>, vector<32x288xbf16>,
    %c0_179 = arith.constant 0 : index
    %c128_180 = arith.constant 128 : index
    %174 = vector.load %arg13[%c0_179, %c128_180] : memref<32x512xbf16, #tpu.memory_space<vmem>>, vector<32x288xbf16>
    %c128_181 = arith.constant 128 : index
    %c0_182 = arith.constant 0 : index
    %175 = vector.load %arg14[%c128_181, %c0_182] : memref<288x288xbf16, #tpu.memory_space<vmem>>, vector<32x288xbf16>
    tpu.vector_store %arg14[%c128_181, %c0_182], %174 {strides = array<i32>} : memref<288x288xbf16, #tpu.memory_space<vmem>>, vector<32x288xbf16>,
    %c0_183 = arith.constant 0 : index
    %c129_184 = arith.constant 129 : index
    %176 = vector.load %arg13[%c0_183, %c129_184] : memref<32x512xbf16, #tpu.memory_space<vmem>>, vector<32x288xbf16>
    %c160_185 = arith.constant 160 : index
    %c0_186 = arith.constant 0 : index
    %177 = vector.load %arg14[%c160_185, %c0_186] : memref<288x288xbf16, #tpu.memory_space<vmem>>, vector<32x288xbf16>
    tpu.vector_store %arg14[%c160_185, %c0_186], %176 {strides = array<i32>} : memref<288x288xbf16, #tpu.memory_space<vmem>>, vector<32x288xbf16>,
    %c0_187 = arith.constant 0 : index
    %c145_188 = arith.constant 145 : index
    %178 = vector.load %arg13[%c0_187, %c145_188] : memref<32x512xbf16, #tpu.memory_space<vmem>>, vector<32x288xbf16>
    %c192_189 = arith.constant 192 : index
    %c0_190 = arith.constant 0 : index
    %179 = vector.load %arg14[%c192_189, %c0_190] : memref<288x288xbf16, #tpu.memory_space<vmem>>, vector<32x288xbf16>
    tpu.vector_store %arg14[%c192_189, %c0_190], %178 {strides = array<i32>} : memref<288x288xbf16, #tpu.memory_space<vmem>>, vector<32x288xbf16>,
    %c0_191 = arith.constant 0 : index
    %c146_192 = arith.constant 146 : index
    %180 = vector.load %arg13[%c0_191, %c146_192] : memref<32x512xbf16, #tpu.memory_space<vmem>>, vector<32x288xbf16>
    %c224_193 = arith.constant 224 : index
    %c0_194 = arith.constant 0 : index
    %181 = vector.load %arg14[%c224_193, %c0_194] : memref<288x288xbf16, #tpu.memory_space<vmem>>, vector<32x288xbf16>
    tpu.vector_store %arg14[%c224_193, %c0_194], %180 {strides = array<i32>} : memref<288x288xbf16, #tpu.memory_space<vmem>>, vector<32x288xbf16>,
    %c0_195 = arith.constant 0 : index
    %c147_196 = arith.constant 147 : index
    %182 = vector.load %arg13[%c0_195, %c147_196] : memref<32x512xbf16, #tpu.memory_space<vmem>>, vector<32x288xbf16>
    %c256_197 = arith.constant 256 : index
    %c0_198 = arith.constant 0 : index
    %183 = vector.load %arg14[%c256_197, %c0_198] : memref<288x288xbf16, #tpu.memory_space<vmem>>, vector<32x288xbf16>
    tpu.vector_store %arg14[%c256_197, %c0_198], %182 {strides = array<i32>} : memref<288x288xbf16, #tpu.memory_space<vmem>>, vector<32x288xbf16>,
    %c0_199 = arith.constant 0 : index
    %c0_200 = arith.constant 0 : index
    %184 = vector.load %arg10[%c0_199, %c0_200] : memref<2x288xbf16, #tpu.memory_space<vmem>>, vector<2x288xbf16>
    %c0_201 = arith.constant 0 : index
    %c0_202 = arith.constant 0 : index
    %185 = vector.load %arg14[%c0_201, %c0_202] : memref<288x288xbf16, #tpu.memory_space<vmem>>, vector<288x288xbf16>
    %cst_203 = arith.constant dense<0.000000e+00> : vector<2x288xf32>
    %186 = tpu.matmul %184, %185, %cst_203 {dimension_numbers = #tpu.dot_dimension_numbers<[1], [0], [0], [1], [0, 0, 1, 1], [], []>} : vector<2x288xbf16>, vector<288x288xbf16>, vector<2x288xf32> -> vector<2x288xf32>
    %c0_204 = arith.constant 0 : index
    %c0_205 = arith.constant 0 : index
    %187 = vector.load %arg11[%c0_204, %c0_205] : memref<2x1xf32, #tpu.memory_space<vmem>>, vector<2x1xf32>
    %188 = vector.broadcast %187 : vector<2x1xf32> to vector<2x288xf32>
    %189 = arith.addf %186, %188 : vector<2x288xf32>
    %190 = vector.extract_strided_slice %24 {offsets = [0, 128], sizes = [2, 288], strides = [1, 1]} : vector<16x512xf32> to vector<2x288xf32>
    %191 = arith.addf %189, %190 : vector<2x288xf32>
    %192 = vector.shape_cast %191 : vector<2x288xf32> to vector<1x2x288xf32>
    %c0_206 = arith.constant 0 : index
    %c0_207 = arith.constant 0 : index
    %c0_208 = arith.constant 0 : index
    %193 = vector.load %arg12[%c0_206, %c0_207, %c0_208] : memref<1x2x288xf32, #tpu.memory_space<vmem>>, vector<1x2x288xf32>
    tpu.vector_store %arg12[%c0_206, %c0_207, %c0_208], %192 {strides = array<i32>} : memref<1x2x288xf32, #tpu.memory_space<vmem>>, vector<1x2x288xf32>,
    return
  }
  func.func @transform_0(%arg0: i32) -> (i32, i32, i32) {
    %c0_i32 = arith.constant 0 : i32
    %c0_i32_0 = arith.constant 0 : i32
    %c0_i32_1 = arith.constant 0 : i32
    return %arg0, %c0_i32, %c0_i32_0 : i32, i32, i32
  }
  func.func @transform_1(%arg0: i32) -> (i32, i32) {
    %c0_i32 = arith.constant 0 : i32
    %c0_i32_0 = arith.constant 0 : i32
    %c0_i32_1 = arith.constant 0 : i32
    return %c0_i32, %c0_i32_0 : i32, i32
  }
  func.func @transform_2(%arg0: i32) -> (i32, i32) {
    %c0_i32 = arith.constant 0 : i32
    %c0_i32_0 = arith.constant 0 : i32
    %c0_i32_1 = arith.constant 0 : i32
    return %c0_i32, %c0_i32_0 : i32, i32
  }
  func.func @transform_3(%arg0: i32) -> (i32, i32) {
    %c0_i32 = arith.constant 0 : i32
    %c0_i32_0 = arith.constant 0 : i32
    %c0_i32_1 = arith.constant 0 : i32
    return %c0_i32, %c0_i32_0 : i32, i32
  }
  func.func @transform_4(%arg0: i32) -> (i32, i32) {
    %c0_i32 = arith.constant 0 : i32
    %c0_i32_0 = arith.constant 0 : i32
    %c0_i32_1 = arith.constant 0 : i32
    return %c0_i32, %c0_i32_0 : i32, i32
  }
  func.func @transform_5(%arg0: i32) -> (i32, i32) {
    %c0_i32 = arith.constant 0 : i32
    %c0_i32_0 = arith.constant 0 : i32
    %c0_i32_1 = arith.constant 0 : i32
    return %c0_i32, %c0_i32_0 : i32, i32
  }
  func.func @transform_6(%arg0: i32) -> (i32, i32) {
    %c0_i32 = arith.constant 0 : i32
    %c0_i32_0 = arith.constant 0 : i32
    %c0_i32_1 = arith.constant 0 : i32
    return %c0_i32, %c0_i32_0 : i32, i32
  }
  func.func @transform_7(%arg0: i32) -> (i32, i32) {
    %c0_i32 = arith.constant 0 : i32
    %c0_i32_0 = arith.constant 0 : i32
    %c0_i32_1 = arith.constant 0 : i32
    return %c0_i32, %c0_i32_0 : i32, i32
  }
  func.func @transform_8(%arg0: i32) -> (i32, i32) {
    %c0_i32 = arith.constant 0 : i32
    %c0_i32_0 = arith.constant 0 : i32
    %c0_i32_1 = arith.constant 0 : i32
    return %c0_i32, %c0_i32_0 : i32, i32
  }
  func.func @transform_9(%arg0: i32) -> (i32, i32) {
    %c0_i32 = arith.constant 0 : i32
    %c0_i32_0 = arith.constant 0 : i32
    %c0_i32_1 = arith.constant 0 : i32
    return %c0_i32, %c0_i32_0 : i32, i32
  }
  func.func @transform_10(%arg0: i32) -> (i32, i32) {
    %c0_i32 = arith.constant 0 : i32
    %c0_i32_0 = arith.constant 0 : i32
    %c0_i32_1 = arith.constant 0 : i32
    return %c0_i32, %c0_i32_0 : i32, i32
  }
  func.func @transform_11(%arg0: i32) -> (i32, i32, i32) {
    %c0_i32 = arith.constant 0 : i32
    %c0_i32_0 = arith.constant 0 : i32
    %c0_i32_1 = arith.constant 0 : i32
    return %arg0, %c0_i32, %c0_i32_0 : i32, i32, i32
  }
}

</mosaic_0001>

<llo_original>
// kernel: tpu_custom_call.1
$region0: #{tpu_custom_call.1}
  #allocation0 [shape = 'u32[]', space=smem, size = 0x4, offset = 0x4, fixed_abs, tag = 'smem constant byte address 0x4 - core index']
  #allocation1 [shape = 'u32[144,128]{1,0:T(1,128)}', space=vmem, size = 0x12000, scoped, tag = 'internal scratch']
  #allocation2 [shape = 'bf16[32,512]{1,0:T(8,128)(2,1)}', space=vmem, size = 0x8000, scoped, tag = 'scratch operand']
  #allocation3 [shape = 'bf16[288,288]{1,0:T(8,128)(2,1)}', space=vmem, size = 0x36000, scoped, tag = 'scratch operand']
  %s0 = inlined_call_operand.vmem [shape: f32[2,16,512], index: 0, kind: input, shape index: {}]
  %s1 = inlined_call_operand.hbm [shape: bf16[32,144], index: 1, kind: input, shape index: {}]
  %s2 = inlined_call_operand.vmem [shape: f32[32,1], index: 2, kind: input, shape index: {}]
  %s3 = inlined_call_operand.hbm [shape: bf16[32,288], index: 3, kind: input, shape index: {}]
  %s4 = inlined_call_operand.vmem [shape: f32[32,1], index: 4, kind: input, shape index: {}]
  %s5 = inlined_call_operand.hbm [shape: bf16[32,288], index: 5, kind: input, shape index: {}]
  %s6 = inlined_call_operand.vmem [shape: f32[32,1], index: 6, kind: input, shape index: {}]
  %s7 = inlined_call_operand.hbm [shape: bf16[32,288], index: 7, kind: input, shape index: {}]
  %s8 = inlined_call_operand.vmem [shape: f32[32,1], index: 8, kind: input, shape index: {}]
  %s9 = inlined_call_operand.vmem [shape: bf16[2,288], index: 9, kind: input, shape index: {}]
  %s10 = inlined_call_operand.vmem [shape: f32[2,1], index: 10, kind: input, shape index: {}]
  %s11 = inlined_call_operand.hbm [shape: f32[2,2,288], index: 11, kind: output, shape index: {}]
  %s12 = sld [smem:[#allocation0]]
  $region93: #{tpu_custom_call.1} parent=0
    _
  %s14 = ssub.s32 1, %s12
  %s15 = scalar_select 0, %s14, %s12
  $region1: #{tpu_custom_call.1} parent=0
    #allocation4 [shape = 'u8[16384]{0}', space=vmem, size = 0x4000, scoped, tag = 'input window, operand 1, single buffered']
    #allocation5 [shape = 's32[2]{0}', space=sflag, size = 0x8, scoped, tag = 'scoped memory for tpu_custom_call.1']
    #allocation6 [shape = 's32[2]{0}', space=sflag, size = 0x8, scoped, tag = 'scoped memory for tpu_custom_call.1']
    #allocation7 [shape = 'u8[24576]{0}', space=vmem, size = 0x6000, scoped, tag = 'input window, operand 3, single buffered']
    #allocation8 [shape = 's32[1]{0}', space=sflag, size = 0x4, scoped, tag = 'scoped memory for tpu_custom_call.1']
    #allocation9 [shape = 'u8[24576]{0}', space=vmem, size = 0x6000, scoped, tag = 'input window, operand 5, single buffered']
    #allocation10 [shape = 'u8[24576]{0}', space=vmem, size = 0x6000, scoped, tag = 'input window, operand 7, single buffered']
    #allocation11 [shape = 's32[1]{0}', space=sflag, size = 0x4, scoped, tag = 'scoped memory for tpu_custom_call.1']
    #allocation12 [shape = 'u8[6144]{0}', space=vmem, size = 0x1800, scoped, tag = 'output window, operand 0']
    %16 = vsyncpa [#allocation5], 0
    %17 = vsyncpa [#allocation8], 0
    %18 = vsyncpa [#allocation11], 0
    %19 = vsyncpa [#allocation6], 0
    %s20 = scalar_lea.sflag [#allocation6], 1
    %21 = vsyncpa %s20, 0
    loop: start=0, step=1, limit=4
    $region2: #{tpu_custom_call.1} parent=1 // loop_pre_header
      _
    $region3: #{tpu_custom_call.1} parent=1 // loop_header
      %s23 = sphi 0, %s27
      %p24 = scmp.ge.s32.totalorder %s23, 4
      %s33 = sphi 0, %s35
      %s36 = sphi 0, %s33
      %s37 = sphi 0, %s36
      %s53 = sphi 0, %s37
      %s57 = sphi 0, %s57
      %s59 = sphi 0, %s57
      %s60 = sphi 0, %s59
      %s74 = sphi 0, %s60
      %s78 = sphi 0, %s78
      %s80 = sphi 0, %s78
      %s81 = sphi 0, %s80
      %s95 = sphi 0, %s81
      %s99 = sphi 0, %s99
      %s101 = sphi 0, %s99
      %s102 = sphi 0, %s101
      %s116 = sphi 0, %s102
      %s120 = sphi 0, %s120
      %s122 = sphi 0, %s120
      %s123 = sphi 0, %s122
      %s137 = sphi 0, %s123
      %s141 = sphi 0, %s141
      %s143 = sphi 0, %s141
      %s144 = sphi 0, %s143
      %s158 = sphi 0, %s144
      %s162 = sphi 0, %s162
      %s164 = sphi 0, %s162
      %s165 = sphi 0, %s164
      %s179 = sphi 0, %s165
      %s183 = sphi 0, %s183
      %s185 = sphi 0, %s183
      %s186 = sphi 0, %s185
      %s200 = sphi 0, %s186
      %s204 = sphi 0, %s204
      %s206 = sphi 0, %s204
      %s207 = sphi 0, %s206
      %s221 = sphi 0, %s207
      %s225 = sphi 0, %s225
      %s227 = sphi 0, %s225
      %s228 = sphi 0, %s227
      %s242 = sphi 0, %s228
      %s246 = sphi 0, %s246
      %s248 = sphi 0, %s246
      %s249 = sphi 0, %s248
      %s263 = sphi 0, %s249
      %s269 = sphi 0, %s271
      %s272 = sphi 0, %s269
      %s273 = sphi 0, %s272
      %s289 = sphi 0, %s273
    $region4: #{tpu_custom_call.1} parent=1 // loop_header_branch
      %26 = sbr.rel (%p24) target = $region8
    $region5: #{tpu_custom_call.1} parent=1 // loop_body
      %s28 = ssub.s32 %s23, 1
      %s29 = ssub.s32 %s23, 2
      %s30 = sadd.s32 %s23, 1
      %s31 = ssub.s32 %s23, %s30
      %p32 = scmp.eq.s32.totalorder %s31, 0
      %s34 = sadd.s32 %s33, 1
      %s35 = scalar_select %p32, %s33, %s34
      %p38 = pneg %p32
      %p39 = scmp.eq.s32.totalorder %s23, 1
      %p40 = por %p38, %p39
      %p41 = scmp.ne.s32.totalorder %s33, %s36
      %p42 = scmp.eq.s32.totalorder %s23, 0
      %p43 = por %p41, %p42
      %p44 = scmp.ne.s32.totalorder %s33, %s36
      %p45 = scmp.eq.s32.totalorder %s28, 1
      %p46 = por %p44, %p45
      %p47 = scmp.ne.s32.totalorder %s36, %s37
      %p48 = scmp.eq.s32.totalorder %s28, 0
      %p49 = por %p47, %p48
      %p50 = scmp.ne.s32.totalorder %s36, %s37
      %p51 = scmp.eq.s32.totalorder %s29, 1
      %p52 = por %p50, %p51
      %p54 = scmp.ne.s32.totalorder %s37, %s53
      %p55 = scmp.eq.s32.totalorder %s29, 0
      %p56 = por %p54, %p55
      %s58 = sadd.s32 %s57, 1
      %p61 = scmp.eq.s32.totalorder %s23, 1
      %p62 = scmp.ne.s32.totalorder %s57, %s59
      %p63 = scmp.eq.s32.totalorder %s23, 0
      %p64 = por %p62, %p63
      %p65 = scmp.ne.s32.totalorder %s57, %s59
      %p66 = scmp.eq.s32.totalorder %s28, 1
      %p67 = por %p65, %p66
      %p68 = scmp.ne.s32.totalorder %s59, %s60
      %p69 = scmp.eq.s32.totalorder %s28, 0
      %p70 = por %p68, %p69
      %p71 = scmp.ne.s32.totalorder %s59, %s60
      %p72 = scmp.eq.s32.totalorder %s29, 1
      %p73 = por %p71, %p72
      %p75 = scmp.ne.s32.totalorder %s60, %s74
      %p76 = scmp.eq.s32.totalorder %s29, 0
      %p77 = por %p75, %p76
      %s79 = sadd.s32 %s78, 1
      %p82 = scmp.eq.s32.totalorder %s23, 1
      %p83 = scmp.ne.s32.totalorder %s78, %s80
      %p84 = scmp.eq.s32.totalorder %s23, 0
      %p85 = por %p83, %p84
      %p86 = scmp.ne.s32.totalorder %s78, %s80
      %p87 = scmp.eq.s32.totalorder %s28, 1
      %p88 = por %p86, %p87
      %p89 = scmp.ne.s32.totalorder %s80, %s81
      %p90 = scmp.eq.s32.totalorder %s28, 0
      %p91 = por %p89, %p90
      %p92 = scmp.ne.s32.totalorder %s80, %s81
      %p93 = scmp.eq.s32.totalorder %s29, 1
      %p94 = por %p92, %p93
      %p96 = scmp.ne.s32.totalorder %s81, %s95
      %p97 = scmp.eq.s32.totalorder %s29, 0
      %p98 = por %p96, %p97
      %s100 = sadd.s32 %s99, 1
      %p103 = scmp.eq.s32.totalorder %s23, 1
      %p104 = scmp.ne.s32.totalorder %s99, %s101
      %p105 = scmp.eq.s32.totalorder %s23, 0
      %p106 = por %p104, %p105
      %p107 = scmp.ne.s32.totalorder %s99, %s101
      %p108 = scmp.eq.s32.totalorder %s28, 1
      %p109 = por %p107, %p108
      %p110 = scmp.ne.s32.totalorder %s101, %s102
      %p111 = scmp.eq.s32.totalorder %s28, 0
      %p112 = por %p110, %p111
      %p113 = scmp.ne.s32.totalorder %s101, %s102
      %p114 = scmp.eq.s32.totalorder %s29, 1
      %p115 = por %p113, %p114
      %p117 = scmp.ne.s32.totalorder %s102, %s116
      %p118 = scmp.eq.s32.totalorder %s29, 0
      %p119 = por %p117, %p118
      %s121 = sadd.s32 %s120, 1
      %p124 = scmp.eq.s32.totalorder %s23, 1
      %p125 = scmp.ne.s32.totalorder %s120, %s122
      %p126 = scmp.eq.s32.totalorder %s23, 0
      %p127 = por %p125, %p126
      %p128 = scmp.ne.s32.totalorder %s120, %s122
      %p129 = scmp.eq.s32.totalorder %s28, 1
      %p130 = por %p128, %p129
      %p131 = scmp.ne.s32.totalorder %s122, %s123
      %p132 = scmp.eq.s32.totalorder %s28, 0
      %p133 = por %p131, %p132
      %p134 = scmp.ne.s32.totalorder %s122, %s123
      %p135 = scmp.eq.s32.totalorder %s29, 1
      %p136 = por %p134, %p135
      %p138 = scmp.ne.s32.totalorder %s123, %s137
      %p139 = scmp.eq.s32.totalorder %s29, 0
      %p140 = por %p138, %p139
      %s142 = sadd.s32 %s141, 1
      %p145 = scmp.eq.s32.totalorder %s23, 1
      %p146 = scmp.ne.s32.totalorder %s141, %s143
      %p147 = scmp.eq.s32.totalorder %s23, 0
      %p148 = por %p146, %p147
      %p149 = scmp.ne.s32.totalorder %s141, %s143
      %p150 = scmp.eq.s32.totalorder %s28, 1
      %p151 = por %p149, %p150
      %p152 = scmp.ne.s32.totalorder %s143, %s144
      %p153 = scmp.eq.s32.totalorder %s28, 0
      %p154 = por %p152, %p153
      %p155 = scmp.ne.s32.totalorder %s143, %s144
      %p156 = scmp.eq.s32.totalorder %s29, 1
      %p157 = por %p155, %p156
      %p159 = scmp.ne.s32.totalorder %s144, %s158
      %p160 = scmp.eq.s32.totalorder %s29, 0
      %p161 = por %p159, %p160
      %s163 = sadd.s32 %s162, 1
      %p166 = scmp.eq.s32.totalorder %s23, 1
      %p167 = scmp.ne.s32.totalorder %s162, %s164
      %p168 = scmp.eq.s32.totalorder %s23, 0
      %p169 = por %p167, %p168
      %p170 = scmp.ne.s32.totalorder %s162, %s164
      %p171 = scmp.eq.s32.totalorder %s28, 1
      %p172 = por %p170, %p171
      %p173 = scmp.ne.s32.totalorder %s164, %s165
      %p174 = scmp.eq.s32.totalorder %s28, 0
      %p175 = por %p173, %p174
      %p176 = scmp.ne.s32.totalorder %s164, %s165
      %p177 = scmp.eq.s32.totalorder %s29, 1
      %p178 = por %p176, %p177
      %p180 = scmp.ne.s32.totalorder %s165, %s179
      %p181 = scmp.eq.s32.totalorder %s29, 0
      %p182 = por %p180, %p181
      %s184 = sadd.s32 %s183, 1
      %p187 = scmp.eq.s32.totalorder %s23, 1
      %p188 = scmp.ne.s32.totalorder %s183, %s185
      %p189 = scmp.eq.s32.totalorder %s23, 0
      %p190 = por %p188, %p189
      %p191 = scmp.ne.s32.totalorder %s183, %s185
      %p192 = scmp.eq.s32.totalorder %s28, 1
      %p193 = por %p191, %p192
      %p194 = scmp.ne.s32.totalorder %s185, %s186
      %p195 = scmp.eq.s32.totalorder %s28, 0
      %p196 = por %p194, %p195
      %p197 = scmp.ne.s32.totalorder %s185, %s186
      %p198 = scmp.eq.s32.totalorder %s29, 1
      %p199 = por %p197, %p198
      %p201 = scmp.ne.s32.totalorder %s186, %s200
      %p202 = scmp.eq.s32.totalorder %s29, 0
      %p203 = por %p201, %p202
      %s205 = sadd.s32 %s204, 1
      %p208 = scmp.eq.s32.totalorder %s23, 1
      %p209 = scmp.ne.s32.totalorder %s204, %s206
      %p210 = scmp.eq.s32.totalorder %s23, 0
      %p211 = por %p209, %p210
      %p212 = scmp.ne.s32.totalorder %s204, %s206
      %p213 = scmp.eq.s32.totalorder %s28, 1
      %p214 = por %p212, %p213
      %p215 = scmp.ne.s32.totalorder %s206, %s207
      %p216 = scmp.eq.s32.totalorder %s28, 0
      %p217 = por %p215, %p216
      %p218 = scmp.ne.s32.totalorder %s206, %s207
      %p219 = scmp.eq.s32.totalorder %s29, 1
      %p220 = por %p218, %p219
      %p222 = scmp.ne.s32.totalorder %s207, %s221
      %p223 = scmp.eq.s32.totalorder %s29, 0
      %p224 = por %p222, %p223
      %s226 = sadd.s32 %s225, 1
      %p229 = scmp.eq.s32.totalorder %s23, 1
      %p230 = scmp.ne.s32.totalorder %s225, %s227
      %p231 = scmp.eq.s32.totalorder %s23, 0
      %p232 = por %p230, %p231
      %p233 = scmp.ne.s32.totalorder %s225, %s227
      %p234 = scmp.eq.s32.totalorder %s28, 1
      %p235 = por %p233, %p234
      %p236 = scmp.ne.s32.totalorder %s227, %s228
      %p237 = scmp.eq.s32.totalorder %s28, 0
      %p238 = por %p236, %p237
      %p239 = scmp.ne.s32.totalorder %s227, %s228
      %p240 = scmp.eq.s32.totalorder %s29, 1
      %p241 = por %p239, %p240
      %p243 = scmp.ne.s32.totalorder %s228, %s242
      %p244 = scmp.eq.s32.totalorder %s29, 0
      %p245 = por %p243, %p244
      %s247 = sadd.s32 %s246, 1
      %p250 = scmp.eq.s32.totalorder %s23, 1
      %p251 = scmp.ne.s32.totalorder %s246, %s248
      %p252 = scmp.eq.s32.totalorder %s23, 0
      %p253 = por %p251, %p252
      %p254 = scmp.ne.s32.totalorder %s246, %s248
      %p255 = scmp.eq.s32.totalorder %s28, 1
      %p256 = por %p254, %p255
      %p257 = scmp.ne.s32.totalorder %s248, %s249
      %p258 = scmp.eq.s32.totalorder %s28, 0
      %p259 = por %p257, %p258
      %p260 = scmp.ne.s32.totalorder %s248, %s249
      %p261 = scmp.eq.s32.totalorder %s29, 1
      %p262 = por %p260, %p261
      %p264 = scmp.ne.s32.totalorder %s249, %s263
      %p265 = scmp.eq.s32.totalorder %s29, 0
      %p266 = por %p264, %p265
      %s267 = ssub.s32 %s23, %s30
      %p268 = scmp.eq.s32.totalorder %s267, 0
      %s270 = sadd.s32 %s269, 1
      %s271 = scalar_select %p268, %s269, %s270
      %p274 = pneg %p268
      %p275 = scmp.eq.s32.totalorder %s23, 1
      %p276 = por %p274, %p275
      %p277 = scmp.ne.s32.totalorder %s269, %s272
      %p278 = scmp.eq.s32.totalorder %s23, 0
      %p279 = por %p277, %p278
      %p280 = scmp.ne.s32.totalorder %s269, %s272
      %p281 = scmp.eq.s32.totalorder %s28, 1
      %p282 = por %p280, %p281
      %p283 = scmp.ne.s32.totalorder %s272, %s273
      %p284 = scmp.eq.s32.totalorder %s28, 0
      %p285 = por %p283, %p284
      %p286 = scmp.ne.s32.totalorder %s272, %s273
      %p287 = scmp.eq.s32.totalorder %s29, 1
      %p288 = por %p286, %p287
      %p290 = scmp.ne.s32.totalorder %s273, %s289
      %p291 = scmp.eq.s32.totalorder %s29, 0
      %p292 = por %p290, %p291
      %p293 = scmp.le.s32.totalorder 1, %s23
      %p294 = scmp.lt.s32.totalorder %s23, 3
      %p295 = pnand %p293, %p294
      %p296 = pneg %p295
      // Predicated region
      $region9: #{tpu_custom_call.1} parent=5 // pred_check
        _
      $region10: #{tpu_custom_call.1} parent=5 // pred_check_branch
        %298 = sbr.rel (%p295) target = $region12
      $region11: #{tpu_custom_call.1} parent=5 // pred_region
        %s299 = ssub.s32 %s23, 1
        // Predicated region
        $region13: #{tpu_custom_call.1} parent=11 // pred_check
          %p300 = pneg %p70
        $region14: #{tpu_custom_call.1} parent=11 // pred_check_branch
          %302 = sbr.rel (%p300) target = $region16
        $region15: #{tpu_custom_call.1} parent=11 // pred_region
          %s304 = ssub.s32 512, 512
          %305 = vsyncadd [#allocation5], %s304
          %s306 = sshll.u32 [#allocation4], 4
          %s307 = int_to_ptr.vmem [resolvable:$true] %s306
          %312 = dma.hbm_to_vmem [thread:$0]  %s1, 512, %s307, [#allocation5], 128, 128, 8
        $region16: #{tpu_custom_call.1} parent=11 // pred_fallthru
          _
        // Predicated region
        $region17: #{tpu_custom_call.1} parent=11 // pred_check
          %p313 = pneg %p91
        $region18: #{tpu_custom_call.1} parent=11 // pred_check_branch
          %315 = sbr.rel (%p313) target = $region20
        $region19: #{tpu_custom_call.1} parent=11 // pred_region
          _
        $region20: #{tpu_custom_call.1} parent=11 // pred_fallthru
          _
        // Predicated region
        $region21: #{tpu_custom_call.1} parent=11 // pred_check
          %p316 = pneg %p112
        $region22: #{tpu_custom_call.1} parent=11 // pred_check_branch
          %318 = sbr.rel (%p316) target = $region24
        $region23: #{tpu_custom_call.1} parent=11 // pred_region
          %s320 = ssub.s32 768, 768
          %321 = vsyncadd [#allocation8], %s320
          %s322 = sshll.u32 [#allocation7], 4
          %s323 = int_to_ptr.vmem [resolvable:$true] %s322
          %328 = dma.hbm_to_vmem [thread:$0]  %s3, 768, %s323, [#allocation8], 192, 192, 12
        $region24: #{tpu_custom_call.1} parent=11 // pred_fallthru
          _
        // Predicated region
        $region25: #{tpu_custom_call.1} parent=11 // pred_check
          %p329 = pneg %p133
        $region26: #{tpu_custom_call.1} parent=11 // pred_check_branch
          %331 = sbr.rel (%p329) target = $region28
        $region27: #{tpu_custom_call.1} parent=11 // pred_region
          _
        $region28: #{tpu_custom_call.1} parent=11 // pred_fallthru
          _
        // Predicated region
        $region29: #{tpu_custom_call.1} parent=11 // pred_check
          %p332 = pneg %p154
        $region30: #{tpu_custom_call.1} parent=11 // pred_check_branch
          %334 = sbr.rel (%p332) target = $region32
        $region31: #{tpu_custom_call.1} parent=11 // pred_region
          %s336 = ssub.s32 768, 768
          %337 = vsyncadd [#allocation8], %s336
          %s338 = sshll.u32 [#allocation9], 4
          %s339 = int_to_ptr.vmem [resolvable:$true] %s338
          %344 = dma.hbm_to_vmem [thread:$0]  %s5, 768, %s339, [#allocation8], 192, 192, 12
        $region32: #{tpu_custom_call.1} parent=11 // pred_fallthru
          _
        // Predicated region
        $region33: #{tpu_custom_call.1} parent=11 // pred_check
          %p345 = pneg %p175
        $region34: #{tpu_custom_call.1} parent=11 // pred_check_branch
          %347 = sbr.rel (%p345) target = $region36
        $region35: #{tpu_custom_call.1} parent=11 // pred_region
          _
        $region36: #{tpu_custom_call.1} parent=11 // pred_fallthru
          _
        // Predicated region
        $region37: #{tpu_custom_call.1} parent=11 // pred_check
          %p348 = pneg %p196
        $region38: #{tpu_custom_call.1} parent=11 // pred_check_branch
          %350 = sbr.rel (%p348) target = $region40
        $region39: #{tpu_custom_call.1} parent=11 // pred_region
          %s352 = ssub.s32 768, 768
          %353 = vsyncadd [#allocation11], %s352
          %s354 = sshll.u32 [#allocation10], 4
          %s355 = int_to_ptr.vmem [resolvable:$true] %s354
          %360 = dma.hbm_to_vmem [thread:$0]  %s7, 768, %s355, [#allocation11], 192, 192, 12
        $region40: #{tpu_custom_call.1} parent=11 // pred_fallthru
          _
        // Predicated region
        $region41: #{tpu_custom_call.1} parent=11 // pred_check
          %p361 = pneg %p217
        $region42: #{tpu_custom_call.1} parent=11 // pred_check_branch
          %363 = sbr.rel (%p361) target = $region44
        $region43: #{tpu_custom_call.1} parent=11 // pred_region
          _
        $region44: #{tpu_custom_call.1} parent=11 // pred_fallthru
          _
        // Predicated region
        $region45: #{tpu_custom_call.1} parent=11 // pred_check
          %p364 = pneg %p238
        $region46: #{tpu_custom_call.1} parent=11 // pred_check_branch
          %366 = sbr.rel (%p364) target = $region48
        $region47: #{tpu_custom_call.1} parent=11 // pred_region
          _
        $region48: #{tpu_custom_call.1} parent=11 // pred_fallthru
          _
        // Predicated region
        $region49: #{tpu_custom_call.1} parent=11 // pred_check
          %p367 = pneg %p259
        $region50: #{tpu_custom_call.1} parent=11 // pred_check_branch
          %369 = sbr.rel (%p367) target = $region52
        $region51: #{tpu_custom_call.1} parent=11 // pred_region
          _
        $region52: #{tpu_custom_call.1} parent=11 // pred_fallthru
          _
      $region12: #{tpu_custom_call.1} parent=5 // pred_fallthru
        _
      %p370 = scmp.lt.s32.totalorder %s23, 2
      // Predicated region
      $region53: #{tpu_custom_call.1} parent=5 // pred_check
        %p371 = pneg %p370
      $region54: #{tpu_custom_call.1} parent=5 // pred_check_branch
        %373 = sbr.rel (%p371) target = $region56
      $region55: #{tpu_custom_call.1} parent=5 // pred_region
        // Predicated region
        $region57: #{tpu_custom_call.1} parent=55 // pred_check
          %p374 = pneg %p43
        $region58: #{tpu_custom_call.1} parent=55 // pred_check_branch
          %376 = sbr.rel (%p374) target = $region60
        $region59: #{tpu_custom_call.1} parent=55 // pred_region
          %p377 = scmp.lt.s32.totalorder %s23, 1
          %s378 = scalar_select %p377, %s23, 1
          %s379 = smul.addr %s378, 8
          %s380 = smul.addr %s379, 8
          %s381 = scalar_lea.vmem %s0, %s380
        $region60: #{tpu_custom_call.1} parent=55 // pred_fallthru
          _
      $region56: #{tpu_custom_call.1} parent=5 // pred_fallthru
        _
      %p382 = scmp.le.s32.totalorder 1, %s23
      %p383 = scmp.lt.s32.totalorder %s23, 3
      %p384 = pnand %p382, %p383
      %p385 = pneg %p384
      // Predicated region
      $region61: #{tpu_custom_call.1} parent=5 // pred_check
        _
      $region62: #{tpu_custom_call.1} parent=5 // pred_check_branch
        %387 = sbr.rel (%p384) target = $region64
      $region63: #{tpu_custom_call.1} parent=5 // pred_region
        %s388 = ssub.s32 %s23, 1
        // Predicated region
        $region65: #{tpu_custom_call.1} parent=63 // pred_check
          %p389 = pneg %p70
        $region66: #{tpu_custom_call.1} parent=63 // pred_check_branch
          %391 = sbr.rel (%p389) target = $region68
        $region67: #{tpu_custom_call.1} parent=63 // pred_region
          %392 = dma.done [#allocation5], 512
        $region68: #{tpu_custom_call.1} parent=63 // pred_fallthru
          _
        // Predicated region
        $region69: #{tpu_custom_call.1} parent=63 // pred_check
          %p393 = pneg %p112
        $region70: #{tpu_custom_call.1} parent=63 // pred_check_branch
          %395 = sbr.rel (%p393) target = $region72
        $region71: #{tpu_custom_call.1} parent=63 // pred_region
          %396 = dma.done [#allocation8], 768
        $region72: #{tpu_custom_call.1} parent=63 // pred_fallthru
          _
        // Predicated region
        $region73: #{tpu_custom_call.1} parent=63 // pred_check
          %p397 = pneg %p154
        $region74: #{tpu_custom_call.1} parent=63 // pred_check_branch
          %399 = sbr.rel (%p397) target = $region76
        $region75: #{tpu_custom_call.1} parent=63 // pred_region
          %400 = dma.done [#allocation8], 768
        $region76: #{tpu_custom_call.1} parent=63 // pred_fallthru
          _
        // Predicated region
        $region77: #{tpu_custom_call.1} parent=63 // pred_check
          %p401 = pneg %p196
        $region78: #{tpu_custom_call.1} parent=63 // pred_check_branch
          %403 = sbr.rel (%p401) target = $region80
        $region79: #{tpu_custom_call.1} parent=63 // pred_region
          %404 = dma.done [#allocation11], 768
        $region80: #{tpu_custom_call.1} parent=63 // pred_fallthru
          _
        %p405 = scmp.lt.s32.totalorder %s28, 1
        %s406 = scalar_select %p405, %s28, 1
        %s407 = smul.addr %s406, 8
        %s408 = smul.addr %s407, 8
        %s409 = scalar_lea.vmem %s0, %s408
        %p410 = pneg %p49
        %p411 = pneg %p46
        %p412 = pneg %p70
        %p413 = pneg %p67
        %p414 = pneg %p91
        %p415 = pneg %p88
        %p416 = pneg %p112
        %p417 = pneg %p109
        %p418 = pneg %p133
        %p419 = pneg %p130
        %p420 = pneg %p154
        %p421 = pneg %p151
        %p422 = pneg %p175
        %p423 = pneg %p172
        %p424 = pneg %p196
        %p425 = pneg %p193
        %p426 = pneg %p217
        %p427 = pneg %p214
        %p428 = pneg %p238
        %p429 = pneg %p235
        %p430 = pneg %p259
        %p431 = pneg %p256
        %p432 = pneg %p285
        %p433 = pneg %p282
        %s434 = sand.u32 %s272, 1
        %s435 = scalar_lea.sflag [#allocation6], %s434
        %s436 = sand.u32 %s272, 1
        %s437 = smul.addr %s436, 6
        %s438 = scalar_lea.vmem [#allocation12], %s437
        %p439 = scmp.lt.s32.totalorder %s28, 1
        %s440 = scalar_select %p439, %s28, 1
        %s441 = smul.addr %s440, 8
        %s442 = smul.addr %s441, 8
        %s443 = scalar_lea.vmem %s0, %s442
        %445 = vst [vmem:[#allocation2] sm:$0xf] 0
        %446 = vst [vmem:[#allocation2 + $0x10] sm:$0xf] 0
        %447 = vst [vmem:[#allocation2 + $0x20] sm:$0xf] 0
        %448 = vst [vmem:[#allocation2 + $0x30] sm:$0xf] 0
        %vm449 = vcmask 1043712
        %450 = vst.msk [vmem:[#allocation2 + $0xc] sm:$0xf] %vm449, 0
        %451 = vst.msk [vmem:[#allocation2 + $0x1c] sm:$0xf] %vm449, 0
        %452 = vst.msk [vmem:[#allocation2 + $0x2c] sm:$0xf] %vm449, 0
        %453 = vst.msk [vmem:[#allocation2 + $0x3c] sm:$0xf] %vm449, 0
        %v454 = vlaneseq
        %v455 = vand.u32 %v454, 127
        %v456 = vadd.s32 %v455, 128
        %v457 = vadd.s32 %v455, 256
        %vm458 = vcmp.lt.s32.totalorder %v455, 0
        %v459 = vsub.s32 0, %v455
        %v460 = vsel %vm458, %v459, %v455
        %v461 = vmul.u32.u64.compose %v460, 3817748708
        %v462 = vextract.low.u32 %v461
        %v463 = vextract.high.u32 %v461
        %v464 = vshrl.u32 %v463, 4
        %v465 = vmul.u32 %v464, 18
        %v466 = vsub.s32 %v460, %v465
        %v467 = vsub.s32 0, %v466
        %v468 = vsel %vm458, %v467, %v466
        %vm469 = vcmp.lt.s32.totalorder %v456, 0
        %v470 = vsub.s32 0, %v456
        %v471 = vsel %vm469, %v470, %v456
        %v472 = vmul.u32.u64.compose %v471, 3817748708
        %v473 = vextract.low.u32 %v472
        %v474 = vextract.high.u32 %v472
        %v475 = vshrl.u32 %v474, 4
        %v476 = vmul.u32 %v475, 18
        %v477 = vsub.s32 %v471, %v476
        %v478 = vsub.s32 0, %v477
        %v479 = vsel %vm469, %v478, %v477
        %vm480 = vcmp.lt.s32.totalorder %v457, 0
        %v481 = vsub.s32 0, %v457
        %v482 = vsel %vm480, %v481, %v457
        %v483 = vmul.u32.u64.compose %v482, 3817748708
        %v484 = vextract.low.u32 %v483
        %v485 = vextract.high.u32 %v483
        %v486 = vshrl.u32 %v485, 4
        %v487 = vmul.u32 %v486, 18
        %v488 = vsub.s32 %v482, %v487
        %v489 = vsub.s32 0, %v488
        %v490 = vsel %vm480, %v489, %v488
        %vm491 = vcmp.ne.s32.totalorder %v468, 0
        %vm492 = vcmp.ne.s32.totalorder %v479, 0
        %vm493 = vcmp.ne.s32.totalorder %v490, 0
        %vm494 = vcmp.lt.s32.totalorder %v468, 0
        %vm495 = vcmp.lt.s32.totalorder %v479, 0
        %vm496 = vcmp.lt.s32.totalorder %v490, 0
        %vm497 = vmand %vm494, %vm491
        %vm498 = vmand %vm495, %vm492
        %vm499 = vmand %vm496, %vm493
        %v500 = vadd.s32 %v468, 18
        %v501 = vadd.s32 %v479, 18
        %v502 = vadd.s32 %v490, 18
        %v503 = vsel %vm497, %v500, %v468
        %v504 = vsel %vm498, %v501, %v479
        %v505 = vsel %vm499, %v502, %v490
        %vm506 = vcmp.lt.s32.totalorder %v503, 16
        %vm507 = vcmp.lt.s32.totalorder %v504, 16
        %vm508 = vcmp.lt.s32.totalorder %v505, 16
        %v509 = vld [vmem:[%s443] sm:$0xff]
        %v510 = vld [vmem:[%s443 + $0x8] sm:$0xff]
        %v511 = vld [vmem:[%s443 + $0x10] sm:$0xff]
        %v512 = vld [vmem:[%s443 + $0x18] sm:$0xff]
        %v513 = vld [vmem:[%s443 + $0x20] sm:$0xff]
        %v514 = vld [vmem:[%s443 + $0x28] sm:$0xff]
        %v515 = vld [vmem:[%s443 + $0x30] sm:$0xff]
        %v516 = vld [vmem:[%s443 + $0x38] sm:$0xff]
        %v517 = vpack.c.bf16 %v513, %v509
        %v518 = vpack.c.bf16 %v514, %v510
        %v519 = vpack.c.bf16 %v515, %v511
        %v520 = vpack.c.bf16 %v516, %v512
        %v525 = vunpack.c.l.b16 %v517
        %v526 = vunpack.c.l.b16 %v518
        %v527 = vunpack.c.l.b16 %v519
        %v528 = vunpack.c.l.b16 %v520
        %v529 = vunpack.c.h.b16 %v517
        %v530 = vunpack.c.h.b16 %v518
        %v531 = vunpack.c.h.b16 %v519
        %v532 = vunpack.c.h.b16 %v520
        %v533 = vpack.c.b16 %v526, %v525
        %v534 = vpack.c.b16 %v528, %v527
        %v535 = vpack.c.b16 %v530, %v529
        %v536 = vpack.c.b16 %v532, %v531
        %537 = vrot.lane.b32.xlu0 %v533, 19
        %v538 = vpop.permute.xlu0 %537
        %539 = vrot.lane.b32.xlu0 %v534, 19
        %v540 = vpop.permute.xlu0 %539
        %541 = vrot.lane.b32.xlu0 %v535, 19
        %v542 = vpop.permute.xlu0 %541
        %543 = vrot.lane.b32.xlu0 %v536, 19
        %v544 = vpop.permute.xlu0 %543
        %v545 = vrot.slane %v538, 4
        %v546 = vrot.slane %v540, 4
        %v547 = vrot.slane %v542, 4
        %v548 = vrot.slane %v544, 4
        %vm549 = vcmask 1043456
        %v550 = vsel %vm549, %v545, %v546
        %vm551 = vcmask 154624
        %v552 = vsel %vm551, %v538, %v550
        %v553 = vsel %vm551, %v540, %v546
        %v554 = vsel %vm549, %v547, %v548
        %v555 = vsel %vm551, %v542, %v554
        %v556 = vsel %vm551, %v544, %v548
        %561 = vst [vmem:[#allocation3] sm:$0xff] %v552
        %vm562 = vcmask 257024
        %563 = vst.msk [vmem:[#allocation3 + $0x8] sm:$0xf] %vm562, %v553
        %564 = vst [vmem:[#allocation3 + $0xc] sm:$0xff] %v555
        %565 = vst.msk [vmem:[#allocation3 + $0x14] sm:$0xf] %vm562, %v556
        %566 = vrot.lane.b32.xlu0 %v533, 18
        %v567 = vpop.permute.xlu0 %566
        %568 = vrot.lane.b32.xlu0 %v534, 18
        %v569 = vpop.permute.xlu0 %568
        %570 = vrot.lane.b32.xlu0 %v535, 18
        %v571 = vpop.permute.xlu0 %570
        %572 = vrot.lane.b32.xlu0 %v536, 18
        %v573 = vpop.permute.xlu0 %572
        %v574 = vrot.slane %v567, 4
        %v575 = vrot.slane %v569, 4
        %v576 = vrot.slane %v571, 4
        %v577 = vrot.slane %v573, 4
        %v578 = vsel %vm549, %v574, %v575
        %vm579 = vcmask 146432
        %v580 = vsel %vm579, %v567, %v578
        %v581 = vsel %vm579, %v569, %v575
        %v582 = vsel %vm549, %v576, %v577
        %v583 = vsel %vm579, %v571, %v582
        %v584 = vsel %vm579, %v573, %v577
        %589 = vst [vmem:[#allocation3 + $0x18] sm:$0xff] %v580
        %590 = vst.msk [vmem:[#allocation3 + $0x20] sm:$0xf] %vm562, %v581
        %591 = vst [vmem:[#allocation3 + $0x24] sm:$0xff] %v583
        %592 = vst.msk [vmem:[#allocation3 + $0x2c] sm:$0xf] %vm562, %v584
        %593 = vrot.lane.b32.xlu0 %v533, 17
        %v594 = vpop.permute.xlu0 %593
        %595 = vrot.lane.b32.xlu0 %v534, 17
        %v596 = vpop.permute.xlu0 %595
        %597 = vrot.lane.b32.xlu0 %v535, 17
        %v598 = vpop.permute.xlu0 %597
        %599 = vrot.lane.b32.xlu0 %v536, 17
        %v600 = vpop.permute.xlu0 %599
        %v601 = vrot.slane %v594, 4
        %v602 = vrot.slane %v596, 4
        %v603 = vrot.slane %v598, 4
        %v604 = vrot.slane %v600, 4
        %v605 = vsel %vm549, %v601, %v602
        %vm606 = vcmask 138240
        %v607 = vsel %vm606, %v594, %v605
        %v608 = vsel %vm606, %v596, %v602
        %v609 = vsel %vm549, %v603, %v604
        %v610 = vsel %vm606, %v598, %v609
        %v611 = vsel %vm606, %v600, %v604
        %616 = vst [vmem:[#allocation3 + $0x30] sm:$0xff] %v607
        %617 = vst.msk [vmem:[#allocation3 + $0x38] sm:$0xf] %vm562, %v608
        %618 = vst [vmem:[#allocation3 + $0x3c] sm:$0xff] %v610
        %619 = vst.msk [vmem:[#allocation3 + $0x44] sm:$0xf] %vm562, %v611
        %620 = vrot.lane.b32.xlu0 %v533, 1
        %v621 = vpop.permute.xlu0 %620
        %622 = vrot.lane.b32.xlu0 %v534, 1
        %v623 = vpop.permute.xlu0 %622
        %624 = vrot.lane.b32.xlu0 %v535, 1
        %v625 = vpop.permute.xlu0 %624
        %626 = vrot.lane.b32.xlu0 %v536, 1
        %v627 = vpop.permute.xlu0 %626
        %v628 = vrot.slane %v621, 4
        %v629 = vrot.slane %v623, 4
        %v630 = vrot.slane %v625, 4
        %v631 = vrot.slane %v627, 4
        %v632 = vsel %vm549, %v628, %v629
        %vm633 = vcmask 7168
        %v634 = vsel %vm633, %v621, %v632
        %v635 = vsel %vm633, %v623, %v629
        %v636 = vsel %vm549, %v630, %v631
        %v637 = vsel %vm633, %v625, %v636
        %v638 = vsel %vm633, %v627, %v631
        %643 = vst [vmem:[#allocation3 + $0x48] sm:$0xff] %v634
        %644 = vst.msk [vmem:[#allocation3 + $0x50] sm:$0xf] %vm562, %v635
        %645 = vst [vmem:[#allocation3 + $0x54] sm:$0xff] %v637
        %646 = vst.msk [vmem:[#allocation3 + $0x5c] sm:$0xf] %vm562, %v638
        %v647 = vpack.c.b16 %v527, %v526
        %v648 = vpack.c.b16 %v528, %v528
        %v649 = vpack.c.b16 %v531, %v530
        %v650 = vpack.c.b16 %v532, %v532
        %655 = vst [vmem:[#allocation3 + $0x60] sm:$0xff] %v647
        %656 = vst.msk [vmem:[#allocation3 + $0x68] sm:$0xf] %vm562, %v648
        %657 = vst [vmem:[#allocation3 + $0x6c] sm:$0xff] %v649
        %658 = vst.msk [vmem:[#allocation3 + $0x74] sm:$0xf] %vm562, %v650
        %659 = vrot.lane.b32.xlu0 %v647, 127
        %v660 = vpop.permute.xlu0 %659
        %661 = vrot.lane.b32.xlu0 %v648, 127
        %v662 = vpop.permute.xlu0 %661
        %663 = vrot.lane.b32.xlu0 %v649, 127
        %v664 = vpop.permute.xlu0 %663
        %665 = vrot.lane.b32.xlu0 %v650, 127
        %v666 = vpop.permute.xlu0 %665
        %v667 = vrot.slane %v660, 4
        %v668 = vrot.slane %v662, 4
        %v669 = vrot.slane %v664, 4
        %v670 = vrot.slane %v666, 4
        %v671 = vsel %vm549, %v667, %v668
        %vm672 = vcmask 1039360
        %v673 = vsel %vm672, %v660, %v671
        %v674 = vsel %vm549, %v669, %v670
        %v675 = vsel %vm672, %v664, %v674
        %680 = vst [vmem:[#allocation3 + $0x78] sm:$0xff] %v673
        %681 = vst.msk [vmem:[#allocation3 + $0x80] sm:$0xf] %vm562, %v662
        %682 = vst [vmem:[#allocation3 + $0x84] sm:$0xff] %v675
        %683 = vst.msk [vmem:[#allocation3 + $0x8c] sm:$0xf] %vm562, %v666
        %684 = vrot.lane.b32.xlu0 %v647, 111
        %v685 = vpop.permute.xlu0 %684
        %686 = vrot.lane.b32.xlu0 %v648, 111
        %v687 = vpop.permute.xlu0 %686
        %688 = vrot.lane.b32.xlu0 %v649, 111
        %v689 = vpop.permute.xlu0 %688
        %690 = vrot.lane.b32.xlu0 %v650, 111
        %v691 = vpop.permute.xlu0 %690
        %v692 = vrot.slane %v685, 4
        %v693 = vrot.slane %v687, 4
        %v694 = vrot.slane %v689, 4
        %v695 = vrot.slane %v691, 4
        %v696 = vsel %vm549, %v692, %v693
        %vm697 = vcmask 908288
        %v698 = vsel %vm697, %v685, %v696
        %v699 = vsel %vm549, %v694, %v695
        %v700 = vsel %vm697, %v689, %v699
        %705 = vst [vmem:[#allocation3 + $0x90] sm:$0xff] %v698
        %706 = vst.msk [vmem:[#allocation3 + $0x98] sm:$0xf] %vm562, %v687
        %707 = vst [vmem:[#allocation3 + $0x9c] sm:$0xff] %v700
        %708 = vst.msk [vmem:[#allocation3 + $0xa4] sm:$0xf] %vm562, %v691
        %709 = vrot.lane.b32.xlu0 %v647, 110
        %v710 = vpop.permute.xlu0 %709
        %711 = vrot.lane.b32.xlu0 %v648, 110
        %v712 = vpop.permute.xlu0 %711
        %713 = vrot.lane.b32.xlu0 %v649, 110
        %v714 = vpop.permute.xlu0 %713
        %715 = vrot.lane.b32.xlu0 %v650, 110
        %v716 = vpop.permute.xlu0 %715
        %v717 = vrot.slane %v710, 4
        %v718 = vrot.slane %v712, 4
        %v719 = vrot.slane %v714, 4
        %v720 = vrot.slane %v716, 4
        %v721 = vsel %vm549, %v717, %v718
        %vm722 = vcmask 900096
        %v723 = vsel %vm722, %v710, %v721
        %v724 = vsel %vm549, %v719, %v720
        %v725 = vsel %vm722, %v714, %v724
        %730 = vst [vmem:[#allocation3 + $0xa8] sm:$0xff] %v723
        %731 = vst.msk [vmem:[#allocation3 + $0xb0] sm:$0xf] %vm562, %v712
        %732 = vst [vmem:[#allocation3 + $0xb4] sm:$0xff] %v725
        %733 = vst.msk [vmem:[#allocation3 + $0xbc] sm:$0xf] %vm562, %v716
        %734 = vrot.lane.b32.xlu0 %v647, 109
        %v735 = vpop.permute.xlu0 %734
        %736 = vrot.lane.b32.xlu0 %v648, 109
        %v737 = vpop.permute.xlu0 %736
        %738 = vrot.lane.b32.xlu0 %v649, 109
        %v739 = vpop.permute.xlu0 %738
        %740 = vrot.lane.b32.xlu0 %v650, 109
        %v741 = vpop.permute.xlu0 %740
        %v742 = vrot.slane %v735, 4
        %v743 = vrot.slane %v737, 4
        %v744 = vrot.slane %v739, 4
        %v745 = vrot.slane %v741, 4
        %v746 = vsel %vm549, %v742, %v743
        %vm747 = vcmask 891904
        %v748 = vsel %vm747, %v735, %v746
        %v749 = vsel %vm549, %v744, %v745
        %v750 = vsel %vm747, %v739, %v749
        %755 = vst [vmem:[#allocation3 + $0xc0] sm:$0xff] %v748
        %756 = vst.msk [vmem:[#allocation3 + $0xc8] sm:$0xf] %vm562, %v737
        %757 = vst [vmem:[#allocation3 + $0xcc] sm:$0xff] %v750
        %758 = vst.msk [vmem:[#allocation3 + $0xd4] sm:$0xf] %vm562, %v741
        %v759 = vld [vmem:[#allocation4] sm:$0xff]
        %v760 = vld [vmem:[#allocation4 + $0x8] sm:$0xff]
        %v761 = vld [vmem:[#allocation4 + $0x10] sm:$0xff]
        %v762 = vld [vmem:[#allocation4 + $0x18] sm:$0xff]
        %v763 = vld [vmem:[#allocation3] sm:$0xff]
        %v764 = vld [vmem:[#allocation3 + $0x8] sm:$0xf]
        %v765 = vld [vmem:[#allocation3 + $0xc] sm:$0xff]
        %v766 = vld [vmem:[#allocation3 + $0x14] sm:$0xf]
        %v767 = vld [vmem:[#allocation3 + $0x18] sm:$0xff]
        %v768 = vld [vmem:[#allocation3 + $0x20] sm:$0xf]
        %v769 = vld [vmem:[#allocation3 + $0x24] sm:$0xff]
        %v770 = vld [vmem:[#allocation3 + $0x2c] sm:$0xf]
        %v771 = vld [vmem:[#allocation3 + $0x30] sm:$0xff]
        %v772 = vld [vmem:[#allocation3 + $0x38] sm:$0xf]
        %v773 = vld [vmem:[#allocation3 + $0x3c] sm:$0xff]
        %v774 = vld [vmem:[#allocation3 + $0x44] sm:$0xf]
        %v775 = vld [vmem:[#allocation3 + $0x48] sm:$0xff]
        %v776 = vld [vmem:[#allocation3 + $0x50] sm:$0xf]
        %v777 = vld [vmem:[#allocation3 + $0x54] sm:$0xff]
        %v778 = vld [vmem:[#allocation3 + $0x5c] sm:$0xf]
        %v779 = vld [vmem:[#allocation3 + $0x60] sm:$0xff]
        %v780 = vld [vmem:[#allocation3 + $0x68] sm:$0xf]
        %v781 = vld [vmem:[#allocation3 + $0x6c] sm:$0xff]
        %v782 = vld [vmem:[#allocation3 + $0x74] sm:$0xf]
        %v783 = vld [vmem:[#allocation3 + $0x78] sm:$0xff]
        %v784 = vld [vmem:[#allocation3 + $0x80] sm:$0xf]
        %v785 = vld [vmem:[#allocation3 + $0x84] sm:$0xff]
        %v786 = vld [vmem:[#allocation3 + $0x8c] sm:$0xf]
        %v787 = vld [vmem:[#allocation3 + $0x90] sm:$0xff]
        %v788 = vld [vmem:[#allocation3 + $0x98] sm:$0xf]
        %v789 = vld [vmem:[#allocation3 + $0x9c] sm:$0xff]
        %v790 = vld [vmem:[#allocation3 + $0xa4] sm:$0xf]
        %v791 = vld [vmem:[#allocation3 + $0xa8] sm:$0xff]
        %v792 = vld [vmem:[#allocation3 + $0xb0] sm:$0xf]
        %v793 = vld [vmem:[#allocation3 + $0xb4] sm:$0xff]
        %v794 = vld [vmem:[#allocation3 + $0xbc] sm:$0xf]
        %v795 = vld [vmem:[#allocation3 + $0xc0] sm:$0xff]
        %v796 = vld [vmem:[#allocation3 + $0xc8] sm:$0xf]
        %v797 = vld [vmem:[#allocation3 + $0xcc] sm:$0xff]
        %v798 = vld [vmem:[#allocation3 + $0xd4] sm:$0xf]
        %v799 = vld [vmem:[%s2] sm:$0xff]
        %v800 = vld [vmem:[%s2 + $0x8] sm:$0xff]
        %v801 = vld [vmem:[%s2 + $0x10] sm:$0xff]
        %v802 = vld [vmem:[%s2 + $0x18] sm:$0xff]
        %804 = vset.pattern.permute.xlu0 0
        %805 = vperm.xlu0 %804, %v799
        %v806 = vpop.permute.xlu0 %805
        %809 = vset.pattern.permute.xlu0 0
        %810 = vperm.xlu0 %809, %v800
        %v811 = vpop.permute.xlu0 %810
        %814 = vset.pattern.permute.xlu0 0
        %815 = vperm.xlu0 %814, %v801
        %v816 = vpop.permute.xlu0 %815
        %819 = vset.pattern.permute.xlu0 0
        %820 = vperm.xlu0 %819, %v802
        %v821 = vpop.permute.xlu0 %820
        %v827 = vunpack.c.l.b16 %v759
        %v828 = vunpack.c.h.b16 %v759
        %v829 = vunpack.c.l.b16 %v760
        %v830 = vunpack.c.h.b16 %v760
        %v831 = vunpack.c.l.b16 %v761
        %v832 = vunpack.c.h.b16 %v761
        %v833 = vunpack.c.l.b16 %v762
        %v834 = vunpack.c.h.b16 %v762
        %v835 = vpack.c.b16 %v829, %v827
        %v836 = vpack.c.b16 %v830, %v828
        %v837 = vpack.c.b16 %v833, %v831
        %v838 = vpack.c.b16 %v834, %v832
        %v877 = vunpack.c.l.b16 %v763
        %v878 = vunpack.c.h.b16 %v763
        %v879 = vunpack.c.l.b16 %v764
        %v880 = vunpack.c.l.b16 %v765
        %v881 = vunpack.c.h.b16 %v765
        %v882 = vunpack.c.l.b16 %v766
        %v883 = vunpack.c.l.b16 %v767
        %v884 = vunpack.c.h.b16 %v767
        %v885 = vunpack.c.l.b16 %v768
        %v886 = vunpack.c.l.b16 %v769
        %v887 = vunpack.c.h.b16 %v769
        %v888 = vunpack.c.l.b16 %v770
        %v889 = vunpack.c.l.b16 %v771
        %v890 = vunpack.c.h.b16 %v771
        %v891 = vunpack.c.l.b16 %v772
        %v892 = vunpack.c.l.b16 %v773
        %v893 = vunpack.c.h.b16 %v773
        %v894 = vunpack.c.l.b16 %v774
        %v895 = vunpack.c.l.b16 %v775
        %v896 = vunpack.c.h.b16 %v775
        %v897 = vunpack.c.l.b16 %v776
        %v898 = vunpack.c.l.b16 %v777
        %v899 = vunpack.c.h.b16 %v777
        %v900 = vunpack.c.l.b16 %v778
        %v901 = vunpack.c.l.b16 %v779
        %v902 = vunpack.c.h.b16 %v779
        %v903 = vunpack.c.l.b16 %v780
        %v904 = vunpack.c.l.b16 %v781
        %v905 = vunpack.c.h.b16 %v781
        %v906 = vunpack.c.l.b16 %v782
        %v907 = vunpack.c.l.b16 %v783
        %v908 = vunpack.c.h.b16 %v783
        %v909 = vunpack.c.l.b16 %v784
        %v910 = vunpack.c.l.b16 %v785
        %v911 = vunpack.c.h.b16 %v785
        %v912 = vunpack.c.l.b16 %v786
        %v913 = vunpack.c.l.b16 %v787
        %v914 = vunpack.c.h.b16 %v787
        %v915 = vunpack.c.l.b16 %v788
        %v916 = vunpack.c.l.b16 %v789
        %v917 = vunpack.c.h.b16 %v789
        %v918 = vunpack.c.l.b16 %v790
        %v919 = vunpack.c.l.b16 %v791
        %v920 = vunpack.c.h.b16 %v791
        %v921 = vunpack.c.l.b16 %v792
        %v922 = vunpack.c.l.b16 %v793
        %v923 = vunpack.c.h.b16 %v793
        %v924 = vunpack.c.l.b16 %v794
        %v925 = vunpack.c.l.b16 %v795
        %v926 = vunpack.c.h.b16 %v795
        %v927 = vunpack.c.l.b16 %v796
        %v928 = vunpack.c.l.b16 %v797
        %v929 = vunpack.c.h.b16 %v797
        %v930 = vunpack.c.l.b16 %v798
        %v931 = vpack.c.b16 %v880, %v877
        %v932 = vpack.c.b16 %v881, %v878
        %v933 = vpack.c.b16 %v882, %v879
        %v934 = vpack.c.b16 %v886, %v883
        %v935 = vpack.c.b16 %v887, %v884
        %v936 = vpack.c.b16 %v888, %v885
        %v937 = vpack.c.b16 %v892, %v889
        %v938 = vpack.c.b16 %v893, %v890
        %v939 = vpack.c.b16 %v894, %v891
        %v940 = vpack.c.b16 %v898, %v895
        %v941 = vpack.c.b16 %v899, %v896
        %v942 = vpack.c.b16 %v900, %v897
        %v943 = vpack.c.b16 %v904, %v901
        %v944 = vpack.c.b16 %v905, %v902
        %v945 = vpack.c.b16 %v906, %v903
        %v946 = vpack.c.b16 %v910, %v907
        %v947 = vpack.c.b16 %v911, %v908
        %v948 = vpack.c.b16 %v912, %v909
        %v949 = vpack.c.b16 %v916, %v913
        %v950 = vpack.c.b16 %v917, %v914
        %v951 = vpack.c.b16 %v918, %v915
        %v952 = vpack.c.b16 %v922, %v919
        %v953 = vpack.c.b16 %v923, %v920
        %v954 = vpack.c.b16 %v924, %v921
        %v955 = vpack.c.b16 %v928, %v925
        %v956 = vpack.c.b16 %v929, %v926
        %v957 = vpack.c.b16 %v930, %v927
        %vm985 = vcmask 130048
        %v987 = vsel %vm985, %v836, 0
        %v990 = vsel %vm985, %v838, 0
        %992 = vmatprep.subr.bf16.mxu0 %v953
        %993 = vmatpush1.bf16.msra.mxu0 %v952
        %994 = vmatprep.subr.bf16.mxu0 %v950
        %995 = vmatpush1.bf16.msra.mxu0 %v949
        %996 = vmatprep.subr.bf16.mxu0 %v947
        %997 = vmatpush1.bf16.msra.mxu0 %v946
        %998 = vmatprep.subr.bf16.mxu0 %v944
        %999 = vmatpush1.bf16.msra.mxu0 %v943
        %1000 = vmatprep.subr.bf16.mxu0 %v941
        %1001 = vmatpush1.bf16.msra.mxu0 %v940
        %1002 = vmatprep.subr.bf16.mxu0 %v938
        %1003 = vmatpush1.bf16.msra.mxu0 %v937
        %1004 = vmatprep.subr.bf16.mxu0 %v935
        %1005 = vmatpush1.bf16.msra.mxu0 %v934
        %1006 = vmatprep.subr.bf16.mxu0 %v932
        %1007 = vmatpush1.bf16.msra.mxu0 %v931
        %1008 = vmatprep.subr.bf16.mxu0 0
        %1009 = vmatpush2.bf16.msra.mxu0 0
        %1010 = vmatprep.subr.bf16.mxu0 0
        %1011 = vmatpush2.bf16.msra.mxu0 0
        %1012 = vmatprep.subr.bf16.mxu0 0
        %1013 = vmatpush2.bf16.msra.mxu0 0
        %1014 = vmatprep.subr.bf16.mxu0 0
        %1015 = vmatpush2.bf16.msra.mxu0 0
        %1016 = vmatprep.subr.bf16.mxu0 0
        %1017 = vmatpush2.bf16.msra.mxu0 0
        %1018 = vmatprep.subr.bf16.mxu0 0
        %1019 = vmatpush2.bf16.msra.mxu0 0
        %1020 = vmatprep.subr.bf16.mxu0 0
        %1021 = vmatpush2.bf16.msra.mxu0 0
        %1022 = vmatprep.subr.bf16.mxu0 %v956
        %1023 = vmatpush2.bf16.msra.mxu0 %v955
        %1024 = vmatprep.mubr.bf16.mxu0 %v987
        %1025 = vmatmul.mubr.bf16.gmra.mxu0 %v835
        %v1026 = vpop.f32.mrf.mxu0
        %v1027 = vadd.f32 %v806, %v1026
        %v1028 = vpop.f32.mrf.mxu0
        %v1029 = vadd.f32 %v806, %v1028
        %v1030 = vpop.f32.mrf.mxu0
        %v1031 = vadd.f32 %v811, %v1030
        %v1032 = vpop.f32.mrf.mxu0
        %v1033 = vadd.f32 %v811, %v1032
        %1034 = vmatprep.mubr.bf16.mxu0 %v990
        %1035 = vmatmul.mubr.bf16.gmra.mxu0 %v837
        %v1036 = vpop.f32.mrf.mxu0
        %v1037 = vadd.f32 %v816, %v1036
        %v1038 = vpop.f32.mrf.mxu0
        %v1039 = vadd.f32 %v816, %v1038
        %v1040 = vpop.f32.mrf.mxu0
        %v1041 = vadd.f32 %v821, %v1040
        %v1042 = vpop.f32.mrf.mxu0
        %v1043 = vadd.f32 %v821, %v1042
        %1044 = vdwg.mxu0
        %1045 = vmatprep.subr.bf16.mxu0 0
        %1046 = vmatpush1.bf16.msra.mxu0 %v954
        %1047 = vmatprep.subr.bf16.mxu0 0
        %1048 = vmatpush1.bf16.msra.mxu0 %v951
        %1049 = vmatprep.subr.bf16.mxu0 0
        %1050 = vmatpush1.bf16.msra.mxu0 %v948
        %1051 = vmatprep.subr.bf16.mxu0 0
        %1052 = vmatpush1.bf16.msra.mxu0 %v945
        %1053 = vmatprep.subr.bf16.mxu0 0
        %1054 = vmatpush1.bf16.msra.mxu0 %v942
        %1055 = vmatprep.subr.bf16.mxu0 0
        %1056 = vmatpush1.bf16.msra.mxu0 %v939
        %1057 = vmatprep.subr.bf16.mxu0 0
        %1058 = vmatpush1.bf16.msra.mxu0 %v936
        %1059 = vmatprep.subr.bf16.mxu0 0
        %1060 = vmatpush1.bf16.msra.mxu0 %v933
        %1061 = vmatprep.subr.bf16.mxu0 0
        %1062 = vmatpush2.bf16.msra.mxu0 0
        %1063 = vmatprep.subr.bf16.mxu0 0
        %1064 = vmatpush2.bf16.msra.mxu0 0
        %1065 = vmatprep.subr.bf16.mxu0 0
        %1066 = vmatpush2.bf16.msra.mxu0 0
        %1067 = vmatprep.subr.bf16.mxu0 0
        %1068 = vmatpush2.bf16.msra.mxu0 0
        %1069 = vmatprep.subr.bf16.mxu0 0
        %1070 = vmatpush2.bf16.msra.mxu0 0
        %1071 = vmatprep.subr.bf16.mxu0 0
        %1072 = vmatpush2.bf16.msra.mxu0 0
        %1073 = vmatprep.subr.bf16.mxu0 0
        %1074 = vmatpush2.bf16.msra.mxu0 0
        %1075 = vmatprep.subr.bf16.mxu0 0
        %1076 = vmatpush2.bf16.msra.mxu0 %v957
        %1077 = vmatprep.mubr.bf16.mxu0 %v987
        %1078 = vmatmul.mubr.bf16.gmra.mxu0 %v835
        %v1079 = vpop.f32.mrf.mxu0
        %v1080 = vadd.f32 %v806, %v1079
        %v1081 = vpop.f32.mrf.mxu0
        %v1082 = vpop.f32.mrf.mxu0
        %v1083 = vadd.f32 %v811, %v1082
        %v1084 = vpop.f32.mrf.mxu0
        %1085 = vmatprep.mubr.bf16.mxu0 %v990
        %1086 = vmatmul.mubr.bf16.gmra.mxu0 %v837
        %v1087 = vpop.f32.mrf.mxu0
        %v1088 = vadd.f32 %v816, %v1087
        %v1089 = vpop.f32.mrf.mxu0
        %v1090 = vpop.f32.mrf.mxu0
        %v1091 = vadd.f32 %v821, %v1090
        %v1092 = vpop.f32.mrf.mxu0
        %1093 = vdwg.mxu0
        %vm1094 = vcmp.ge.f32.partialorder %v1027, 0.0
        %vm1095 = vcmp.ge.f32.partialorder %v1029, 0.0
        %vm1096 = vcmp.ge.f32.partialorder %v1080, 0.0
        %vm1097 = vcmp.ge.f32.partialorder %v1031, 0.0
        %vm1098 = vcmp.ge.f32.partialorder %v1033, 0.0
        %vm1099 = vcmp.ge.f32.partialorder %v1083, 0.0
        %vm1100 = vcmp.ge.f32.partialorder %v1037, 0.0
        %vm1101 = vcmp.ge.f32.partialorder %v1039, 0.0
        %vm1102 = vcmp.ge.f32.partialorder %v1088, 0.0
        %vm1103 = vcmp.ge.f32.partialorder %v1041, 0.0
        %vm1104 = vcmp.ge.f32.partialorder %v1043, 0.0
        %vm1105 = vcmp.ge.f32.partialorder %v1091, 0.0
        %v1106 = vmul.f32 %v1027, 0.1
        %v1107 = vmul.f32 %v1029, 0.1
        %v1108 = vmul.f32 %v1080, 0.1
        %v1109 = vmul.f32 %v1031, 0.1
        %v1110 = vmul.f32 %v1033, 0.1
        %v1111 = vmul.f32 %v1083, 0.1
        %v1112 = vmul.f32 %v1037, 0.1
        %v1113 = vmul.f32 %v1039, 0.1
        %v1114 = vmul.f32 %v1088, 0.1
        %v1115 = vmul.f32 %v1041, 0.1
        %v1116 = vmul.f32 %v1043, 0.1
        %v1117 = vmul.f32 %v1091, 0.1
        %v1118 = vsel %vm1094, %v1027, %v1106
        %v1119 = vsel %vm1095, %v1029, %v1107
        %v1120 = vsel %vm1096, %v1080, %v1108
        %v1121 = vsel %vm1097, %v1031, %v1109
        %v1122 = vsel %vm1098, %v1033, %v1110
        %v1123 = vsel %vm1099, %v1083, %v1111
        %v1124 = vsel %vm1100, %v1037, %v1112
        %v1125 = vsel %vm1101, %v1039, %v1113
        %v1126 = vsel %vm1102, %v1088, %v1114
        %v1127 = vsel %vm1103, %v1041, %v1115
        %v1128 = vsel %vm1104, %v1043, %v1116
        %v1129 = vsel %vm1105, %v1091, %v1117
        %v1130 = vsel %vm506, 1, 0
        %v1131 = vsel %vm507, 1, 0
        %v1132 = vsel %vm508, 1, 0
        %vm1133 = vcmp.eq.s32.totalorder %v1130, 1
        %vm1134 = vcmp.eq.s32.totalorder %v1131, 1
        %vm1135 = vcmp.eq.s32.totalorder %v1132, 1
        %v1136 = vsel %vm1133, %v1118, 0.0
        %v1137 = vsel %vm1134, %v1119, 0.0
        %v1138 = vsel %vm1135, %v1120, 0.0
        %v1139 = vsel %vm1133, %v1121, 0.0
        %v1140 = vsel %vm1134, %v1122, 0.0
        %v1141 = vsel %vm1135, %v1123, 0.0
        %v1142 = vsel %vm1133, %v1124, 0.0
        %v1143 = vsel %vm1134, %v1125, 0.0
        %v1144 = vsel %vm1135, %v1126, 0.0
        %v1145 = vsel %vm1133, %v1127, 0.0
        %v1146 = vsel %vm1134, %v1128, 0.0
        %v1147 = vsel %vm1135, %v1129, 0.0
        %v1148 = vpack.c.bf16 %v1139, %v1136
        %v1149 = vpack.c.bf16 %v1140, %v1137
        %v1150 = vpack.c.bf16 %v1141, %v1138
        %v1151 = vpack.c.bf16 %v1145, %v1142
        %v1152 = vpack.c.bf16 %v1146, %v1143
        %v1153 = vpack.c.bf16 %v1147, %v1144
        %v1160 = vunpack.c.l.b16 %v1148
        %v1161 = vunpack.c.l.b16 %v1149
        %v1162 = vunpack.c.l.b16 %v1150
        %v1163 = vunpack.c.h.b16 %v1148
        %v1164 = vunpack.c.h.b16 %v1149
        %v1165 = vunpack.c.h.b16 %v1150
        %v1166 = vunpack.c.l.b16 %v1151
        %v1167 = vunpack.c.l.b16 %v1152
        %v1168 = vunpack.c.l.b16 %v1153
        %v1169 = vunpack.c.h.b16 %v1151
        %v1170 = vunpack.c.h.b16 %v1152
        %v1171 = vunpack.c.h.b16 %v1153
        %v1172 = vpack.c.b16 %v1161, %v1160
        %v1173 = vpack.c.b16 %v1162, %v1162
        %v1174 = vpack.c.b16 %v1164, %v1163
        %v1175 = vpack.c.b16 %v1165, %v1165
        %v1176 = vpack.c.b16 %v1167, %v1166
        %v1177 = vpack.c.b16 %v1168, %v1168
        %v1178 = vpack.c.b16 %v1170, %v1169
        %v1179 = vpack.c.b16 %v1171, %v1171
        %1188 = vst [vmem:[#allocation2 + $0x4] sm:$0xff] %v1172
        %1189 = vst.msk [vmem:[#allocation2 + $0xc] sm:$0xf] %vm562, %v1173
        %1190 = vst [vmem:[#allocation2 + $0x14] sm:$0xff] %v1174
        %1191 = vst.msk [vmem:[#allocation2 + $0x1c] sm:$0xf] %vm562, %v1175
        %1192 = vst [vmem:[#allocation2 + $0x24] sm:$0xff] %v1176
        %1193 = vst.msk [vmem:[#allocation2 + $0x2c] sm:$0xf] %vm562, %v1177
        %1194 = vst [vmem:[#allocation2 + $0x34] sm:$0xff] %v1178
        %1195 = vst.msk [vmem:[#allocation2 + $0x3c] sm:$0xf] %vm562, %v1179
        %v1196 = vld [vmem:[#allocation2] sm:$0xff]
        %v1197 = vld [vmem:[#allocation2 + $0x8] sm:$0xff]
        %v1198 = vld [vmem:[#allocation2 + $0x10] sm:$0xff]
        %v1199 = vld [vmem:[#allocation2 + $0x18] sm:$0xff]
        %v1200 = vld [vmem:[#allocation2 + $0x20] sm:$0xff]
        %v1201 = vld [vmem:[#allocation2 + $0x28] sm:$0xff]
        %v1202 = vld [vmem:[#allocation2 + $0x30] sm:$0xff]
        %v1203 = vld [vmem:[#allocation2 + $0x38] sm:$0xff]
        %1212 = vrot.lane.b32.xlu0 %v1196, 19
        %v1213 = vpop.permute.xlu0 %1212
        %1214 = vrot.lane.b32.xlu0 %v1197, 19
        %v1215 = vpop.permute.xlu0 %1214
        %1216 = vrot.lane.b32.xlu0 %v1198, 19
        %v1217 = vpop.permute.xlu0 %1216
        %1218 = vrot.lane.b32.xlu0 %v1199, 19
        %v1219 = vpop.permute.xlu0 %1218
        %1220 = vrot.lane.b32.xlu0 %v1200, 19
        %v1221 = vpop.permute.xlu0 %1220
        %1222 = vrot.lane.b32.xlu0 %v1201, 19
        %v1223 = vpop.permute.xlu0 %1222
        %1224 = vrot.lane.b32.xlu0 %v1202, 19
        %v1225 = vpop.permute.xlu0 %1224
        %1226 = vrot.lane.b32.xlu0 %v1203, 19
        %v1227 = vpop.permute.xlu0 %1226
        %v1228 = vrot.slane %v1213, 4
        %v1229 = vrot.slane %v1215, 4
        %v1230 = vrot.slane %v1217, 4
        %v1231 = vrot.slane %v1219, 4
        %v1232 = vrot.slane %v1221, 4
        %v1233 = vrot.slane %v1223, 4
        %v1234 = vrot.slane %v1225, 4
        %v1235 = vrot.slane %v1227, 4
        %v1236 = vsel %vm549, %v1228, %v1229
        %v1237 = vsel %vm551, %v1213, %v1236
        %v1238 = vsel %vm551, %v1215, %v1229
        %v1239 = vsel %vm549, %v1230, %v1231
        %v1240 = vsel %vm551, %v1217, %v1239
        %v1241 = vsel %vm551, %v1219, %v1231
        %v1242 = vsel %vm549, %v1232, %v1233
        %v1243 = vsel %vm551, %v1221, %v1242
        %v1244 = vsel %vm551, %v1223, %v1233
        %v1245 = vsel %vm549, %v1234, %v1235
        %v1246 = vsel %vm551, %v1225, %v1245
        %v1247 = vsel %vm551, %v1227, %v1235
        %1256 = vst [vmem:[#allocation3] sm:$0xff] %v1237
        %1257 = vst.msk [vmem:[#allocation3 + $0x8] sm:$0xf] %vm562, %v1238
        %1258 = vst [vmem:[#allocation3 + $0xc] sm:$0xff] %v1240
        %1259 = vst.msk [vmem:[#allocation3 + $0x14] sm:$0xf] %vm562, %v1241
        %1260 = vst [vmem:[#allocation3 + $0x18] sm:$0xff] %v1243
        %1261 = vst.msk [vmem:[#allocation3 + $0x20] sm:$0xf] %vm562, %v1244
        %1262 = vst [vmem:[#allocation3 + $0x24] sm:$0xff] %v1246
        %1263 = vst.msk [vmem:[#allocation3 + $0x2c] sm:$0xf] %vm562, %v1247
        %v1264 = vld [vmem:[#allocation2] sm:$0xff]
        %v1265 = vld [vmem:[#allocation2 + $0x8] sm:$0xff]
        %v1266 = vld [vmem:[#allocation2 + $0x10] sm:$0xff]
        %v1267 = vld [vmem:[#allocation2 + $0x18] sm:$0xff]
        %v1268 = vld [vmem:[#allocation2 + $0x20] sm:$0xff]
        %v1269 = vld [vmem:[#allocation2 + $0x28] sm:$0xff]
        %v1270 = vld [vmem:[#allocation2 + $0x30] sm:$0xff]
        %v1271 = vld [vmem:[#allocation2 + $0x38] sm:$0xff]
        %1280 = vrot.lane.b32.xlu0 %v1264, 18
        %v1281 = vpop.permute.xlu0 %1280
        %1282 = vrot.lane.b32.xlu0 %v1265, 18
        %v1283 = vpop.permute.xlu0 %1282
        %1284 = vrot.lane.b32.xlu0 %v1266, 18
        %v1285 = vpop.permute.xlu0 %1284
        %1286 = vrot.lane.b32.xlu0 %v1267, 18
        %v1287 = vpop.permute.xlu0 %1286
        %1288 = vrot.lane.b32.xlu0 %v1268, 18
        %v1289 = vpop.permute.xlu0 %1288
        %1290 = vrot.lane.b32.xlu0 %v1269, 18
        %v1291 = vpop.permute.xlu0 %1290
        %1292 = vrot.lane.b32.xlu0 %v1270, 18
        %v1293 = vpop.permute.xlu0 %1292
        %1294 = vrot.lane.b32.xlu0 %v1271, 18
        %v1295 = vpop.permute.xlu0 %1294
        %v1296 = vrot.slane %v1281, 4
        %v1297 = vrot.slane %v1283, 4
        %v1298 = vrot.slane %v1285, 4
        %v1299 = vrot.slane %v1287, 4
        %v1300 = vrot.slane %v1289, 4
        %v1301 = vrot.slane %v1291, 4
        %v1302 = vrot.slane %v1293, 4
        %v1303 = vrot.slane %v1295, 4
        %v1304 = vsel %vm549, %v1296, %v1297
        %v1305 = vsel %vm579, %v1281, %v1304
        %v1306 = vsel %vm579, %v1283, %v1297
        %v1307 = vsel %vm549, %v1298, %v1299
        %v1308 = vsel %vm579, %v1285, %v1307
        %v1309 = vsel %vm579, %v1287, %v1299
        %v1310 = vsel %vm549, %v1300, %v1301
        %v1311 = vsel %vm579, %v1289, %v1310
        %v1312 = vsel %vm579, %v1291, %v1301
        %v1313 = vsel %vm549, %v1302, %v1303
        %v1314 = vsel %vm579, %v1293, %v1313
        %v1315 = vsel %vm579, %v1295, %v1303
        %1324 = vst [vmem:[#allocation3 + $0x30] sm:$0xff] %v1305
        %1325 = vst.msk [vmem:[#allocation3 + $0x38] sm:$0xf] %vm562, %v1306
        %1326 = vst [vmem:[#allocation3 + $0x3c] sm:$0xff] %v1308
        %1327 = vst.msk [vmem:[#allocation3 + $0x44] sm:$0xf] %vm562, %v1309
        %1328 = vst [vmem:[#allocation3 + $0x48] sm:$0xff] %v1311
        %1329 = vst.msk [vmem:[#allocation3 + $0x50] sm:$0xf] %vm562, %v1312
        %1330 = vst [vmem:[#allocation3 + $0x54] sm:$0xff] %v1314
        %1331 = vst.msk [vmem:[#allocation3 + $0x5c] sm:$0xf] %vm562, %v1315
        %v1332 = vld [vmem:[#allocation2] sm:$0xff]
        %v1333 = vld [vmem:[#allocation2 + $0x8] sm:$0xff]
        %v1334 = vld [vmem:[#allocation2 + $0x10] sm:$0xff]
        %v1335 = vld [vmem:[#allocation2 + $0x18] sm:$0xff]
        %v1336 = vld [vmem:[#allocation2 + $0x20] sm:$0xff]
        %v1337 = vld [vmem:[#allocation2 + $0x28] sm:$0xff]
        %v1338 = vld [vmem:[#allocation2 + $0x30] sm:$0xff]
        %v1339 = vld [vmem:[#allocation2 + $0x38] sm:$0xff]
        %1348 = vrot.lane.b32.xlu0 %v1332, 17
        %v1349 = vpop.permute.xlu0 %1348
        %1350 = vrot.lane.b32.xlu0 %v1333, 17
        %v1351 = vpop.permute.xlu0 %1350
        %1352 = vrot.lane.b32.xlu0 %v1334, 17
        %v1353 = vpop.permute.xlu0 %1352
        %1354 = vrot.lane.b32.xlu0 %v1335, 17
        %v1355 = vpop.permute.xlu0 %1354
        %1356 = vrot.lane.b32.xlu0 %v1336, 17
        %v1357 = vpop.permute.xlu0 %1356
        %1358 = vrot.lane.b32.xlu0 %v1337, 17
        %v1359 = vpop.permute.xlu0 %1358
        %1360 = vrot.lane.b32.xlu0 %v1338, 17
        %v1361 = vpop.permute.xlu0 %1360
        %1362 = vrot.lane.b32.xlu0 %v1339, 17
        %v1363 = vpop.permute.xlu0 %1362
        %v1364 = vrot.slane %v1349, 4
        %v1365 = vrot.slane %v1351, 4
        %v1366 = vrot.slane %v1353, 4
        %v1367 = vrot.slane %v1355, 4
        %v1368 = vrot.slane %v1357, 4
        %v1369 = vrot.slane %v1359, 4
        %v1370 = vrot.slane %v1361, 4
        %v1371 = vrot.slane %v1363, 4
        %v1372 = vsel %vm549, %v1364, %v1365
        %v1373 = vsel %vm606, %v1349, %v1372
        %v1374 = vsel %vm606, %v1351, %v1365
        %v1375 = vsel %vm549, %v1366, %v1367
        %v1376 = vsel %vm606, %v1353, %v1375
        %v1377 = vsel %vm606, %v1355, %v1367
        %v1378 = vsel %vm549, %v1368, %v1369
        %v1379 = vsel %vm606, %v1357, %v1378
        %v1380 = vsel %vm606, %v1359, %v1369
        %v1381 = vsel %vm549, %v1370, %v1371
        %v1382 = vsel %vm606, %v1361, %v1381
        %v1383 = vsel %vm606, %v1363, %v1371
        %1392 = vst [vmem:[#allocation3 + $0x60] sm:$0xff] %v1373
        %1393 = vst.msk [vmem:[#allocation3 + $0x68] sm:$0xf] %vm562, %v1374
        %1394 = vst [vmem:[#allocation3 + $0x6c] sm:$0xff] %v1376
        %1395 = vst.msk [vmem:[#allocation3 + $0x74] sm:$0xf] %vm562, %v1377
        %1396 = vst [vmem:[#allocation3 + $0x78] sm:$0xff] %v1379
        %1397 = vst.msk [vmem:[#allocation3 + $0x80] sm:$0xf] %vm562, %v1380
        %1398 = vst [vmem:[#allocation3 + $0x84] sm:$0xff] %v1382
        %1399 = vst.msk [vmem:[#allocation3 + $0x8c] sm:$0xf] %vm562, %v1383
        %v1400 = vld [vmem:[#allocation2] sm:$0xff]
        %v1401 = vld [vmem:[#allocation2 + $0x8] sm:$0xff]
        %v1402 = vld [vmem:[#allocation2 + $0x10] sm:$0xff]
        %v1403 = vld [vmem:[#allocation2 + $0x18] sm:$0xff]
        %v1404 = vld [vmem:[#allocation2 + $0x20] sm:$0xff]
        %v1405 = vld [vmem:[#allocation2 + $0x28] sm:$0xff]
        %v1406 = vld [vmem:[#allocation2 + $0x30] sm:$0xff]
        %v1407 = vld [vmem:[#allocation2 + $0x38] sm:$0xff]
        %1416 = vrot.lane.b32.xlu0 %v1400, 1
        %v1417 = vpop.permute.xlu0 %1416
        %1418 = vrot.lane.b32.xlu0 %v1401, 1
        %v1419 = vpop.permute.xlu0 %1418
        %1420 = vrot.lane.b32.xlu0 %v1402, 1
        %v1421 = vpop.permute.xlu0 %1420
        %1422 = vrot.lane.b32.xlu0 %v1403, 1
        %v1423 = vpop.permute.xlu0 %1422
        %1424 = vrot.lane.b32.xlu0 %v1404, 1
        %v1425 = vpop.permute.xlu0 %1424
        %1426 = vrot.lane.b32.xlu0 %v1405, 1
        %v1427 = vpop.permute.xlu0 %1426
        %1428 = vrot.lane.b32.xlu0 %v1406, 1
        %v1429 = vpop.permute.xlu0 %1428
        %1430 = vrot.lane.b32.xlu0 %v1407, 1
        %v1431 = vpop.permute.xlu0 %1430
        %v1432 = vrot.slane %v1417, 4
        %v1433 = vrot.slane %v1419, 4
        %v1434 = vrot.slane %v1421, 4
        %v1435 = vrot.slane %v1423, 4
        %v1436 = vrot.slane %v1425, 4
        %v1437 = vrot.slane %v1427, 4
        %v1438 = vrot.slane %v1429, 4
        %v1439 = vrot.slane %v1431, 4
        %v1440 = vsel %vm549, %v1432, %v1433
        %v1441 = vsel %vm633, %v1417, %v1440
        %v1442 = vsel %vm633, %v1419, %v1433
        %v1443 = vsel %vm549, %v1434, %v1435
        %v1444 = vsel %vm633, %v1421, %v1443
        %v1445 = vsel %vm633, %v1423, %v1435
        %v1446 = vsel %vm549, %v1436, %v1437
        %v1447 = vsel %vm633, %v1425, %v1446
        %v1448 = vsel %vm633, %v1427, %v1437
        %v1449 = vsel %vm549, %v1438, %v1439
        %v1450 = vsel %vm633, %v1429, %v1449
        %v1451 = vsel %vm633, %v1431, %v1439
        %1460 = vst [vmem:[#allocation3 + $0x90] sm:$0xff] %v1441
        %1461 = vst.msk [vmem:[#allocation3 + $0x98] sm:$0xf] %vm562, %v1442
        %1462 = vst [vmem:[#allocation3 + $0x9c] sm:$0xff] %v1444
        %1463 = vst.msk [vmem:[#allocation3 + $0xa4] sm:$0xf] %vm562, %v1445
        %1464 = vst [vmem:[#allocation3 + $0xa8] sm:$0xff] %v1447
        %1465 = vst.msk [vmem:[#allocation3 + $0xb0] sm:$0xf] %vm562, %v1448
        %1466 = vst [vmem:[#allocation3 + $0xb4] sm:$0xff] %v1450
        %1467 = vst.msk [vmem:[#allocation3 + $0xbc] sm:$0xf] %vm562, %v1451
        %v1468 = vld [vmem:[#allocation2 + $0x4] sm:$0xff]
        %v1469 = vld [vmem:[#allocation2 + $0xc] sm:$0xf]
        %v1470 = vld [vmem:[#allocation2 + $0x14] sm:$0xff]
        %v1471 = vld [vmem:[#allocation2 + $0x1c] sm:$0xf]
        %v1472 = vld [vmem:[#allocation2 + $0x24] sm:$0xff]
        %v1473 = vld [vmem:[#allocation2 + $0x2c] sm:$0xf]
        %v1474 = vld [vmem:[#allocation2 + $0x34] sm:$0xff]
        %v1475 = vld [vmem:[#allocation2 + $0x3c] sm:$0xf]
        %1476 = vst [vmem:[#allocation3 + $0xc0] sm:$0xff] %v1468
        %1477 = vst.msk [vmem:[#allocation3 + $0xc8] sm:$0xf] %vm562, %v1469
        %1478 = vst [vmem:[#allocation3 + $0xcc] sm:$0xff] %v1470
        %1479 = vst.msk [vmem:[#allocation3 + $0xd4] sm:$0xf] %vm562, %v1471
        %1480 = vst [vmem:[#allocation3 + $0xd8] sm:$0xff] %v1472
        %1481 = vst.msk [vmem:[#allocation3 + $0xe0] sm:$0xf] %vm562, %v1473
        %1482 = vst [vmem:[#allocation3 + $0xe4] sm:$0xff] %v1474
        %1483 = vst.msk [vmem:[#allocation3 + $0xec] sm:$0xf] %vm562, %v1475
        %v1484 = vld [vmem:[#allocation2 + $0x4] sm:$0xff]
        %v1485 = vld [vmem:[#allocation2 + $0xc] sm:$0xf]
        %v1486 = vld [vmem:[#allocation2 + $0x14] sm:$0xff]
        %v1487 = vld [vmem:[#allocation2 + $0x1c] sm:$0xf]
        %v1488 = vld [vmem:[#allocation2 + $0x24] sm:$0xff]
        %v1489 = vld [vmem:[#allocation2 + $0x2c] sm:$0xf]
        %v1490 = vld [vmem:[#allocation2 + $0x34] sm:$0xff]
        %v1491 = vld [vmem:[#allocation2 + $0x3c] sm:$0xf]
        %1500 = vrot.lane.b32.xlu0 %v1484, 127
        %v1501 = vpop.permute.xlu0 %1500
        %1502 = vrot.lane.b32.xlu0 %v1485, 127
        %v1503 = vpop.permute.xlu0 %1502
        %1504 = vrot.lane.b32.xlu0 %v1486, 127
        %v1505 = vpop.permute.xlu0 %1504
        %1506 = vrot.lane.b32.xlu0 %v1487, 127
        %v1507 = vpop.permute.xlu0 %1506
        %1508 = vrot.lane.b32.xlu0 %v1488, 127
        %v1509 = vpop.permute.xlu0 %1508
        %1510 = vrot.lane.b32.xlu0 %v1489, 127
        %v1511 = vpop.permute.xlu0 %1510
        %1512 = vrot.lane.b32.xlu0 %v1490, 127
        %v1513 = vpop.permute.xlu0 %1512
        %1514 = vrot.lane.b32.xlu0 %v1491, 127
        %v1515 = vpop.permute.xlu0 %1514
        %v1516 = vrot.slane %v1501, 4
        %v1517 = vrot.slane %v1503, 4
        %v1518 = vrot.slane %v1505, 4
        %v1519 = vrot.slane %v1507, 4
        %v1520 = vrot.slane %v1509, 4
        %v1521 = vrot.slane %v1511, 4
        %v1522 = vrot.slane %v1513, 4
        %v1523 = vrot.slane %v1515, 4
        %v1524 = vsel %vm549, %v1516, %v1517
        %v1525 = vsel %vm672, %v1501, %v1524
        %v1526 = vsel %vm549, %v1518, %v1519
        %v1527 = vsel %vm672, %v1505, %v1526
        %v1528 = vsel %vm549, %v1520, %v1521
        %v1529 = vsel %vm672, %v1509, %v1528
        %v1530 = vsel %vm549, %v1522, %v1523
        %v1531 = vsel %vm672, %v1513, %v1530
        %1540 = vst [vmem:[#allocation3 + $0xf0] sm:$0xff] %v1525
        %1541 = vst.msk [vmem:[#allocation3 + $0xf8] sm:$0xf] %vm562, %v1503
        %1542 = vst [vmem:[#allocation3 + $0xfc] sm:$0xff] %v1527
        %1543 = vst.msk [vmem:[#allocation3 + $0x104] sm:$0xf] %vm562, %v1507
        %1544 = vst [vmem:[#allocation3 + $0x108] sm:$0xff] %v1529
        %1545 = vst.msk [vmem:[#allocation3 + $0x110] sm:$0xf] %vm562, %v1511
        %1546 = vst [vmem:[#allocation3 + $0x114] sm:$0xff] %v1531
        %1547 = vst.msk [vmem:[#allocation3 + $0x11c] sm:$0xf] %vm562, %v1515
        %v1548 = vld [vmem:[#allocation2 + $0x4] sm:$0xff]
        %v1549 = vld [vmem:[#allocation2 + $0xc] sm:$0xf]
        %v1550 = vld [vmem:[#allocation2 + $0x14] sm:$0xff]
        %v1551 = vld [vmem:[#allocation2 + $0x1c] sm:$0xf]
        %v1552 = vld [vmem:[#allocation2 + $0x24] sm:$0xff]
        %v1553 = vld [vmem:[#allocation2 + $0x2c] sm:$0xf]
        %v1554 = vld [vmem:[#allocation2 + $0x34] sm:$0xff]
        %v1555 = vld [vmem:[#allocation2 + $0x3c] sm:$0xf]
        %1564 = vrot.lane.b32.xlu0 %v1548, 111
        %v1565 = vpop.permute.xlu0 %1564
        %1566 = vrot.lane.b32.xlu0 %v1549, 111
        %v1567 = vpop.permute.xlu0 %1566
        %1568 = vrot.lane.b32.xlu0 %v1550, 111
        %v1569 = vpop.permute.xlu0 %1568
        %1570 = vrot.lane.b32.xlu0 %v1551, 111
        %v1571 = vpop.permute.xlu0 %1570
        %1572 = vrot.lane.b32.xlu0 %v1552, 111
        %v1573 = vpop.permute.xlu0 %1572
        %1574 = vrot.lane.b32.xlu0 %v1553, 111
        %v1575 = vpop.permute.xlu0 %1574
        %1576 = vrot.lane.b32.xlu0 %v1554, 111
        %v1577 = vpop.permute.xlu0 %1576
        %1578 = vrot.lane.b32.xlu0 %v1555, 111
        %v1579 = vpop.permute.xlu0 %1578
        %v1580 = vrot.slane %v1565, 4
        %v1581 = vrot.slane %v1567, 4
        %v1582 = vrot.slane %v1569, 4
        %v1583 = vrot.slane %v1571, 4
        %v1584 = vrot.slane %v1573, 4
        %v1585 = vrot.slane %v1575, 4
        %v1586 = vrot.slane %v1577, 4
        %v1587 = vrot.slane %v1579, 4
        %v1588 = vsel %vm549, %v1580, %v1581
        %v1589 = vsel %vm697, %v1565, %v1588
        %v1590 = vsel %vm549, %v1582, %v1583
        %v1591 = vsel %vm697, %v1569, %v1590
        %v1592 = vsel %vm549, %v1584, %v1585
        %v1593 = vsel %vm697, %v1573, %v1592
        %v1594 = vsel %vm549, %v1586, %v1587
        %v1595 = vsel %vm697, %v1577, %v1594
        %1604 = vst [vmem:[#allocation3 + $0x120] sm:$0xff] %v1589
        %1605 = vst.msk [vmem:[#allocation3 + $0x128] sm:$0xf] %vm562, %v1567
        %1606 = vst [vmem:[#allocation3 + $0x12c] sm:$0xff] %v1591
        %1607 = vst.msk [vmem:[#allocation3 + $0x134] sm:$0xf] %vm562, %v1571
        %1608 = vst [vmem:[#allocation3 + $0x138] sm:$0xff] %v1593
        %1609 = vst.msk [vmem:[#allocation3 + $0x140] sm:$0xf] %vm562, %v1575
        %1610 = vst [vmem:[#allocation3 + $0x144] sm:$0xff] %v1595
        %1611 = vst.msk [vmem:[#allocation3 + $0x14c] sm:$0xf] %vm562, %v1579
        %v1612 = vld [vmem:[#allocation2 + $0x4] sm:$0xff]
        %v1613 = vld [vmem:[#allocation2 + $0xc] sm:$0xf]
        %v1614 = vld [vmem:[#allocation2 + $0x14] sm:$0xff]
        %v1615 = vld [vmem:[#allocation2 + $0x1c] sm:$0xf]
        %v1616 = vld [vmem:[#allocation2 + $0x24] sm:$0xff]
        %v1617 = vld [vmem:[#allocation2 + $0x2c] sm:$0xf]
        %v1618 = vld [vmem:[#allocation2 + $0x34] sm:$0xff]
        %v1619 = vld [vmem:[#allocation2 + $0x3c] sm:$0xf]
        %1628 = vrot.lane.b32.xlu0 %v1612, 110
        %v1629 = vpop.permute.xlu0 %1628
        %1630 = vrot.lane.b32.xlu0 %v1613, 110
        %v1631 = vpop.permute.xlu0 %1630
        %1632 = vrot.lane.b32.xlu0 %v1614, 110
        %v1633 = vpop.permute.xlu0 %1632
        %1634 = vrot.lane.b32.xlu0 %v1615, 110
        %v1635 = vpop.permute.xlu0 %1634
        %1636 = vrot.lane.b32.xlu0 %v1616, 110
        %v1637 = vpop.permute.xlu0 %1636
        %1638 = vrot.lane.b32.xlu0 %v1617, 110
        %v1639 = vpop.permute.xlu0 %1638
        %1640 = vrot.lane.b32.xlu0 %v1618, 110
        %v1641 = vpop.permute.xlu0 %1640
        %1642 = vrot.lane.b32.xlu0 %v1619, 110
        %v1643 = vpop.permute.xlu0 %1642
        %v1644 = vrot.slane %v1629, 4
        %v1645 = vrot.slane %v1631, 4
        %v1646 = vrot.slane %v1633, 4
        %v1647 = vrot.slane %v1635, 4
        %v1648 = vrot.slane %v1637, 4
        %v1649 = vrot.slane %v1639, 4
        %v1650 = vrot.slane %v1641, 4
        %v1651 = vrot.slane %v1643, 4
        %v1652 = vsel %vm549, %v1644, %v1645
        %v1653 = vsel %vm722, %v1629, %v1652
        %v1654 = vsel %vm549, %v1646, %v1647
        %v1655 = vsel %vm722, %v1633, %v1654
        %v1656 = vsel %vm549, %v1648, %v1649
        %v1657 = vsel %vm722, %v1637, %v1656
        %v1658 = vsel %vm549, %v1650, %v1651
        %v1659 = vsel %vm722, %v1641, %v1658
        %1668 = vst [vmem:[#allocation3 + $0x150] sm:$0xff] %v1653
        %1669 = vst.msk [vmem:[#allocation3 + $0x158] sm:$0xf] %vm562, %v1631
        %1670 = vst [vmem:[#allocation3 + $0x15c] sm:$0xff] %v1655
        %1671 = vst.msk [vmem:[#allocation3 + $0x164] sm:$0xf] %vm562, %v1635
        %1672 = vst [vmem:[#allocation3 + $0x168] sm:$0xff] %v1657
        %1673 = vst.msk [vmem:[#allocation3 + $0x170] sm:$0xf] %vm562, %v1639
        %1674 = vst [vmem:[#allocation3 + $0x174] sm:$0xff] %v1659
        %1675 = vst.msk [vmem:[#allocation3 + $0x17c] sm:$0xf] %vm562, %v1643
        %v1676 = vld [vmem:[#allocation2 + $0x4] sm:$0xff]
        %v1677 = vld [vmem:[#allocation2 + $0xc] sm:$0xf]
        %v1678 = vld [vmem:[#allocation2 + $0x14] sm:$0xff]
        %v1679 = vld [vmem:[#allocation2 + $0x1c] sm:$0xf]
        %v1680 = vld [vmem:[#allocation2 + $0x24] sm:$0xff]
        %v1681 = vld [vmem:[#allocation2 + $0x2c] sm:$0xf]
        %v1682 = vld [vmem:[#allocation2 + $0x34] sm:$0xff]
        %v1683 = vld [vmem:[#allocation2 + $0x3c] sm:$0xf]
        %1692 = vrot.lane.b32.xlu0 %v1676, 109
        %v1693 = vpop.permute.xlu0 %1692
        %1694 = vrot.lane.b32.xlu0 %v1677, 109
        %v1695 = vpop.permute.xlu0 %1694
        %1696 = vrot.lane.b32.xlu0 %v1678, 109
        %v1697 = vpop.permute.xlu0 %1696
        %1698 = vrot.lane.b32.xlu0 %v1679, 109
        %v1699 = vpop.permute.xlu0 %1698
        %1700 = vrot.lane.b32.xlu0 %v1680, 109
        %v1701 = vpop.permute.xlu0 %1700
        %1702 = vrot.lane.b32.xlu0 %v1681, 109
        %v1703 = vpop.permute.xlu0 %1702
        %1704 = vrot.lane.b32.xlu0 %v1682, 109
        %v1705 = vpop.permute.xlu0 %1704
        %1706 = vrot.lane.b32.xlu0 %v1683, 109
        %v1707 = vpop.permute.xlu0 %1706
        %v1708 = vrot.slane %v1693, 4
        %v1709 = vrot.slane %v1695, 4
        %v1710 = vrot.slane %v1697, 4
        %v1711 = vrot.slane %v1699, 4
        %v1712 = vrot.slane %v1701, 4
        %v1713 = vrot.slane %v1703, 4
        %v1714 = vrot.slane %v1705, 4
        %v1715 = vrot.slane %v1707, 4
        %v1716 = vsel %vm549, %v1708, %v1709
        %v1717 = vsel %vm747, %v1693, %v1716
        %v1718 = vsel %vm549, %v1710, %v1711
        %v1719 = vsel %vm747, %v1697, %v1718
        %v1720 = vsel %vm549, %v1712, %v1713
        %v1721 = vsel %vm747, %v1701, %v1720
        %v1722 = vsel %vm549, %v1714, %v1715
        %v1723 = vsel %vm747, %v1705, %v1722
        %1732 = vst [vmem:[#allocation3 + $0x180] sm:$0xff] %v1717
        %1733 = vst.msk [vmem:[#allocation3 + $0x188] sm:$0xf] %vm562, %v1695
        %1734 = vst [vmem:[#allocation3 + $0x18c] sm:$0xff] %v1719
        %1735 = vst.msk [vmem:[#allocation3 + $0x194] sm:$0xf] %vm562, %v1699
        %1736 = vst [vmem:[#allocation3 + $0x198] sm:$0xff] %v1721
        %1737 = vst.msk [vmem:[#allocation3 + $0x1a0] sm:$0xf] %vm562, %v1703
        %1738 = vst [vmem:[#allocation3 + $0x1a4] sm:$0xff] %v1723
        %1739 = vst.msk [vmem:[#allocation3 + $0x1ac] sm:$0xf] %vm562, %v1707
        %v1740 = vld [vmem:[#allocation7] sm:$0xff]
        %v1741 = vld [vmem:[#allocation7 + $0x8] sm:$0xf]
        %v1742 = vld [vmem:[#allocation7 + $0xc] sm:$0xff]
        %v1743 = vld [vmem:[#allocation7 + $0x14] sm:$0xf]
        %v1744 = vld [vmem:[#allocation7 + $0x18] sm:$0xff]
        %v1745 = vld [vmem:[#allocation7 + $0x20] sm:$0xf]
        %v1746 = vld [vmem:[#allocation7 + $0x24] sm:$0xff]
        %v1747 = vld [vmem:[#allocation7 + $0x2c] sm:$0xf]
        %v1748 = vld [vmem:[#allocation3] sm:$0xff]
        %v1749 = vld [vmem:[#allocation3 + $0x8] sm:$0xf]
        %v1750 = vld [vmem:[#allocation3 + $0xc] sm:$0xff]
        %v1751 = vld [vmem:[#allocation3 + $0x14] sm:$0xf]
        %v1752 = vld [vmem:[#allocation3 + $0x18] sm:$0xff]
        %v1753 = vld [vmem:[#allocation3 + $0x20] sm:$0xf]
        %v1754 = vld [vmem:[#allocation3 + $0x24] sm:$0xff]
        %v1755 = vld [vmem:[#allocation3 + $0x2c] sm:$0xf]
        %v1756 = vld [vmem:[#allocation3 + $0x30] sm:$0xff]
        %v1757 = vld [vmem:[#allocation3 + $0x38] sm:$0xf]
        %v1758 = vld [vmem:[#allocation3 + $0x3c] sm:$0xff]
        %v1759 = vld [vmem:[#allocation3 + $0x44] sm:$0xf]
        %v1760 = vld [vmem:[#allocation3 + $0x48] sm:$0xff]
        %v1761 = vld [vmem:[#allocation3 + $0x50] sm:$0xf]
        %v1762 = vld [vmem:[#allocation3 + $0x54] sm:$0xff]
        %v1763 = vld [vmem:[#allocation3 + $0x5c] sm:$0xf]
        %v1764 = vld [vmem:[#allocation3 + $0x60] sm:$0xff]
        %v1765 = vld [vmem:[#allocation3 + $0x68] sm:$0xf]
        %v1766 = vld [vmem:[#allocation3 + $0x6c] sm:$0xff]
        %v1767 = vld [vmem:[#allocation3 + $0x74] sm:$0xf]
        %v1768 = vld [vmem:[#allocation3 + $0x78] sm:$0xff]
        %v1769 = vld [vmem:[#allocation3 + $0x80] sm:$0xf]
        %v1770 = vld [vmem:[#allocation3 + $0x84] sm:$0xff]
        %v1771 = vld [vmem:[#allocation3 + $0x8c] sm:$0xf]
        %v1772 = vld [vmem:[#allocation3 + $0x90] sm:$0xff]
        %v1773 = vld [vmem:[#allocation3 + $0x98] sm:$0xf]
        %v1774 = vld [vmem:[#allocation3 + $0x9c] sm:$0xff]
        %v1775 = vld [vmem:[#allocation3 + $0xa4] sm:$0xf]
        %v1776 = vld [vmem:[#allocation3 + $0xa8] sm:$0xff]
        %v1777 = vld [vmem:[#allocation3 + $0xb0] sm:$0xf]
        %v1778 = vld [vmem:[#allocation3 + $0xb4] sm:$0xff]
        %v1779 = vld [vmem:[#allocation3 + $0xbc] sm:$0xf]
        %v1780 = vld [vmem:[#allocation3 + $0xc0] sm:$0xff]
        %v1781 = vld [vmem:[#allocation3 + $0xc8] sm:$0xf]
        %v1782 = vld [vmem:[#allocation3 + $0xcc] sm:$0xff]
        %v1783 = vld [vmem:[#allocation3 + $0xd4] sm:$0xf]
        %v1784 = vld [vmem:[#allocation3 + $0xd8] sm:$0xff]
        %v1785 = vld [vmem:[#allocation3 + $0xe0] sm:$0xf]
        %v1786 = vld [vmem:[#allocation3 + $0xe4] sm:$0xff]
        %v1787 = vld [vmem:[#allocation3 + $0xec] sm:$0xf]
        %v1788 = vld [vmem:[#allocation3 + $0xf0] sm:$0xff]
        %v1789 = vld [vmem:[#allocation3 + $0xf8] sm:$0xf]
        %v1790 = vld [vmem:[#allocation3 + $0xfc] sm:$0xff]
        %v1791 = vld [vmem:[#allocation3 + $0x104] sm:$0xf]
        %v1792 = vld [vmem:[#allocation3 + $0x108] sm:$0xff]
        %v1793 = vld [vmem:[#allocation3 + $0x110] sm:$0xf]
        %v1794 = vld [vmem:[#allocation3 + $0x114] sm:$0xff]
        %v1795 = vld [vmem:[#allocation3 + $0x11c] sm:$0xf]
        %v1796 = vld [vmem:[#allocation3 + $0x120] sm:$0xff]
        %v1797 = vld [vmem:[#allocation3 + $0x128] sm:$0xf]
        %v1798 = vld [vmem:[#allocation3 + $0x12c] sm:$0xff]
        %v1799 = vld [vmem:[#allocation3 + $0x134] sm:$0xf]
        %v1800 = vld [vmem:[#allocation3 + $0x138] sm:$0xff]
        %v1801 = vld [vmem:[#allocation3 + $0x140] sm:$0xf]
        %v1802 = vld [vmem:[#allocation3 + $0x144] sm:$0xff]
        %v1803 = vld [vmem:[#allocation3 + $0x14c] sm:$0xf]
        %v1804 = vld [vmem:[#allocation3 + $0x150] sm:$0xff]
        %v1805 = vld [vmem:[#allocation3 + $0x158] sm:$0xf]
        %v1806 = vld [vmem:[#allocation3 + $0x15c] sm:$0xff]
        %v1807 = vld [vmem:[#allocation3 + $0x164] sm:$0xf]
        %v1808 = vld [vmem:[#allocation3 + $0x168] sm:$0xff]
        %v1809 = vld [vmem:[#allocation3 + $0x170] sm:$0xf]
        %v1810 = vld [vmem:[#allocation3 + $0x174] sm:$0xff]
        %v1811 = vld [vmem:[#allocation3 + $0x17c] sm:$0xf]
        %v1812 = vld [vmem:[#allocation3 + $0x180] sm:$0xff]
        %v1813 = vld [vmem:[#allocation3 + $0x188] sm:$0xf]
        %v1814 = vld [vmem:[#allocation3 + $0x18c] sm:$0xff]
        %v1815 = vld [vmem:[#allocation3 + $0x194] sm:$0xf]
        %v1816 = vld [vmem:[#allocation3 + $0x198] sm:$0xff]
        %v1817 = vld [vmem:[#allocation3 + $0x1a0] sm:$0xf]
        %v1818 = vld [vmem:[#allocation3 + $0x1a4] sm:$0xff]
        %v1819 = vld [vmem:[#allocation3 + $0x1ac] sm:$0xf]
        %v1820 = vld [vmem:[%s4] sm:$0xff]
        %v1821 = vld [vmem:[%s4 + $0x8] sm:$0xff]
        %v1822 = vld [vmem:[%s4 + $0x10] sm:$0xff]
        %v1823 = vld [vmem:[%s4 + $0x18] sm:$0xff]
        %1825 = vset.pattern.permute.xlu0 0
        %1826 = vperm.xlu0 %1825, %v1820
        %v1827 = vpop.permute.xlu0 %1826
        %1830 = vset.pattern.permute.xlu0 0
        %1831 = vperm.xlu0 %1830, %v1821
        %v1832 = vpop.permute.xlu0 %1831
        %1835 = vset.pattern.permute.xlu0 0
        %1836 = vperm.xlu0 %1835, %v1822
        %v1837 = vpop.permute.xlu0 %1836
        %1840 = vset.pattern.permute.xlu0 0
        %1841 = vperm.xlu0 %1840, %v1823
        %v1842 = vpop.permute.xlu0 %1841
        %v1852 = vunpack.c.l.b16 %v1740
        %v1853 = vunpack.c.h.b16 %v1740
        %v1854 = vunpack.c.l.b16 %v1741
        %v1855 = vunpack.c.l.b16 %v1742
        %v1856 = vunpack.c.h.b16 %v1742
        %v1857 = vunpack.c.l.b16 %v1743
        %v1858 = vunpack.c.l.b16 %v1744
        %v1859 = vunpack.c.h.b16 %v1744
        %v1860 = vunpack.c.l.b16 %v1745
        %v1861 = vunpack.c.l.b16 %v1746
        %v1862 = vunpack.c.h.b16 %v1746
        %v1863 = vunpack.c.l.b16 %v1747
        %v1864 = vpack.c.b16 %v1855, %v1852
        %v1865 = vpack.c.b16 %v1856, %v1853
        %v1866 = vpack.c.b16 %v1857, %v1854
        %v1867 = vpack.c.b16 %v1861, %v1858
        %v1868 = vpack.c.b16 %v1862, %v1859
        %v1869 = vpack.c.b16 %v1863, %v1860
        %v1946 = vunpack.c.l.b16 %v1748
        %v1947 = vunpack.c.h.b16 %v1748
        %v1948 = vunpack.c.l.b16 %v1749
        %v1949 = vunpack.c.l.b16 %v1750
        %v1950 = vunpack.c.h.b16 %v1750
        %v1951 = vunpack.c.l.b16 %v1751
        %v1952 = vunpack.c.l.b16 %v1752
        %v1953 = vunpack.c.h.b16 %v1752
        %v1954 = vunpack.c.l.b16 %v1753
        %v1955 = vunpack.c.l.b16 %v1754
        %v1956 = vunpack.c.h.b16 %v1754
        %v1957 = vunpack.c.l.b16 %v1755
        %v1958 = vunpack.c.l.b16 %v1756
        %v1959 = vunpack.c.h.b16 %v1756
        %v1960 = vunpack.c.l.b16 %v1757
        %v1961 = vunpack.c.l.b16 %v1758
        %v1962 = vunpack.c.h.b16 %v1758
        %v1963 = vunpack.c.l.b16 %v1759
        %v1964 = vunpack.c.l.b16 %v1760
        %v1965 = vunpack.c.h.b16 %v1760
        %v1966 = vunpack.c.l.b16 %v1761
        %v1967 = vunpack.c.l.b16 %v1762
        %v1968 = vunpack.c.h.b16 %v1762
        %v1969 = vunpack.c.l.b16 %v1763
        %v1970 = vunpack.c.l.b16 %v1764
        %v1971 = vunpack.c.h.b16 %v1764
        %v1972 = vunpack.c.l.b16 %v1765
        %v1973 = vunpack.c.l.b16 %v1766
        %v1974 = vunpack.c.h.b16 %v1766
        %v1975 = vunpack.c.l.b16 %v1767
        %v1976 = vunpack.c.l.b16 %v1768
        %v1977 = vunpack.c.h.b16 %v1768
        %v1978 = vunpack.c.l.b16 %v1769
        %v1979 = vunpack.c.l.b16 %v1770
        %v1980 = vunpack.c.h.b16 %v1770
        %v1981 = vunpack.c.l.b16 %v1771
        %v1982 = vunpack.c.l.b16 %v1772
        %v1983 = vunpack.c.h.b16 %v1772
        %v1984 = vunpack.c.l.b16 %v1773
        %v1985 = vunpack.c.l.b16 %v1774
        %v1986 = vunpack.c.h.b16 %v1774
        %v1987 = vunpack.c.l.b16 %v1775
        %v1988 = vunpack.c.l.b16 %v1776
        %v1989 = vunpack.c.h.b16 %v1776
        %v1990 = vunpack.c.l.b16 %v1777
        %v1991 = vunpack.c.l.b16 %v1778
        %v1992 = vunpack.c.h.b16 %v1778
        %v1993 = vunpack.c.l.b16 %v1779
        %v1994 = vunpack.c.l.b16 %v1780
        %v1995 = vunpack.c.h.b16 %v1780
        %v1996 = vunpack.c.l.b16 %v1781
        %v1997 = vunpack.c.l.b16 %v1782
        %v1998 = vunpack.c.h.b16 %v1782
        %v1999 = vunpack.c.l.b16 %v1783
        %v2000 = vunpack.c.l.b16 %v1784
        %v2001 = vunpack.c.h.b16 %v1784
        %v2002 = vunpack.c.l.b16 %v1785
        %v2003 = vunpack.c.l.b16 %v1786
        %v2004 = vunpack.c.h.b16 %v1786
        %v2005 = vunpack.c.l.b16 %v1787
        %v2006 = vunpack.c.l.b16 %v1788
        %v2007 = vunpack.c.h.b16 %v1788
        %v2008 = vunpack.c.l.b16 %v1789
        %v2009 = vunpack.c.l.b16 %v1790
        %v2010 = vunpack.c.h.b16 %v1790
        %v2011 = vunpack.c.l.b16 %v1791
        %v2012 = vunpack.c.l.b16 %v1792
        %v2013 = vunpack.c.h.b16 %v1792
        %v2014 = vunpack.c.l.b16 %v1793
        %v2015 = vunpack.c.l.b16 %v1794
        %v2016 = vunpack.c.h.b16 %v1794
        %v2017 = vunpack.c.l.b16 %v1795
        %v2018 = vunpack.c.l.b16 %v1796
        %v2019 = vunpack.c.h.b16 %v1796
        %v2020 = vunpack.c.l.b16 %v1797
        %v2021 = vunpack.c.l.b16 %v1798
        %v2022 = vunpack.c.h.b16 %v1798
        %v2023 = vunpack.c.l.b16 %v1799
        %v2024 = vunpack.c.l.b16 %v1800
        %v2025 = vunpack.c.h.b16 %v1800
        %v2026 = vunpack.c.l.b16 %v1801
        %v2027 = vunpack.c.l.b16 %v1802
        %v2028 = vunpack.c.h.b16 %v1802
        %v2029 = vunpack.c.l.b16 %v1803
        %v2030 = vunpack.c.l.b16 %v1804
        %v2031 = vunpack.c.h.b16 %v1804
        %v2032 = vunpack.c.l.b16 %v1805
        %v2033 = vunpack.c.l.b16 %v1806
        %v2034 = vunpack.c.h.b16 %v1806
        %v2035 = vunpack.c.l.b16 %v1807
        %v2036 = vunpack.c.l.b16 %v1808
        %v2037 = vunpack.c.h.b16 %v1808
        %v2038 = vunpack.c.l.b16 %v1809
        %v2039 = vunpack.c.l.b16 %v1810
        %v2040 = vunpack.c.h.b16 %v1810
        %v2041 = vunpack.c.l.b16 %v1811
        %v2042 = vunpack.c.l.b16 %v1812
        %v2043 = vunpack.c.h.b16 %v1812
        %v2044 = vunpack.c.l.b16 %v1813
        %v2045 = vunpack.c.l.b16 %v1814
        %v2046 = vunpack.c.h.b16 %v1814
        %v2047 = vunpack.c.l.b16 %v1815
        %v2048 = vunpack.c.l.b16 %v1816
        %v2049 = vunpack.c.h.b16 %v1816
        %v2050 = vunpack.c.l.b16 %v1817
        %v2051 = vunpack.c.l.b16 %v1818
        %v2052 = vunpack.c.h.b16 %v1818
        %v2053 = vunpack.c.l.b16 %v1819
        %v2054 = vpack.c.b16 %v1949, %v1946
        %v2055 = vpack.c.b16 %v1950, %v1947
        %v2056 = vpack.c.b16 %v1951, %v1948
        %v2057 = vpack.c.b16 %v1955, %v1952
        %v2058 = vpack.c.b16 %v1956, %v1953
        %v2059 = vpack.c.b16 %v1957, %v1954
        %v2060 = vpack.c.b16 %v1961, %v1958
        %v2061 = vpack.c.b16 %v1962, %v1959
        %v2062 = vpack.c.b16 %v1963, %v1960
        %v2063 = vpack.c.b16 %v1967, %v1964
        %v2064 = vpack.c.b16 %v1968, %v1965
        %v2065 = vpack.c.b16 %v1969, %v1966
        %v2066 = vpack.c.b16 %v1973, %v1970
        %v2067 = vpack.c.b16 %v1974, %v1971
        %v2068 = vpack.c.b16 %v1975, %v1972
        %v2069 = vpack.c.b16 %v1979, %v1976
        %v2070 = vpack.c.b16 %v1980, %v1977
        %v2071 = vpack.c.b16 %v1981, %v1978
        %v2072 = vpack.c.b16 %v1985, %v1982
        %v2073 = vpack.c.b16 %v1986, %v1983
        %v2074 = vpack.c.b16 %v1987, %v1984
        %v2075 = vpack.c.b16 %v1991, %v1988
        %v2076 = vpack.c.b16 %v1992, %v1989
        %v2077 = vpack.c.b16 %v1993, %v1990
        %v2078 = vpack.c.b16 %v1997, %v1994
        %v2079 = vpack.c.b16 %v1998, %v1995
        %v2080 = vpack.c.b16 %v1999, %v1996
        %v2081 = vpack.c.b16 %v2003, %v2000
        %v2082 = vpack.c.b16 %v2004, %v2001
        %v2083 = vpack.c.b16 %v2005, %v2002
        %v2084 = vpack.c.b16 %v2009, %v2006
        %v2085 = vpack.c.b16 %v2010, %v2007
        %v2086 = vpack.c.b16 %v2011, %v2008
        %v2087 = vpack.c.b16 %v2015, %v2012
        %v2088 = vpack.c.b16 %v2016, %v2013
        %v2089 = vpack.c.b16 %v2017, %v2014
        %v2090 = vpack.c.b16 %v2021, %v2018
        %v2091 = vpack.c.b16 %v2022, %v2019
        %v2092 = vpack.c.b16 %v2023, %v2020
        %v2093 = vpack.c.b16 %v2027, %v2024
        %v2094 = vpack.c.b16 %v2028, %v2025
        %v2095 = vpack.c.b16 %v2029, %v2026
        %v2096 = vpack.c.b16 %v2033, %v2030
        %v2097 = vpack.c.b16 %v2034, %v2031
        %v2098 = vpack.c.b16 %v2035, %v2032
        %v2099 = vpack.c.b16 %v2039, %v2036
        %v2100 = vpack.c.b16 %v2040, %v2037
        %v2101 = vpack.c.b16 %v2041, %v2038
        %v2102 = vpack.c.b16 %v2045, %v2042
        %v2103 = vpack.c.b16 %v2046, %v2043
        %v2104 = vpack.c.b16 %v2047, %v2044
        %v2105 = vpack.c.b16 %v2051, %v2048
        %v2106 = vpack.c.b16 %v2052, %v2049
        %v2107 = vpack.c.b16 %v2053, %v2050
        %vm2162 = vcmask 261120
        %v2164 = vsel %vm2162, %v1866, 0
        %v2167 = vsel %vm2162, %v1869, 0
        %2169 = vmatprep.subr.bf16.mxu0 %v2076
        %2170 = vmatpush1.bf16.msra.mxu0 %v2075
        %2171 = vmatprep.subr.bf16.mxu0 %v2073
        %2172 = vmatpush1.bf16.msra.mxu0 %v2072
        %2173 = vmatprep.subr.bf16.mxu0 %v2070
        %2174 = vmatpush1.bf16.msra.mxu0 %v2069
        %2175 = vmatprep.subr.bf16.mxu0 %v2067
        %2176 = vmatpush1.bf16.msra.mxu0 %v2066
        %2177 = vmatprep.subr.bf16.mxu0 %v2064
        %2178 = vmatpush1.bf16.msra.mxu0 %v2063
        %2179 = vmatprep.subr.bf16.mxu0 %v2061
        %2180 = vmatpush1.bf16.msra.mxu0 %v2060
        %2181 = vmatprep.subr.bf16.mxu0 %v2058
        %2182 = vmatpush1.bf16.msra.mxu0 %v2057
        %2183 = vmatprep.subr.bf16.mxu0 %v2055
        %2184 = vmatpush1.bf16.msra.mxu0 %v2054
        %2185 = vmatprep.subr.bf16.mxu0 %v2100
        %2186 = vmatpush2.bf16.msra.mxu0 %v2099
        %2187 = vmatprep.subr.bf16.mxu0 %v2097
        %2188 = vmatpush2.bf16.msra.mxu0 %v2096
        %2189 = vmatprep.subr.bf16.mxu0 %v2094
        %2190 = vmatpush2.bf16.msra.mxu0 %v2093
        %2191 = vmatprep.subr.bf16.mxu0 %v2091
        %2192 = vmatpush2.bf16.msra.mxu0 %v2090
        %2193 = vmatprep.subr.bf16.mxu0 %v2088
        %2194 = vmatpush2.bf16.msra.mxu0 %v2087
        %2195 = vmatprep.subr.bf16.mxu0 %v2085
        %2196 = vmatpush2.bf16.msra.mxu0 %v2084
        %2197 = vmatprep.subr.bf16.mxu0 %v2082
        %2198 = vmatpush2.bf16.msra.mxu0 %v2081
        %2199 = vmatprep.subr.bf16.mxu0 %v2079
        %2200 = vmatpush2.bf16.msra.mxu0 %v2078
        %2201 = vmatprep.mubr.bf16.mxu0 %v1865
        %2202 = vmatmul.mubr.bf16.gmra.mxu0 %v1864
        %v2203 = vpop.f32.mrf.mxu0
        %v2204 = vadd.f32 %v1827, %v2203
        %v2205 = vpop.f32.mrf.mxu0
        %v2206 = vadd.f32 %v1827, %v2205
        %v2207 = vpop.f32.mrf.mxu0
        %v2208 = vadd.f32 %v1832, %v2207
        %v2209 = vpop.f32.mrf.mxu0
        %v2210 = vadd.f32 %v1832, %v2209
        %2211 = vmatprep.mubr.bf16.mxu0 %v1868
        %2212 = vmatmul.mubr.bf16.gmra.mxu0 %v1867
        %v2213 = vpop.f32.mrf.mxu0
        %v2214 = vadd.f32 %v1837, %v2213
        %v2215 = vpop.f32.mrf.mxu0
        %v2216 = vadd.f32 %v1837, %v2215
        %v2217 = vpop.f32.mrf.mxu0
        %v2218 = vadd.f32 %v1842, %v2217
        %v2219 = vpop.f32.mrf.mxu0
        %v2220 = vadd.f32 %v1842, %v2219
        %2221 = vdwg.mxu0
        %2222 = vmatprep.subr.bf16.mxu0 0
        %2223 = vmatpush1.bf16.msra.mxu0 0
        %2224 = vmatprep.subr.bf16.mxu0 0
        %2225 = vmatpush1.bf16.msra.mxu0 0
        %2226 = vmatprep.subr.bf16.mxu0 0
        %2227 = vmatpush1.bf16.msra.mxu0 0
        %2228 = vmatprep.subr.bf16.mxu0 0
        %2229 = vmatpush1.bf16.msra.mxu0 0
        %2230 = vmatprep.subr.bf16.mxu0 0
        %2231 = vmatpush1.bf16.msra.mxu0 0
        %2232 = vmatprep.subr.bf16.mxu0 0
        %2233 = vmatpush1.bf16.msra.mxu0 0
        %2234 = vmatprep.subr.bf16.mxu0 %v2106
        %2235 = vmatpush1.bf16.msra.mxu0 %v2105
        %2236 = vmatprep.subr.bf16.mxu0 %v2103
        %2237 = vmatpush1.bf16.msra.mxu0 %v2102
        %2238 = vmatprep.subr.bf16.mxu0 0
        %2239 = vmatpush2.bf16.msra.mxu0 0
        %2240 = vmatprep.subr.bf16.mxu0 0
        %2241 = vmatpush2.bf16.msra.mxu0 0
        %2242 = vmatprep.subr.bf16.mxu0 0
        %2243 = vmatpush2.bf16.msra.mxu0 0
        %2244 = vmatprep.subr.bf16.mxu0 0
        %2245 = vmatpush2.bf16.msra.mxu0 0
        %2246 = vmatprep.subr.bf16.mxu0 0
        %2247 = vmatpush2.bf16.msra.mxu0 0
        %2248 = vmatprep.subr.bf16.mxu0 0
        %2249 = vmatpush2.bf16.msra.mxu0 0
        %2250 = vmatprep.subr.bf16.mxu0 0
        %2251 = vmatpush2.bf16.msra.mxu0 0
        %2252 = vmatprep.subr.bf16.mxu0 0
        %2253 = vmatpush2.bf16.msra.mxu0 0
        %2254 = vmatprep.mubr.bf16.mxu0 0
        %2255 = vmatmul.mubr.bf16.gmra.mxu0 %v2164
        %v2256 = vpop.f32.mrf.mxu0
        %v2257 = vadd.f32 %v2204, %v2256
        %v2258 = vpop.f32.mrf.mxu0
        %v2259 = vadd.f32 %v2206, %v2258
        %v2260 = vpop.f32.mrf.mxu0
        %v2261 = vadd.f32 %v2208, %v2260
        %v2262 = vpop.f32.mrf.mxu0
        %v2263 = vadd.f32 %v2210, %v2262
        %2264 = vmatprep.mubr.bf16.mxu0 0
        %2265 = vmatmul.mubr.bf16.gmra.mxu0 %v2167
        %v2266 = vpop.f32.mrf.mxu0
        %v2267 = vadd.f32 %v2214, %v2266
        %v2268 = vpop.f32.mrf.mxu0
        %v2269 = vadd.f32 %v2216, %v2268
        %v2270 = vpop.f32.mrf.mxu0
        %v2271 = vadd.f32 %v2218, %v2270
        %v2272 = vpop.f32.mrf.mxu0
        %v2273 = vadd.f32 %v2220, %v2272
        %2274 = vdwg.mxu0
        %2275 = vmatprep.subr.bf16.mxu0 0
        %2276 = vmatpush1.bf16.msra.mxu0 %v2077
        %2277 = vmatprep.subr.bf16.mxu0 0
        %2278 = vmatpush1.bf16.msra.mxu0 %v2074
        %2279 = vmatprep.subr.bf16.mxu0 0
        %2280 = vmatpush1.bf16.msra.mxu0 %v2071
        %2281 = vmatprep.subr.bf16.mxu0 0
        %2282 = vmatpush1.bf16.msra.mxu0 %v2068
        %2283 = vmatprep.subr.bf16.mxu0 0
        %2284 = vmatpush1.bf16.msra.mxu0 %v2065
        %2285 = vmatprep.subr.bf16.mxu0 0
        %2286 = vmatpush1.bf16.msra.mxu0 %v2062
        %2287 = vmatprep.subr.bf16.mxu0 0
        %2288 = vmatpush1.bf16.msra.mxu0 %v2059
        %2289 = vmatprep.subr.bf16.mxu0 0
        %2290 = vmatpush1.bf16.msra.mxu0 %v2056
        %2291 = vmatprep.subr.bf16.mxu0 0
        %2292 = vmatpush2.bf16.msra.mxu0 %v2101
        %2293 = vmatprep.subr.bf16.mxu0 0
        %2294 = vmatpush2.bf16.msra.mxu0 %v2098
        %2295 = vmatprep.subr.bf16.mxu0 0
        %2296 = vmatpush2.bf16.msra.mxu0 %v2095
        %2297 = vmatprep.subr.bf16.mxu0 0
        %2298 = vmatpush2.bf16.msra.mxu0 %v2092
        %2299 = vmatprep.subr.bf16.mxu0 0
        %2300 = vmatpush2.bf16.msra.mxu0 %v2089
        %2301 = vmatprep.subr.bf16.mxu0 0
        %2302 = vmatpush2.bf16.msra.mxu0 %v2086
        %2303 = vmatprep.subr.bf16.mxu0 0
        %2304 = vmatpush2.bf16.msra.mxu0 %v2083
        %2305 = vmatprep.subr.bf16.mxu0 0
        %2306 = vmatpush2.bf16.msra.mxu0 %v2080
        %2307 = vmatprep.mubr.bf16.mxu0 %v1865
        %2308 = vmatmul.mubr.bf16.gmra.mxu0 %v1864
        %v2309 = vpop.f32.mrf.mxu0
        %v2310 = vadd.f32 %v1827, %v2309
        %v2311 = vpop.f32.mrf.mxu0
        %v2312 = vpop.f32.mrf.mxu0
        %v2313 = vadd.f32 %v1832, %v2312
        %v2314 = vpop.f32.mrf.mxu0
        %2315 = vmatprep.mubr.bf16.mxu0 %v1868
        %2316 = vmatmul.mubr.bf16.gmra.mxu0 %v1867
        %v2317 = vpop.f32.mrf.mxu0
        %v2318 = vadd.f32 %v1837, %v2317
        %v2319 = vpop.f32.mrf.mxu0
        %v2320 = vpop.f32.mrf.mxu0
        %v2321 = vadd.f32 %v1842, %v2320
        %v2322 = vpop.f32.mrf.mxu0
        %2323 = vdwg.mxu0
        %2324 = vmatprep.subr.bf16.mxu0 0
        %2325 = vmatpush1.bf16.msra.mxu0 0
        %2326 = vmatprep.subr.bf16.mxu0 0
        %2327 = vmatpush1.bf16.msra.mxu0 0
        %2328 = vmatprep.subr.bf16.mxu0 0
        %2329 = vmatpush1.bf16.msra.mxu0 0
        %2330 = vmatprep.subr.bf16.mxu0 0
        %2331 = vmatpush1.bf16.msra.mxu0 0
        %2332 = vmatprep.subr.bf16.mxu0 0
        %2333 = vmatpush1.bf16.msra.mxu0 0
        %2334 = vmatprep.subr.bf16.mxu0 0
        %2335 = vmatpush1.bf16.msra.mxu0 0
        %2336 = vmatprep.subr.bf16.mxu0 0
        %2337 = vmatpush1.bf16.msra.mxu0 %v2107
        %2338 = vmatprep.subr.bf16.mxu0 0
        %2339 = vmatpush1.bf16.msra.mxu0 %v2104
        %2340 = vmatprep.subr.bf16.mxu0 0
        %2341 = vmatpush2.bf16.msra.mxu0 0
        %2342 = vmatprep.subr.bf16.mxu0 0
        %2343 = vmatpush2.bf16.msra.mxu0 0
        %2344 = vmatprep.subr.bf16.mxu0 0
        %2345 = vmatpush2.bf16.msra.mxu0 0
        %2346 = vmatprep.subr.bf16.mxu0 0
        %2347 = vmatpush2.bf16.msra.mxu0 0
        %2348 = vmatprep.subr.bf16.mxu0 0
        %2349 = vmatpush2.bf16.msra.mxu0 0
        %2350 = vmatprep.subr.bf16.mxu0 0
        %2351 = vmatpush2.bf16.msra.mxu0 0
        %2352 = vmatprep.subr.bf16.mxu0 0
        %2353 = vmatpush2.bf16.msra.mxu0 0
        %2354 = vmatprep.subr.bf16.mxu0 0
        %2355 = vmatpush2.bf16.msra.mxu0 0
        %2356 = vmatprep.mubr.bf16.mxu0 0
        %2357 = vmatmul.mubr.bf16.gmra.mxu0 %v2164
        %v2358 = vpop.f32.mrf.mxu0
        %v2359 = vadd.f32 %v2310, %v2358
        %v2360 = vpop.f32.mrf.mxu0
        %v2361 = vpop.f32.mrf.mxu0
        %v2362 = vadd.f32 %v2313, %v2361
        %v2363 = vpop.f32.mrf.mxu0
        %2364 = vmatprep.mubr.bf16.mxu0 0
        %2365 = vmatmul.mubr.bf16.gmra.mxu0 %v2167
        %v2366 = vpop.f32.mrf.mxu0
        %v2367 = vadd.f32 %v2318, %v2366
        %v2368 = vpop.f32.mrf.mxu0
        %v2369 = vpop.f32.mrf.mxu0
        %v2370 = vadd.f32 %v2321, %v2369
        %v2371 = vpop.f32.mrf.mxu0
        %2372 = vdwg.mxu0
        %vm2373 = vcmp.ge.f32.partialorder %v2257, 0.0
        %vm2374 = vcmp.ge.f32.partialorder %v2259, 0.0
        %vm2375 = vcmp.ge.f32.partialorder %v2359, 0.0
        %vm2376 = vcmp.ge.f32.partialorder %v2261, 0.0
        %vm2377 = vcmp.ge.f32.partialorder %v2263, 0.0
        %vm2378 = vcmp.ge.f32.partialorder %v2362, 0.0
        %vm2379 = vcmp.ge.f32.partialorder %v2267, 0.0
        %vm2380 = vcmp.ge.f32.partialorder %v2269, 0.0
        %vm2381 = vcmp.ge.f32.partialorder %v2367, 0.0
        %vm2382 = vcmp.ge.f32.partialorder %v2271, 0.0
        %vm2383 = vcmp.ge.f32.partialorder %v2273, 0.0
        %vm2384 = vcmp.ge.f32.partialorder %v2370, 0.0
        %v2385 = vmul.f32 %v2257, 0.1
        %v2386 = vmul.f32 %v2259, 0.1
        %v2387 = vmul.f32 %v2359, 0.1
        %v2388 = vmul.f32 %v2261, 0.1
        %v2389 = vmul.f32 %v2263, 0.1
        %v2390 = vmul.f32 %v2362, 0.1
        %v2391 = vmul.f32 %v2267, 0.1
        %v2392 = vmul.f32 %v2269, 0.1
        %v2393 = vmul.f32 %v2367, 0.1
        %v2394 = vmul.f32 %v2271, 0.1
        %v2395 = vmul.f32 %v2273, 0.1
        %v2396 = vmul.f32 %v2370, 0.1
        %v2397 = vsel %vm2373, %v2257, %v2385
        %v2398 = vsel %vm2374, %v2259, %v2386
        %v2399 = vsel %vm2375, %v2359, %v2387
        %v2400 = vsel %vm2376, %v2261, %v2388
        %v2401 = vsel %vm2377, %v2263, %v2389
        %v2402 = vsel %vm2378, %v2362, %v2390
        %v2403 = vsel %vm2379, %v2267, %v2391
        %v2404 = vsel %vm2380, %v2269, %v2392
        %v2405 = vsel %vm2381, %v2367, %v2393
        %v2406 = vsel %vm2382, %v2271, %v2394
        %v2407 = vsel %vm2383, %v2273, %v2395
        %v2408 = vsel %vm2384, %v2370, %v2396
        %v2409 = vsel %vm1133, %v2397, 0.0
        %v2410 = vsel %vm1134, %v2398, 0.0
        %v2411 = vsel %vm1135, %v2399, 0.0
        %v2412 = vsel %vm1133, %v2400, 0.0
        %v2413 = vsel %vm1134, %v2401, 0.0
        %v2414 = vsel %vm1135, %v2402, 0.0
        %v2415 = vsel %vm1133, %v2403, 0.0
        %v2416 = vsel %vm1134, %v2404, 0.0
        %v2417 = vsel %vm1135, %v2405, 0.0
        %v2418 = vsel %vm1133, %v2406, 0.0
        %v2419 = vsel %vm1134, %v2407, 0.0
        %v2420 = vsel %vm1135, %v2408, 0.0
        %v2421 = vpack.c.bf16 %v2412, %v2409
        %v2422 = vpack.c.bf16 %v2413, %v2410
        %v2423 = vpack.c.bf16 %v2414, %v2411
        %v2424 = vpack.c.bf16 %v2418, %v2415
        %v2425 = vpack.c.bf16 %v2419, %v2416
        %v2426 = vpack.c.bf16 %v2420, %v2417
        %v2433 = vunpack.c.l.b16 %v2421
        %v2434 = vunpack.c.l.b16 %v2422
        %v2435 = vunpack.c.l.b16 %v2423
        %v2436 = vunpack.c.h.b16 %v2421
        %v2437 = vunpack.c.h.b16 %v2422
        %v2438 = vunpack.c.h.b16 %v2423
        %v2439 = vunpack.c.l.b16 %v2424
        %v2440 = vunpack.c.l.b16 %v2425
        %v2441 = vunpack.c.l.b16 %v2426
        %v2442 = vunpack.c.h.b16 %v2424
        %v2443 = vunpack.c.h.b16 %v2425
        %v2444 = vunpack.c.h.b16 %v2426
        %v2445 = vpack.c.b16 %v2434, %v2433
        %v2446 = vpack.c.b16 %v2435, %v2435
        %v2447 = vpack.c.b16 %v2437, %v2436
        %v2448 = vpack.c.b16 %v2438, %v2438
        %v2449 = vpack.c.b16 %v2440, %v2439
        %v2450 = vpack.c.b16 %v2441, %v2441
        %v2451 = vpack.c.b16 %v2443, %v2442
        %v2452 = vpack.c.b16 %v2444, %v2444
        %2461 = vst [vmem:[#allocation2 + $0x4] sm:$0xff] %v2445
        %2462 = vst.msk [vmem:[#allocation2 + $0xc] sm:$0xf] %vm562, %v2446
        %2463 = vst [vmem:[#allocation2 + $0x14] sm:$0xff] %v2447
        %2464 = vst.msk [vmem:[#allocation2 + $0x1c] sm:$0xf] %vm562, %v2448
        %2465 = vst [vmem:[#allocation2 + $0x24] sm:$0xff] %v2449
        %2466 = vst.msk [vmem:[#allocation2 + $0x2c] sm:$0xf] %vm562, %v2450
        %2467 = vst [vmem:[#allocation2 + $0x34] sm:$0xff] %v2451
        %2468 = vst.msk [vmem:[#allocation2 + $0x3c] sm:$0xf] %vm562, %v2452
        %v2469 = vld [vmem:[#allocation2] sm:$0xff]
        %v2470 = vld [vmem:[#allocation2 + $0x8] sm:$0xff]
        %v2471 = vld [vmem:[#allocation2 + $0x10] sm:$0xff]
        %v2472 = vld [vmem:[#allocation2 + $0x18] sm:$0xff]
        %v2473 = vld [vmem:[#allocation2 + $0x20] sm:$0xff]
        %v2474 = vld [vmem:[#allocation2 + $0x28] sm:$0xff]
        %v2475 = vld [vmem:[#allocation2 + $0x30] sm:$0xff]
        %v2476 = vld [vmem:[#allocation2 + $0x38] sm:$0xff]
        %2485 = vrot.lane.b32.xlu0 %v2469, 19
        %v2486 = vpop.permute.xlu0 %2485
        %2487 = vrot.lane.b32.xlu0 %v2470, 19
        %v2488 = vpop.permute.xlu0 %2487
        %2489 = vrot.lane.b32.xlu0 %v2471, 19
        %v2490 = vpop.permute.xlu0 %2489
        %2491 = vrot.lane.b32.xlu0 %v2472, 19
        %v2492 = vpop.permute.xlu0 %2491
        %2493 = vrot.lane.b32.xlu0 %v2473, 19
        %v2494 = vpop.permute.xlu0 %2493
        %2495 = vrot.lane.b32.xlu0 %v2474, 19
        %v2496 = vpop.permute.xlu0 %2495
        %2497 = vrot.lane.b32.xlu0 %v2475, 19
        %v2498 = vpop.permute.xlu0 %2497
        %2499 = vrot.lane.b32.xlu0 %v2476, 19
        %v2500 = vpop.permute.xlu0 %2499
        %v2501 = vrot.slane %v2486, 4
        %v2502 = vrot.slane %v2488, 4
        %v2503 = vrot.slane %v2490, 4
        %v2504 = vrot.slane %v2492, 4
        %v2505 = vrot.slane %v2494, 4
        %v2506 = vrot.slane %v2496, 4
        %v2507 = vrot.slane %v2498, 4
        %v2508 = vrot.slane %v2500, 4
        %v2509 = vsel %vm549, %v2501, %v2502
        %v2510 = vsel %vm551, %v2486, %v2509
        %v2511 = vsel %vm551, %v2488, %v2502
        %v2512 = vsel %vm549, %v2503, %v2504
        %v2513 = vsel %vm551, %v2490, %v2512
        %v2514 = vsel %vm551, %v2492, %v2504
        %v2515 = vsel %vm549, %v2505, %v2506
        %v2516 = vsel %vm551, %v2494, %v2515
        %v2517 = vsel %vm551, %v2496, %v2506
        %v2518 = vsel %vm549, %v2507, %v2508
        %v2519 = vsel %vm551, %v2498, %v2518
        %v2520 = vsel %vm551, %v2500, %v2508
        %2529 = vst [vmem:[#allocation3] sm:$0xff] %v2510
        %2530 = vst.msk [vmem:[#allocation3 + $0x8] sm:$0xf] %vm562, %v2511
        %2531 = vst [vmem:[#allocation3 + $0xc] sm:$0xff] %v2513
        %2532 = vst.msk [vmem:[#allocation3 + $0x14] sm:$0xf] %vm562, %v2514
        %2533 = vst [vmem:[#allocation3 + $0x18] sm:$0xff] %v2516
        %2534 = vst.msk [vmem:[#allocation3 + $0x20] sm:$0xf] %vm562, %v2517
        %2535 = vst [vmem:[#allocation3 + $0x24] sm:$0xff] %v2519
        %2536 = vst.msk [vmem:[#allocation3 + $0x2c] sm:$0xf] %vm562, %v2520
        %v2537 = vld [vmem:[#allocation2] sm:$0xff]
        %v2538 = vld [vmem:[#allocation2 + $0x8] sm:$0xff]
        %v2539 = vld [vmem:[#allocation2 + $0x10] sm:$0xff]
        %v2540 = vld [vmem:[#allocation2 + $0x18] sm:$0xff]
        %v2541 = vld [vmem:[#allocation2 + $0x20] sm:$0xff]
        %v2542 = vld [vmem:[#allocation2 + $0x28] sm:$0xff]
        %v2543 = vld [vmem:[#allocation2 + $0x30] sm:$0xff]
        %v2544 = vld [vmem:[#allocation2 + $0x38] sm:$0xff]
        %2553 = vrot.lane.b32.xlu0 %v2537, 18
        %v2554 = vpop.permute.xlu0 %2553
        %2555 = vrot.lane.b32.xlu0 %v2538, 18
        %v2556 = vpop.permute.xlu0 %2555
        %2557 = vrot.lane.b32.xlu0 %v2539, 18
        %v2558 = vpop.permute.xlu0 %2557
        %2559 = vrot.lane.b32.xlu0 %v2540, 18
        %v2560 = vpop.permute.xlu0 %2559
        %2561 = vrot.lane.b32.xlu0 %v2541, 18
        %v2562 = vpop.permute.xlu0 %2561
        %2563 = vrot.lane.b32.xlu0 %v2542, 18
        %v2564 = vpop.permute.xlu0 %2563
        %2565 = vrot.lane.b32.xlu0 %v2543, 18
        %v2566 = vpop.permute.xlu0 %2565
        %2567 = vrot.lane.b32.xlu0 %v2544, 18
        %v2568 = vpop.permute.xlu0 %2567
        %v2569 = vrot.slane %v2554, 4
        %v2570 = vrot.slane %v2556, 4
        %v2571 = vrot.slane %v2558, 4
        %v2572 = vrot.slane %v2560, 4
        %v2573 = vrot.slane %v2562, 4
        %v2574 = vrot.slane %v2564, 4
        %v2575 = vrot.slane %v2566, 4
        %v2576 = vrot.slane %v2568, 4
        %v2577 = vsel %vm549, %v2569, %v2570
        %v2578 = vsel %vm579, %v2554, %v2577
        %v2579 = vsel %vm579, %v2556, %v2570
        %v2580 = vsel %vm549, %v2571, %v2572
        %v2581 = vsel %vm579, %v2558, %v2580
        %v2582 = vsel %vm579, %v2560, %v2572
        %v2583 = vsel %vm549, %v2573, %v2574
        %v2584 = vsel %vm579, %v2562, %v2583
        %v2585 = vsel %vm579, %v2564, %v2574
        %v2586 = vsel %vm549, %v2575, %v2576
        %v2587 = vsel %vm579, %v2566, %v2586
        %v2588 = vsel %vm579, %v2568, %v2576
        %2597 = vst [vmem:[#allocation3 + $0x30] sm:$0xff] %v2578
        %2598 = vst.msk [vmem:[#allocation3 + $0x38] sm:$0xf] %vm562, %v2579
        %2599 = vst [vmem:[#allocation3 + $0x3c] sm:$0xff] %v2581
        %2600 = vst.msk [vmem:[#allocation3 + $0x44] sm:$0xf] %vm562, %v2582
        %2601 = vst [vmem:[#allocation3 + $0x48] sm:$0xff] %v2584
        %2602 = vst.msk [vmem:[#allocation3 + $0x50] sm:$0xf] %vm562, %v2585
        %2603 = vst [vmem:[#allocation3 + $0x54] sm:$0xff] %v2587
        %2604 = vst.msk [vmem:[#allocation3 + $0x5c] sm:$0xf] %vm562, %v2588
        %v2605 = vld [vmem:[#allocation2] sm:$0xff]
        %v2606 = vld [vmem:[#allocation2 + $0x8] sm:$0xff]
        %v2607 = vld [vmem:[#allocation2 + $0x10] sm:$0xff]
        %v2608 = vld [vmem:[#allocation2 + $0x18] sm:$0xff]
        %v2609 = vld [vmem:[#allocation2 + $0x20] sm:$0xff]
        %v2610 = vld [vmem:[#allocation2 + $0x28] sm:$0xff]
        %v2611 = vld [vmem:[#allocation2 + $0x30] sm:$0xff]
        %v2612 = vld [vmem:[#allocation2 + $0x38] sm:$0xff]
        %2621 = vrot.lane.b32.xlu0 %v2605, 17
        %v2622 = vpop.permute.xlu0 %2621
        %2623 = vrot.lane.b32.xlu0 %v2606, 17
        %v2624 = vpop.permute.xlu0 %2623
        %2625 = vrot.lane.b32.xlu0 %v2607, 17
        %v2626 = vpop.permute.xlu0 %2625
        %2627 = vrot.lane.b32.xlu0 %v2608, 17
        %v2628 = vpop.permute.xlu0 %2627
        %2629 = vrot.lane.b32.xlu0 %v2609, 17
        %v2630 = vpop.permute.xlu0 %2629
        %2631 = vrot.lane.b32.xlu0 %v2610, 17
        %v2632 = vpop.permute.xlu0 %2631
        %2633 = vrot.lane.b32.xlu0 %v2611, 17
        %v2634 = vpop.permute.xlu0 %2633
        %2635 = vrot.lane.b32.xlu0 %v2612, 17
        %v2636 = vpop.permute.xlu0 %2635
        %v2637 = vrot.slane %v2622, 4
        %v2638 = vrot.slane %v2624, 4
        %v2639 = vrot.slane %v2626, 4
        %v2640 = vrot.slane %v2628, 4
        %v2641 = vrot.slane %v2630, 4
        %v2642 = vrot.slane %v2632, 4
        %v2643 = vrot.slane %v2634, 4
        %v2644 = vrot.slane %v2636, 4
        %v2645 = vsel %vm549, %v2637, %v2638
        %v2646 = vsel %vm606, %v2622, %v2645
        %v2647 = vsel %vm606, %v2624, %v2638
        %v2648 = vsel %vm549, %v2639, %v2640
        %v2649 = vsel %vm606, %v2626, %v2648
        %v2650 = vsel %vm606, %v2628, %v2640
        %v2651 = vsel %vm549, %v2641, %v2642
        %v2652 = vsel %vm606, %v2630, %v2651
        %v2653 = vsel %vm606, %v2632, %v2642
        %v2654 = vsel %vm549, %v2643, %v2644
        %v2655 = vsel %vm606, %v2634, %v2654
        %v2656 = vsel %vm606, %v2636, %v2644
        %2665 = vst [vmem:[#allocation3 + $0x60] sm:$0xff] %v2646
        %2666 = vst.msk [vmem:[#allocation3 + $0x68] sm:$0xf] %vm562, %v2647
        %2667 = vst [vmem:[#allocation3 + $0x6c] sm:$0xff] %v2649
        %2668 = vst.msk [vmem:[#allocation3 + $0x74] sm:$0xf] %vm562, %v2650
        %2669 = vst [vmem:[#allocation3 + $0x78] sm:$0xff] %v2652
        %2670 = vst.msk [vmem:[#allocation3 + $0x80] sm:$0xf] %vm562, %v2653
        %2671 = vst [vmem:[#allocation3 + $0x84] sm:$0xff] %v2655
        %2672 = vst.msk [vmem:[#allocation3 + $0x8c] sm:$0xf] %vm562, %v2656
        %v2673 = vld [vmem:[#allocation2] sm:$0xff]
        %v2674 = vld [vmem:[#allocation2 + $0x8] sm:$0xff]
        %v2675 = vld [vmem:[#allocation2 + $0x10] sm:$0xff]
        %v2676 = vld [vmem:[#allocation2 + $0x18] sm:$0xff]
        %v2677 = vld [vmem:[#allocation2 + $0x20] sm:$0xff]
        %v2678 = vld [vmem:[#allocation2 + $0x28] sm:$0xff]
        %v2679 = vld [vmem:[#allocation2 + $0x30] sm:$0xff]
        %v2680 = vld [vmem:[#allocation2 + $0x38] sm:$0xff]
        %2689 = vrot.lane.b32.xlu0 %v2673, 1
        %v2690 = vpop.permute.xlu0 %2689
        %2691 = vrot.lane.b32.xlu0 %v2674, 1
        %v2692 = vpop.permute.xlu0 %2691
        %2693 = vrot.lane.b32.xlu0 %v2675, 1
        %v2694 = vpop.permute.xlu0 %2693
        %2695 = vrot.lane.b32.xlu0 %v2676, 1
        %v2696 = vpop.permute.xlu0 %2695
        %2697 = vrot.lane.b32.xlu0 %v2677, 1
        %v2698 = vpop.permute.xlu0 %2697
        %2699 = vrot.lane.b32.xlu0 %v2678, 1
        %v2700 = vpop.permute.xlu0 %2699
        %2701 = vrot.lane.b32.xlu0 %v2679, 1
        %v2702 = vpop.permute.xlu0 %2701
        %2703 = vrot.lane.b32.xlu0 %v2680, 1
        %v2704 = vpop.permute.xlu0 %2703
        %v2705 = vrot.slane %v2690, 4
        %v2706 = vrot.slane %v2692, 4
        %v2707 = vrot.slane %v2694, 4
        %v2708 = vrot.slane %v2696, 4
        %v2709 = vrot.slane %v2698, 4
        %v2710 = vrot.slane %v2700, 4
        %v2711 = vrot.slane %v2702, 4
        %v2712 = vrot.slane %v2704, 4
        %v2713 = vsel %vm549, %v2705, %v2706
        %v2714 = vsel %vm633, %v2690, %v2713
        %v2715 = vsel %vm633, %v2692, %v2706
        %v2716 = vsel %vm549, %v2707, %v2708
        %v2717 = vsel %vm633, %v2694, %v2716
        %v2718 = vsel %vm633, %v2696, %v2708
        %v2719 = vsel %vm549, %v2709, %v2710
        %v2720 = vsel %vm633, %v2698, %v2719
        %v2721 = vsel %vm633, %v2700, %v2710
        %v2722 = vsel %vm549, %v2711, %v2712
        %v2723 = vsel %vm633, %v2702, %v2722
        %v2724 = vsel %vm633, %v2704, %v2712
        %2733 = vst [vmem:[#allocation3 + $0x90] sm:$0xff] %v2714
        %2734 = vst.msk [vmem:[#allocation3 + $0x98] sm:$0xf] %vm562, %v2715
        %2735 = vst [vmem:[#allocation3 + $0x9c] sm:$0xff] %v2717
        %2736 = vst.msk [vmem:[#allocation3 + $0xa4] sm:$0xf] %vm562, %v2718
        %2737 = vst [vmem:[#allocation3 + $0xa8] sm:$0xff] %v2720
        %2738 = vst.msk [vmem:[#allocation3 + $0xb0] sm:$0xf] %vm562, %v2721
        %2739 = vst [vmem:[#allocation3 + $0xb4] sm:$0xff] %v2723
        %2740 = vst.msk [vmem:[#allocation3 + $0xbc] sm:$0xf] %vm562, %v2724
        %v2741 = vld [vmem:[#allocation2 + $0x4] sm:$0xff]
        %v2742 = vld [vmem:[#allocation2 + $0xc] sm:$0xf]
        %v2743 = vld [vmem:[#allocation2 + $0x14] sm:$0xff]
        %v2744 = vld [vmem:[#allocation2 + $0x1c] sm:$0xf]
        %v2745 = vld [vmem:[#allocation2 + $0x24] sm:$0xff]
        %v2746 = vld [vmem:[#allocation2 + $0x2c] sm:$0xf]
        %v2747 = vld [vmem:[#allocation2 + $0x34] sm:$0xff]
        %v2748 = vld [vmem:[#allocation2 + $0x3c] sm:$0xf]
        %2749 = vst [vmem:[#allocation3 + $0xc0] sm:$0xff] %v2741
        %2750 = vst.msk [vmem:[#allocation3 + $0xc8] sm:$0xf] %vm562, %v2742
        %2751 = vst [vmem:[#allocation3 + $0xcc] sm:$0xff] %v2743
        %2752 = vst.msk [vmem:[#allocation3 + $0xd4] sm:$0xf] %vm562, %v2744
        %2753 = vst [vmem:[#allocation3 + $0xd8] sm:$0xff] %v2745
        %2754 = vst.msk [vmem:[#allocation3 + $0xe0] sm:$0xf] %vm562, %v2746
        %2755 = vst [vmem:[#allocation3 + $0xe4] sm:$0xff] %v2747
        %2756 = vst.msk [vmem:[#allocation3 + $0xec] sm:$0xf] %vm562, %v2748
        %v2757 = vld [vmem:[#allocation2 + $0x4] sm:$0xff]
        %v2758 = vld [vmem:[#allocation2 + $0xc] sm:$0xf]
        %v2759 = vld [vmem:[#allocation2 + $0x14] sm:$0xff]
        %v2760 = vld [vmem:[#allocation2 + $0x1c] sm:$0xf]
        %v2761 = vld [vmem:[#allocation2 + $0x24] sm:$0xff]
        %v2762 = vld [vmem:[#allocation2 + $0x2c] sm:$0xf]
        %v2763 = vld [vmem:[#allocation2 + $0x34] sm:$0xff]
        %v2764 = vld [vmem:[#allocation2 + $0x3c] sm:$0xf]
        %2773 = vrot.lane.b32.xlu0 %v2757, 127
        %v2774 = vpop.permute.xlu0 %2773
        %2775 = vrot.lane.b32.xlu0 %v2758, 127
        %v2776 = vpop.permute.xlu0 %2775
        %2777 = vrot.lane.b32.xlu0 %v2759, 127
        %v2778 = vpop.permute.xlu0 %2777
        %2779 = vrot.lane.b32.xlu0 %v2760, 127
        %v2780 = vpop.permute.xlu0 %2779
        %2781 = vrot.lane.b32.xlu0 %v2761, 127
        %v2782 = vpop.permute.xlu0 %2781
        %2783 = vrot.lane.b32.xlu0 %v2762, 127
        %v2784 = vpop.permute.xlu0 %2783
        %2785 = vrot.lane.b32.xlu0 %v2763, 127
        %v2786 = vpop.permute.xlu0 %2785
        %2787 = vrot.lane.b32.xlu0 %v2764, 127
        %v2788 = vpop.permute.xlu0 %2787
        %v2789 = vrot.slane %v2774, 4
        %v2790 = vrot.slane %v2776, 4
        %v2791 = vrot.slane %v2778, 4
        %v2792 = vrot.slane %v2780, 4
        %v2793 = vrot.slane %v2782, 4
        %v2794 = vrot.slane %v2784, 4
        %v2795 = vrot.slane %v2786, 4
        %v2796 = vrot.slane %v2788, 4
        %v2797 = vsel %vm549, %v2789, %v2790
        %v2798 = vsel %vm672, %v2774, %v2797
        %v2799 = vsel %vm549, %v2791, %v2792
        %v2800 = vsel %vm672, %v2778, %v2799
        %v2801 = vsel %vm549, %v2793, %v2794
        %v2802 = vsel %vm672, %v2782, %v2801
        %v2803 = vsel %vm549, %v2795, %v2796
        %v2804 = vsel %vm672, %v2786, %v2803
        %2813 = vst [vmem:[#allocation3 + $0xf0] sm:$0xff] %v2798
        %2814 = vst.msk [vmem:[#allocation3 + $0xf8] sm:$0xf] %vm562, %v2776
        %2815 = vst [vmem:[#allocation3 + $0xfc] sm:$0xff] %v2800
        %2816 = vst.msk [vmem:[#allocation3 + $0x104] sm:$0xf] %vm562, %v2780
        %2817 = vst [vmem:[#allocation3 + $0x108] sm:$0xff] %v2802
        %2818 = vst.msk [vmem:[#allocation3 + $0x110] sm:$0xf] %vm562, %v2784
        %2819 = vst [vmem:[#allocation3 + $0x114] sm:$0xff] %v2804
        %2820 = vst.msk [vmem:[#allocation3 + $0x11c] sm:$0xf] %vm562, %v2788
        %v2821 = vld [vmem:[#allocation2 + $0x4] sm:$0xff]
        %v2822 = vld [vmem:[#allocation2 + $0xc] sm:$0xf]
        %v2823 = vld [vmem:[#allocation2 + $0x14] sm:$0xff]
        %v2824 = vld [vmem:[#allocation2 + $0x1c] sm:$0xf]
        %v2825 = vld [vmem:[#allocation2 + $0x24] sm:$0xff]
        %v2826 = vld [vmem:[#allocation2 + $0x2c] sm:$0xf]
        %v2827 = vld [vmem:[#allocation2 + $0x34] sm:$0xff]
        %v2828 = vld [vmem:[#allocation2 + $0x3c] sm:$0xf]
        %2837 = vrot.lane.b32.xlu0 %v2821, 111
        %v2838 = vpop.permute.xlu0 %2837
        %2839 = vrot.lane.b32.xlu0 %v2822, 111
        %v2840 = vpop.permute.xlu0 %2839
        %2841 = vrot.lane.b32.xlu0 %v2823, 111
        %v2842 = vpop.permute.xlu0 %2841
        %2843 = vrot.lane.b32.xlu0 %v2824, 111
        %v2844 = vpop.permute.xlu0 %2843
        %2845 = vrot.lane.b32.xlu0 %v2825, 111
        %v2846 = vpop.permute.xlu0 %2845
        %2847 = vrot.lane.b32.xlu0 %v2826, 111
        %v2848 = vpop.permute.xlu0 %2847
        %2849 = vrot.lane.b32.xlu0 %v2827, 111
        %v2850 = vpop.permute.xlu0 %2849
        %2851 = vrot.lane.b32.xlu0 %v2828, 111
        %v2852 = vpop.permute.xlu0 %2851
        %v2853 = vrot.slane %v2838, 4
        %v2854 = vrot.slane %v2840, 4
        %v2855 = vrot.slane %v2842, 4
        %v2856 = vrot.slane %v2844, 4
        %v2857 = vrot.slane %v2846, 4
        %v2858 = vrot.slane %v2848, 4
        %v2859 = vrot.slane %v2850, 4
        %v2860 = vrot.slane %v2852, 4
        %v2861 = vsel %vm549, %v2853, %v2854
        %v2862 = vsel %vm697, %v2838, %v2861
        %v2863 = vsel %vm549, %v2855, %v2856
        %v2864 = vsel %vm697, %v2842, %v2863
        %v2865 = vsel %vm549, %v2857, %v2858
        %v2866 = vsel %vm697, %v2846, %v2865
        %v2867 = vsel %vm549, %v2859, %v2860
        %v2868 = vsel %vm697, %v2850, %v2867
        %2877 = vst [vmem:[#allocation3 + $0x120] sm:$0xff] %v2862
        %2878 = vst.msk [vmem:[#allocation3 + $0x128] sm:$0xf] %vm562, %v2840
        %2879 = vst [vmem:[#allocation3 + $0x12c] sm:$0xff] %v2864
        %2880 = vst.msk [vmem:[#allocation3 + $0x134] sm:$0xf] %vm562, %v2844
        %2881 = vst [vmem:[#allocation3 + $0x138] sm:$0xff] %v2866
        %2882 = vst.msk [vmem:[#allocation3 + $0x140] sm:$0xf] %vm562, %v2848
        %2883 = vst [vmem:[#allocation3 + $0x144] sm:$0xff] %v2868
        %2884 = vst.msk [vmem:[#allocation3 + $0x14c] sm:$0xf] %vm562, %v2852
        %v2885 = vld [vmem:[#allocation2 + $0x4] sm:$0xff]
        %v2886 = vld [vmem:[#allocation2 + $0xc] sm:$0xf]
        %v2887 = vld [vmem:[#allocation2 + $0x14] sm:$0xff]
        %v2888 = vld [vmem:[#allocation2 + $0x1c] sm:$0xf]
        %v2889 = vld [vmem:[#allocation2 + $0x24] sm:$0xff]
        %v2890 = vld [vmem:[#allocation2 + $0x2c] sm:$0xf]
        %v2891 = vld [vmem:[#allocation2 + $0x34] sm:$0xff]
        %v2892 = vld [vmem:[#allocation2 + $0x3c] sm:$0xf]
        %2901 = vrot.lane.b32.xlu0 %v2885, 110
        %v2902 = vpop.permute.xlu0 %2901
        %2903 = vrot.lane.b32.xlu0 %v2886, 110
        %v2904 = vpop.permute.xlu0 %2903
        %2905 = vrot.lane.b32.xlu0 %v2887, 110
        %v2906 = vpop.permute.xlu0 %2905
        %2907 = vrot.lane.b32.xlu0 %v2888, 110
        %v2908 = vpop.permute.xlu0 %2907
        %2909 = vrot.lane.b32.xlu0 %v2889, 110
        %v2910 = vpop.permute.xlu0 %2909
        %2911 = vrot.lane.b32.xlu0 %v2890, 110
        %v2912 = vpop.permute.xlu0 %2911
        %2913 = vrot.lane.b32.xlu0 %v2891, 110
        %v2914 = vpop.permute.xlu0 %2913
        %2915 = vrot.lane.b32.xlu0 %v2892, 110
        %v2916 = vpop.permute.xlu0 %2915
        %v2917 = vrot.slane %v2902, 4
        %v2918 = vrot.slane %v2904, 4
        %v2919 = vrot.slane %v2906, 4
        %v2920 = vrot.slane %v2908, 4
        %v2921 = vrot.slane %v2910, 4
        %v2922 = vrot.slane %v2912, 4
        %v2923 = vrot.slane %v2914, 4
        %v2924 = vrot.slane %v2916, 4
        %v2925 = vsel %vm549, %v2917, %v2918
        %v2926 = vsel %vm722, %v2902, %v2925
        %v2927 = vsel %vm549, %v2919, %v2920
        %v2928 = vsel %vm722, %v2906, %v2927
        %v2929 = vsel %vm549, %v2921, %v2922
        %v2930 = vsel %vm722, %v2910, %v2929
        %v2931 = vsel %vm549, %v2923, %v2924
        %v2932 = vsel %vm722, %v2914, %v2931
        %2941 = vst [vmem:[#allocation3 + $0x150] sm:$0xff] %v2926
        %2942 = vst.msk [vmem:[#allocation3 + $0x158] sm:$0xf] %vm562, %v2904
        %2943 = vst [vmem:[#allocation3 + $0x15c] sm:$0xff] %v2928
        %2944 = vst.msk [vmem:[#allocation3 + $0x164] sm:$0xf] %vm562, %v2908
        %2945 = vst [vmem:[#allocation3 + $0x168] sm:$0xff] %v2930
        %2946 = vst.msk [vmem:[#allocation3 + $0x170] sm:$0xf] %vm562, %v2912
        %2947 = vst [vmem:[#allocation3 + $0x174] sm:$0xff] %v2932
        %2948 = vst.msk [vmem:[#allocation3 + $0x17c] sm:$0xf] %vm562, %v2916
        %v2949 = vld [vmem:[#allocation2 + $0x4] sm:$0xff]
        %v2950 = vld [vmem:[#allocation2 + $0xc] sm:$0xf]
        %v2951 = vld [vmem:[#allocation2 + $0x14] sm:$0xff]
        %v2952 = vld [vmem:[#allocation2 + $0x1c] sm:$0xf]
        %v2953 = vld [vmem:[#allocation2 + $0x24] sm:$0xff]
        %v2954 = vld [vmem:[#allocation2 + $0x2c] sm:$0xf]
        %v2955 = vld [vmem:[#allocation2 + $0x34] sm:$0xff]
        %v2956 = vld [vmem:[#allocation2 + $0x3c] sm:$0xf]
        %2965 = vrot.lane.b32.xlu0 %v2949, 109
        %v2966 = vpop.permute.xlu0 %2965
        %2967 = vrot.lane.b32.xlu0 %v2950, 109
        %v2968 = vpop.permute.xlu0 %2967
        %2969 = vrot.lane.b32.xlu0 %v2951, 109
        %v2970 = vpop.permute.xlu0 %2969
        %2971 = vrot.lane.b32.xlu0 %v2952, 109
        %v2972 = vpop.permute.xlu0 %2971
        %2973 = vrot.lane.b32.xlu0 %v2953, 109
        %v2974 = vpop.permute.xlu0 %2973
        %2975 = vrot.lane.b32.xlu0 %v2954, 109
        %v2976 = vpop.permute.xlu0 %2975
        %2977 = vrot.lane.b32.xlu0 %v2955, 109
        %v2978 = vpop.permute.xlu0 %2977
        %2979 = vrot.lane.b32.xlu0 %v2956, 109
        %v2980 = vpop.permute.xlu0 %2979
        %v2981 = vrot.slane %v2966, 4
        %v2982 = vrot.slane %v2968, 4
        %v2983 = vrot.slane %v2970, 4
        %v2984 = vrot.slane %v2972, 4
        %v2985 = vrot.slane %v2974, 4
        %v2986 = vrot.slane %v2976, 4
        %v2987 = vrot.slane %v2978, 4
        %v2988 = vrot.slane %v2980, 4
        %v2989 = vsel %vm549, %v2981, %v2982
        %v2990 = vsel %vm747, %v2966, %v2989
        %v2991 = vsel %vm549, %v2983, %v2984
        %v2992 = vsel %vm747, %v2970, %v2991
        %v2993 = vsel %vm549, %v2985, %v2986
        %v2994 = vsel %vm747, %v2974, %v2993
        %v2995 = vsel %vm549, %v2987, %v2988
        %v2996 = vsel %vm747, %v2978, %v2995
        %3005 = vst [vmem:[#allocation3 + $0x180] sm:$0xff] %v2990
        %3006 = vst.msk [vmem:[#allocation3 + $0x188] sm:$0xf] %vm562, %v2968
        %3007 = vst [vmem:[#allocation3 + $0x18c] sm:$0xff] %v2992
        %3008 = vst.msk [vmem:[#allocation3 + $0x194] sm:$0xf] %vm562, %v2972
        %3009 = vst [vmem:[#allocation3 + $0x198] sm:$0xff] %v2994
        %3010 = vst.msk [vmem:[#allocation3 + $0x1a0] sm:$0xf] %vm562, %v2976
        %3011 = vst [vmem:[#allocation3 + $0x1a4] sm:$0xff] %v2996
        %3012 = vst.msk [vmem:[#allocation3 + $0x1ac] sm:$0xf] %vm562, %v2980
        %v3013 = vld [vmem:[#allocation9] sm:$0xff]
        %v3014 = vld [vmem:[#allocation9 + $0x8] sm:$0xf]
        %v3015 = vld [vmem:[#allocation9 + $0xc] sm:$0xff]
        %v3016 = vld [vmem:[#allocation9 + $0x14] sm:$0xf]
        %v3017 = vld [vmem:[#allocation9 + $0x18] sm:$0xff]
        %v3018 = vld [vmem:[#allocation9 + $0x20] sm:$0xf]
        %v3019 = vld [vmem:[#allocation9 + $0x24] sm:$0xff]
        %v3020 = vld [vmem:[#allocation9 + $0x2c] sm:$0xf]
        %v3021 = vld [vmem:[#allocation3] sm:$0xff]
        %v3022 = vld [vmem:[#allocation3 + $0x8] sm:$0xf]
        %v3023 = vld [vmem:[#allocation3 + $0xc] sm:$0xff]
        %v3024 = vld [vmem:[#allocation3 + $0x14] sm:$0xf]
        %v3025 = vld [vmem:[#allocation3 + $0x18] sm:$0xff]
        %v3026 = vld [vmem:[#allocation3 + $0x20] sm:$0xf]
        %v3027 = vld [vmem:[#allocation3 + $0x24] sm:$0xff]
        %v3028 = vld [vmem:[#allocation3 + $0x2c] sm:$0xf]
        %v3029 = vld [vmem:[#allocation3 + $0x30] sm:$0xff]
        %v3030 = vld [vmem:[#allocation3 + $0x38] sm:$0xf]
        %v3031 = vld [vmem:[#allocation3 + $0x3c] sm:$0xff]
        %v3032 = vld [vmem:[#allocation3 + $0x44] sm:$0xf]
        %v3033 = vld [vmem:[#allocation3 + $0x48] sm:$0xff]
        %v3034 = vld [vmem:[#allocation3 + $0x50] sm:$0xf]
        %v3035 = vld [vmem:[#allocation3 + $0x54] sm:$0xff]
        %v3036 = vld [vmem:[#allocation3 + $0x5c] sm:$0xf]
        %v3037 = vld [vmem:[#allocation3 + $0x60] sm:$0xff]
        %v3038 = vld [vmem:[#allocation3 + $0x68] sm:$0xf]
        %v3039 = vld [vmem:[#allocation3 + $0x6c] sm:$0xff]
        %v3040 = vld [vmem:[#allocation3 + $0x74] sm:$0xf]
        %v3041 = vld [vmem:[#allocation3 + $0x78] sm:$0xff]
        %v3042 = vld [vmem:[#allocation3 + $0x80] sm:$0xf]
        %v3043 = vld [vmem:[#allocation3 + $0x84] sm:$0xff]
        %v3044 = vld [vmem:[#allocation3 + $0x8c] sm:$0xf]
        %v3045 = vld [vmem:[#allocation3 + $0x90] sm:$0xff]
        %v3046 = vld [vmem:[#allocation3 + $0x98] sm:$0xf]
        %v3047 = vld [vmem:[#allocation3 + $0x9c] sm:$0xff]
        %v3048 = vld [vmem:[#allocation3 + $0xa4] sm:$0xf]
        %v3049 = vld [vmem:[#allocation3 + $0xa8] sm:$0xff]
        %v3050 = vld [vmem:[#allocation3 + $0xb0] sm:$0xf]
        %v3051 = vld [vmem:[#allocation3 + $0xb4] sm:$0xff]
        %v3052 = vld [vmem:[#allocation3 + $0xbc] sm:$0xf]
        %v3053 = vld [vmem:[#allocation3 + $0xc0] sm:$0xff]
        %v3054 = vld [vmem:[#allocation3 + $0xc8] sm:$0xf]
        %v3055 = vld [vmem:[#allocation3 + $0xcc] sm:$0xff]
        %v3056 = vld [vmem:[#allocation3 + $0xd4] sm:$0xf]
        %v3057 = vld [vmem:[#allocation3 + $0xd8] sm:$0xff]
        %v3058 = vld [vmem:[#allocation3 + $0xe0] sm:$0xf]
        %v3059 = vld [vmem:[#allocation3 + $0xe4] sm:$0xff]
        %v3060 = vld [vmem:[#allocation3 + $0xec] sm:$0xf]
        %v3061 = vld [vmem:[#allocation3 + $0xf0] sm:$0xff]
        %v3062 = vld [vmem:[#allocation3 + $0xf8] sm:$0xf]
        %v3063 = vld [vmem:[#allocation3 + $0xfc] sm:$0xff]
        %v3064 = vld [vmem:[#allocation3 + $0x104] sm:$0xf]
        %v3065 = vld [vmem:[#allocation3 + $0x108] sm:$0xff]
        %v3066 = vld [vmem:[#allocation3 + $0x110] sm:$0xf]
        %v3067 = vld [vmem:[#allocation3 + $0x114] sm:$0xff]
        %v3068 = vld [vmem:[#allocation3 + $0x11c] sm:$0xf]
        %v3069 = vld [vmem:[#allocation3 + $0x120] sm:$0xff]
        %v3070 = vld [vmem:[#allocation3 + $0x128] sm:$0xf]
        %v3071 = vld [vmem:[#allocation3 + $0x12c] sm:$0xff]
        %v3072 = vld [vmem:[#allocation3 + $0x134] sm:$0xf]
        %v3073 = vld [vmem:[#allocation3 + $0x138] sm:$0xff]
        %v3074 = vld [vmem:[#allocation3 + $0x140] sm:$0xf]
        %v3075 = vld [vmem:[#allocation3 + $0x144] sm:$0xff]
        %v3076 = vld [vmem:[#allocation3 + $0x14c] sm:$0xf]
        %v3077 = vld [vmem:[#allocation3 + $0x150] sm:$0xff]
        %v3078 = vld [vmem:[#allocation3 + $0x158] sm:$0xf]
        %v3079 = vld [vmem:[#allocation3 + $0x15c] sm:$0xff]
        %v3080 = vld [vmem:[#allocation3 + $0x164] sm:$0xf]
        %v3081 = vld [vmem:[#allocation3 + $0x168] sm:$0xff]
        %v3082 = vld [vmem:[#allocation3 + $0x170] sm:$0xf]
        %v3083 = vld [vmem:[#allocation3 + $0x174] sm:$0xff]
        %v3084 = vld [vmem:[#allocation3 + $0x17c] sm:$0xf]
        %v3085 = vld [vmem:[#allocation3 + $0x180] sm:$0xff]
        %v3086 = vld [vmem:[#allocation3 + $0x188] sm:$0xf]
        %v3087 = vld [vmem:[#allocation3 + $0x18c] sm:$0xff]
        %v3088 = vld [vmem:[#allocation3 + $0x194] sm:$0xf]
        %v3089 = vld [vmem:[#allocation3 + $0x198] sm:$0xff]
        %v3090 = vld [vmem:[#allocation3 + $0x1a0] sm:$0xf]
        %v3091 = vld [vmem:[#allocation3 + $0x1a4] sm:$0xff]
        %v3092 = vld [vmem:[#allocation3 + $0x1ac] sm:$0xf]
        %v3093 = vld [vmem:[%s6] sm:$0xff]
        %v3094 = vld [vmem:[%s6 + $0x8] sm:$0xff]
        %v3095 = vld [vmem:[%s6 + $0x10] sm:$0xff]
        %v3096 = vld [vmem:[%s6 + $0x18] sm:$0xff]
        %3098 = vset.pattern.permute.xlu0 0
        %3099 = vperm.xlu0 %3098, %v3093
        %v3100 = vpop.permute.xlu0 %3099
        %3103 = vset.pattern.permute.xlu0 0
        %3104 = vperm.xlu0 %3103, %v3094
        %v3105 = vpop.permute.xlu0 %3104
        %3108 = vset.pattern.permute.xlu0 0
        %3109 = vperm.xlu0 %3108, %v3095
        %v3110 = vpop.permute.xlu0 %3109
        %3113 = vset.pattern.permute.xlu0 0
        %3114 = vperm.xlu0 %3113, %v3096
        %v3115 = vpop.permute.xlu0 %3114
        %v3125 = vunpack.c.l.b16 %v3013
        %v3126 = vunpack.c.h.b16 %v3013
        %v3127 = vunpack.c.l.b16 %v3014
        %v3128 = vunpack.c.l.b16 %v3015
        %v3129 = vunpack.c.h.b16 %v3015
        %v3130 = vunpack.c.l.b16 %v3016
        %v3131 = vunpack.c.l.b16 %v3017
        %v3132 = vunpack.c.h.b16 %v3017
        %v3133 = vunpack.c.l.b16 %v3018
        %v3134 = vunpack.c.l.b16 %v3019
        %v3135 = vunpack.c.h.b16 %v3019
        %v3136 = vunpack.c.l.b16 %v3020
        %v3137 = vpack.c.b16 %v3128, %v3125
        %v3138 = vpack.c.b16 %v3129, %v3126
        %v3139 = vpack.c.b16 %v3130, %v3127
        %v3140 = vpack.c.b16 %v3134, %v3131
        %v3141 = vpack.c.b16 %v3135, %v3132
        %v3142 = vpack.c.b16 %v3136, %v3133
        %v3219 = vunpack.c.l.b16 %v3021
        %v3220 = vunpack.c.h.b16 %v3021
        %v3221 = vunpack.c.l.b16 %v3022
        %v3222 = vunpack.c.l.b16 %v3023
        %v3223 = vunpack.c.h.b16 %v3023
        %v3224 = vunpack.c.l.b16 %v3024
        %v3225 = vunpack.c.l.b16 %v3025
        %v3226 = vunpack.c.h.b16 %v3025
        %v3227 = vunpack.c.l.b16 %v3026
        %v3228 = vunpack.c.l.b16 %v3027
        %v3229 = vunpack.c.h.b16 %v3027
        %v3230 = vunpack.c.l.b16 %v3028
        %v3231 = vunpack.c.l.b16 %v3029
        %v3232 = vunpack.c.h.b16 %v3029
        %v3233 = vunpack.c.l.b16 %v3030
        %v3234 = vunpack.c.l.b16 %v3031
        %v3235 = vunpack.c.h.b16 %v3031
        %v3236 = vunpack.c.l.b16 %v3032
        %v3237 = vunpack.c.l.b16 %v3033
        %v3238 = vunpack.c.h.b16 %v3033
        %v3239 = vunpack.c.l.b16 %v3034
        %v3240 = vunpack.c.l.b16 %v3035
        %v3241 = vunpack.c.h.b16 %v3035
        %v3242 = vunpack.c.l.b16 %v3036
        %v3243 = vunpack.c.l.b16 %v3037
        %v3244 = vunpack.c.h.b16 %v3037
        %v3245 = vunpack.c.l.b16 %v3038
        %v3246 = vunpack.c.l.b16 %v3039
        %v3247 = vunpack.c.h.b16 %v3039
        %v3248 = vunpack.c.l.b16 %v3040
        %v3249 = vunpack.c.l.b16 %v3041
        %v3250 = vunpack.c.h.b16 %v3041
        %v3251 = vunpack.c.l.b16 %v3042
        %v3252 = vunpack.c.l.b16 %v3043
        %v3253 = vunpack.c.h.b16 %v3043
        %v3254 = vunpack.c.l.b16 %v3044
        %v3255 = vunpack.c.l.b16 %v3045
        %v3256 = vunpack.c.h.b16 %v3045
        %v3257 = vunpack.c.l.b16 %v3046
        %v3258 = vunpack.c.l.b16 %v3047
        %v3259 = vunpack.c.h.b16 %v3047
        %v3260 = vunpack.c.l.b16 %v3048
        %v3261 = vunpack.c.l.b16 %v3049
        %v3262 = vunpack.c.h.b16 %v3049
        %v3263 = vunpack.c.l.b16 %v3050
        %v3264 = vunpack.c.l.b16 %v3051
        %v3265 = vunpack.c.h.b16 %v3051
        %v3266 = vunpack.c.l.b16 %v3052
        %v3267 = vunpack.c.l.b16 %v3053
        %v3268 = vunpack.c.h.b16 %v3053
        %v3269 = vunpack.c.l.b16 %v3054
        %v3270 = vunpack.c.l.b16 %v3055
        %v3271 = vunpack.c.h.b16 %v3055
        %v3272 = vunpack.c.l.b16 %v3056
        %v3273 = vunpack.c.l.b16 %v3057
        %v3274 = vunpack.c.h.b16 %v3057
        %v3275 = vunpack.c.l.b16 %v3058
        %v3276 = vunpack.c.l.b16 %v3059
        %v3277 = vunpack.c.h.b16 %v3059
        %v3278 = vunpack.c.l.b16 %v3060
        %v3279 = vunpack.c.l.b16 %v3061
        %v3280 = vunpack.c.h.b16 %v3061
        %v3281 = vunpack.c.l.b16 %v3062
        %v3282 = vunpack.c.l.b16 %v3063
        %v3283 = vunpack.c.h.b16 %v3063
        %v3284 = vunpack.c.l.b16 %v3064
        %v3285 = vunpack.c.l.b16 %v3065
        %v3286 = vunpack.c.h.b16 %v3065
        %v3287 = vunpack.c.l.b16 %v3066
        %v3288 = vunpack.c.l.b16 %v3067
        %v3289 = vunpack.c.h.b16 %v3067
        %v3290 = vunpack.c.l.b16 %v3068
        %v3291 = vunpack.c.l.b16 %v3069
        %v3292 = vunpack.c.h.b16 %v3069
        %v3293 = vunpack.c.l.b16 %v3070
        %v3294 = vunpack.c.l.b16 %v3071
        %v3295 = vunpack.c.h.b16 %v3071
        %v3296 = vunpack.c.l.b16 %v3072
        %v3297 = vunpack.c.l.b16 %v3073
        %v3298 = vunpack.c.h.b16 %v3073
        %v3299 = vunpack.c.l.b16 %v3074
        %v3300 = vunpack.c.l.b16 %v3075
        %v3301 = vunpack.c.h.b16 %v3075
        %v3302 = vunpack.c.l.b16 %v3076
        %v3303 = vunpack.c.l.b16 %v3077
        %v3304 = vunpack.c.h.b16 %v3077
        %v3305 = vunpack.c.l.b16 %v3078
        %v3306 = vunpack.c.l.b16 %v3079
        %v3307 = vunpack.c.h.b16 %v3079
        %v3308 = vunpack.c.l.b16 %v3080
        %v3309 = vunpack.c.l.b16 %v3081
        %v3310 = vunpack.c.h.b16 %v3081
        %v3311 = vunpack.c.l.b16 %v3082
        %v3312 = vunpack.c.l.b16 %v3083
        %v3313 = vunpack.c.h.b16 %v3083
        %v3314 = vunpack.c.l.b16 %v3084
        %v3315 = vunpack.c.l.b16 %v3085
        %v3316 = vunpack.c.h.b16 %v3085
        %v3317 = vunpack.c.l.b16 %v3086
        %v3318 = vunpack.c.l.b16 %v3087
        %v3319 = vunpack.c.h.b16 %v3087
        %v3320 = vunpack.c.l.b16 %v3088
        %v3321 = vunpack.c.l.b16 %v3089
        %v3322 = vunpack.c.h.b16 %v3089
        %v3323 = vunpack.c.l.b16 %v3090
        %v3324 = vunpack.c.l.b16 %v3091
        %v3325 = vunpack.c.h.b16 %v3091
        %v3326 = vunpack.c.l.b16 %v3092
        %v3327 = vpack.c.b16 %v3222, %v3219
        %v3328 = vpack.c.b16 %v3223, %v3220
        %v3329 = vpack.c.b16 %v3224, %v3221
        %v3330 = vpack.c.b16 %v3228, %v3225
        %v3331 = vpack.c.b16 %v3229, %v3226
        %v3332 = vpack.c.b16 %v3230, %v3227
        %v3333 = vpack.c.b16 %v3234, %v3231
        %v3334 = vpack.c.b16 %v3235, %v3232
        %v3335 = vpack.c.b16 %v3236, %v3233
        %v3336 = vpack.c.b16 %v3240, %v3237
        %v3337 = vpack.c.b16 %v3241, %v3238
        %v3338 = vpack.c.b16 %v3242, %v3239
        %v3339 = vpack.c.b16 %v3246, %v3243
        %v3340 = vpack.c.b16 %v3247, %v3244
        %v3341 = vpack.c.b16 %v3248, %v3245
        %v3342 = vpack.c.b16 %v3252, %v3249
        %v3343 = vpack.c.b16 %v3253, %v3250
        %v3344 = vpack.c.b16 %v3254, %v3251
        %v3345 = vpack.c.b16 %v3258, %v3255
        %v3346 = vpack.c.b16 %v3259, %v3256
        %v3347 = vpack.c.b16 %v3260, %v3257
        %v3348 = vpack.c.b16 %v3264, %v3261
        %v3349 = vpack.c.b16 %v3265, %v3262
        %v3350 = vpack.c.b16 %v3266, %v3263
        %v3351 = vpack.c.b16 %v3270, %v3267
        %v3352 = vpack.c.b16 %v3271, %v3268
        %v3353 = vpack.c.b16 %v3272, %v3269
        %v3354 = vpack.c.b16 %v3276, %v3273
        %v3355 = vpack.c.b16 %v3277, %v3274
        %v3356 = vpack.c.b16 %v3278, %v3275
        %v3357 = vpack.c.b16 %v3282, %v3279
        %v3358 = vpack.c.b16 %v3283, %v3280
        %v3359 = vpack.c.b16 %v3284, %v3281
        %v3360 = vpack.c.b16 %v3288, %v3285
        %v3361 = vpack.c.b16 %v3289, %v3286
        %v3362 = vpack.c.b16 %v3290, %v3287
        %v3363 = vpack.c.b16 %v3294, %v3291
        %v3364 = vpack.c.b16 %v3295, %v3292
        %v3365 = vpack.c.b16 %v3296, %v3293
        %v3366 = vpack.c.b16 %v3300, %v3297
        %v3367 = vpack.c.b16 %v3301, %v3298
        %v3368 = vpack.c.b16 %v3302, %v3299
        %v3369 = vpack.c.b16 %v3306, %v3303
        %v3370 = vpack.c.b16 %v3307, %v3304
        %v3371 = vpack.c.b16 %v3308, %v3305
        %v3372 = vpack.c.b16 %v3312, %v3309
        %v3373 = vpack.c.b16 %v3313, %v3310
        %v3374 = vpack.c.b16 %v3314, %v3311
        %v3375 = vpack.c.b16 %v3318, %v3315
        %v3376 = vpack.c.b16 %v3319, %v3316
        %v3377 = vpack.c.b16 %v3320, %v3317
        %v3378 = vpack.c.b16 %v3324, %v3321
        %v3379 = vpack.c.b16 %v3325, %v3322
        %v3380 = vpack.c.b16 %v3326, %v3323
        %v3436 = vsel %vm2162, %v3139, 0
        %v3439 = vsel %vm2162, %v3142, 0
        %3441 = vmatprep.subr.bf16.mxu0 %v3349
        %3442 = vmatpush1.bf16.msra.mxu0 %v3348
        %3443 = vmatprep.subr.bf16.mxu0 %v3346
        %3444 = vmatpush1.bf16.msra.mxu0 %v3345
        %3445 = vmatprep.subr.bf16.mxu0 %v3343
        %3446 = vmatpush1.bf16.msra.mxu0 %v3342
        %3447 = vmatprep.subr.bf16.mxu0 %v3340
        %3448 = vmatpush1.bf16.msra.mxu0 %v3339
        %3449 = vmatprep.subr.bf16.mxu0 %v3337
        %3450 = vmatpush1.bf16.msra.mxu0 %v3336
        %3451 = vmatprep.subr.bf16.mxu0 %v3334
        %3452 = vmatpush1.bf16.msra.mxu0 %v3333
        %3453 = vmatprep.subr.bf16.mxu0 %v3331
        %3454 = vmatpush1.bf16.msra.mxu0 %v3330
        %3455 = vmatprep.subr.bf16.mxu0 %v3328
        %3456 = vmatpush1.bf16.msra.mxu0 %v3327
        %3457 = vmatprep.subr.bf16.mxu0 %v3373
        %3458 = vmatpush2.bf16.msra.mxu0 %v3372
        %3459 = vmatprep.subr.bf16.mxu0 %v3370
        %3460 = vmatpush2.bf16.msra.mxu0 %v3369
        %3461 = vmatprep.subr.bf16.mxu0 %v3367
        %3462 = vmatpush2.bf16.msra.mxu0 %v3366
        %3463 = vmatprep.subr.bf16.mxu0 %v3364
        %3464 = vmatpush2.bf16.msra.mxu0 %v3363
        %3465 = vmatprep.subr.bf16.mxu0 %v3361
        %3466 = vmatpush2.bf16.msra.mxu0 %v3360
        %3467 = vmatprep.subr.bf16.mxu0 %v3358
        %3468 = vmatpush2.bf16.msra.mxu0 %v3357
        %3469 = vmatprep.subr.bf16.mxu0 %v3355
        %3470 = vmatpush2.bf16.msra.mxu0 %v3354
        %3471 = vmatprep.subr.bf16.mxu0 %v3352
        %3472 = vmatpush2.bf16.msra.mxu0 %v3351
        %3473 = vmatprep.mubr.bf16.mxu0 %v3138
        %3474 = vmatmul.mubr.bf16.gmra.mxu0 %v3137
        %v3475 = vpop.f32.mrf.mxu0
        %v3476 = vadd.f32 %v3100, %v3475
        %v3477 = vpop.f32.mrf.mxu0
        %v3478 = vadd.f32 %v3100, %v3477
        %v3479 = vpop.f32.mrf.mxu0
        %v3480 = vadd.f32 %v3105, %v3479
        %v3481 = vpop.f32.mrf.mxu0
        %v3482 = vadd.f32 %v3105, %v3481
        %3483 = vmatprep.mubr.bf16.mxu0 %v3141
        %3484 = vmatmul.mubr.bf16.gmra.mxu0 %v3140
        %v3485 = vpop.f32.mrf.mxu0
        %v3486 = vadd.f32 %v3110, %v3485
        %v3487 = vpop.f32.mrf.mxu0
        %v3488 = vadd.f32 %v3110, %v3487
        %v3489 = vpop.f32.mrf.mxu0
        %v3490 = vadd.f32 %v3115, %v3489
        %v3491 = vpop.f32.mrf.mxu0
        %v3492 = vadd.f32 %v3115, %v3491
        %3493 = vdwg.mxu0
        %3494 = vmatprep.subr.bf16.mxu0 0
        %3495 = vmatpush1.bf16.msra.mxu0 0
        %3496 = vmatprep.subr.bf16.mxu0 0
        %3497 = vmatpush1.bf16.msra.mxu0 0
        %3498 = vmatprep.subr.bf16.mxu0 0
        %3499 = vmatpush1.bf16.msra.mxu0 0
        %3500 = vmatprep.subr.bf16.mxu0 0
        %3501 = vmatpush1.bf16.msra.mxu0 0
        %3502 = vmatprep.subr.bf16.mxu0 0
        %3503 = vmatpush1.bf16.msra.mxu0 0
        %3504 = vmatprep.subr.bf16.mxu0 0
        %3505 = vmatpush1.bf16.msra.mxu0 0
        %3506 = vmatprep.subr.bf16.mxu0 %v3379
        %3507 = vmatpush1.bf16.msra.mxu0 %v3378
        %3508 = vmatprep.subr.bf16.mxu0 %v3376
        %3509 = vmatpush1.bf16.msra.mxu0 %v3375
        %3510 = vmatprep.subr.bf16.mxu0 0
        %3511 = vmatpush2.bf16.msra.mxu0 0
        %3512 = vmatprep.subr.bf16.mxu0 0
        %3513 = vmatpush2.bf16.msra.mxu0 0
        %3514 = vmatprep.subr.bf16.mxu0 0
        %3515 = vmatpush2.bf16.msra.mxu0 0
        %3516 = vmatprep.subr.bf16.mxu0 0
        %3517 = vmatpush2.bf16.msra.mxu0 0
        %3518 = vmatprep.subr.bf16.mxu0 0
        %3519 = vmatpush2.bf16.msra.mxu0 0
        %3520 = vmatprep.subr.bf16.mxu0 0
        %3521 = vmatpush2.bf16.msra.mxu0 0
        %3522 = vmatprep.subr.bf16.mxu0 0
        %3523 = vmatpush2.bf16.msra.mxu0 0
        %3524 = vmatprep.subr.bf16.mxu0 0
        %3525 = vmatpush2.bf16.msra.mxu0 0
        %3526 = vmatprep.mubr.bf16.mxu0 0
        %3527 = vmatmul.mubr.bf16.gmra.mxu0 %v3436
        %v3528 = vpop.f32.mrf.mxu0
        %v3529 = vadd.f32 %v3476, %v3528
        %v3530 = vpop.f32.mrf.mxu0
        %v3531 = vadd.f32 %v3478, %v3530
        %v3532 = vpop.f32.mrf.mxu0
        %v3533 = vadd.f32 %v3480, %v3532
        %v3534 = vpop.f32.mrf.mxu0
        %v3535 = vadd.f32 %v3482, %v3534
        %3536 = vmatprep.mubr.bf16.mxu0 0
        %3537 = vmatmul.mubr.bf16.gmra.mxu0 %v3439
        %v3538 = vpop.f32.mrf.mxu0
        %v3539 = vadd.f32 %v3486, %v3538
        %v3540 = vpop.f32.mrf.mxu0
        %v3541 = vadd.f32 %v3488, %v3540
        %v3542 = vpop.f32.mrf.mxu0
        %v3543 = vadd.f32 %v3490, %v3542
        %v3544 = vpop.f32.mrf.mxu0
        %v3545 = vadd.f32 %v3492, %v3544
        %3546 = vdwg.mxu0
        %3547 = vmatprep.subr.bf16.mxu0 0
        %3548 = vmatpush1.bf16.msra.mxu0 %v3350
        %3549 = vmatprep.subr.bf16.mxu0 0
        %3550 = vmatpush1.bf16.msra.mxu0 %v3347
        %3551 = vmatprep.subr.bf16.mxu0 0
        %3552 = vmatpush1.bf16.msra.mxu0 %v3344
        %3553 = vmatprep.subr.bf16.mxu0 0
        %3554 = vmatpush1.bf16.msra.mxu0 %v3341
        %3555 = vmatprep.subr.bf16.mxu0 0
        %3556 = vmatpush1.bf16.msra.mxu0 %v3338
        %3557 = vmatprep.subr.bf16.mxu0 0
        %3558 = vmatpush1.bf16.msra.mxu0 %v3335
        %3559 = vmatprep.subr.bf16.mxu0 0
        %3560 = vmatpush1.bf16.msra.mxu0 %v3332
        %3561 = vmatprep.subr.bf16.mxu0 0
        %3562 = vmatpush1.bf16.msra.mxu0 %v3329
        %3563 = vmatprep.subr.bf16.mxu0 0
        %3564 = vmatpush2.bf16.msra.mxu0 %v3374
        %3565 = vmatprep.subr.bf16.mxu0 0
        %3566 = vmatpush2.bf16.msra.mxu0 %v3371
        %3567 = vmatprep.subr.bf16.mxu0 0
        %3568 = vmatpush2.bf16.msra.mxu0 %v3368
        %3569 = vmatprep.subr.bf16.mxu0 0
        %3570 = vmatpush2.bf16.msra.mxu0 %v3365
        %3571 = vmatprep.subr.bf16.mxu0 0
        %3572 = vmatpush2.bf16.msra.mxu0 %v3362
        %3573 = vmatprep.subr.bf16.mxu0 0
        %3574 = vmatpush2.bf16.msra.mxu0 %v3359
        %3575 = vmatprep.subr.bf16.mxu0 0
        %3576 = vmatpush2.bf16.msra.mxu0 %v3356
        %3577 = vmatprep.subr.bf16.mxu0 0
        %3578 = vmatpush2.bf16.msra.mxu0 %v3353
        %3579 = vmatprep.mubr.bf16.mxu0 %v3138
        %3580 = vmatmul.mubr.bf16.gmra.mxu0 %v3137
        %v3581 = vpop.f32.mrf.mxu0
        %v3582 = vadd.f32 %v3100, %v3581
        %v3583 = vpop.f32.mrf.mxu0
        %v3584 = vpop.f32.mrf.mxu0
        %v3585 = vadd.f32 %v3105, %v3584
        %v3586 = vpop.f32.mrf.mxu0
        %3587 = vmatprep.mubr.bf16.mxu0 %v3141
        %3588 = vmatmul.mubr.bf16.gmra.mxu0 %v3140
        %v3589 = vpop.f32.mrf.mxu0
        %v3590 = vadd.f32 %v3110, %v3589
        %v3591 = vpop.f32.mrf.mxu0
        %v3592 = vpop.f32.mrf.mxu0
        %v3593 = vadd.f32 %v3115, %v3592
        %v3594 = vpop.f32.mrf.mxu0
        %3595 = vdwg.mxu0
        %3596 = vmatprep.subr.bf16.mxu0 0
        %3597 = vmatpush1.bf16.msra.mxu0 0
        %3598 = vmatprep.subr.bf16.mxu0 0
        %3599 = vmatpush1.bf16.msra.mxu0 0
        %3600 = vmatprep.subr.bf16.mxu0 0
        %3601 = vmatpush1.bf16.msra.mxu0 0
        %3602 = vmatprep.subr.bf16.mxu0 0
        %3603 = vmatpush1.bf16.msra.mxu0 0
        %3604 = vmatprep.subr.bf16.mxu0 0
        %3605 = vmatpush1.bf16.msra.mxu0 0
        %3606 = vmatprep.subr.bf16.mxu0 0
        %3607 = vmatpush1.bf16.msra.mxu0 0
        %3608 = vmatprep.subr.bf16.mxu0 0
        %3609 = vmatpush1.bf16.msra.mxu0 %v3380
        %3610 = vmatprep.subr.bf16.mxu0 0
        %3611 = vmatpush1.bf16.msra.mxu0 %v3377
        %3612 = vmatprep.subr.bf16.mxu0 0
        %3613 = vmatpush2.bf16.msra.mxu0 0
        %3614 = vmatprep.subr.bf16.mxu0 0
        %3615 = vmatpush2.bf16.msra.mxu0 0
        %3616 = vmatprep.subr.bf16.mxu0 0
        %3617 = vmatpush2.bf16.msra.mxu0 0
        %3618 = vmatprep.subr.bf16.mxu0 0
        %3619 = vmatpush2.bf16.msra.mxu0 0
        %3620 = vmatprep.subr.bf16.mxu0 0
        %3621 = vmatpush2.bf16.msra.mxu0 0
        %3622 = vmatprep.subr.bf16.mxu0 0
        %3623 = vmatpush2.bf16.msra.mxu0 0
        %3624 = vmatprep.subr.bf16.mxu0 0
        %3625 = vmatpush2.bf16.msra.mxu0 0
        %3626 = vmatprep.subr.bf16.mxu0 0
        %3627 = vmatpush2.bf16.msra.mxu0 0
        %3628 = vmatprep.mubr.bf16.mxu0 0
        %3629 = vmatmul.mubr.bf16.gmra.mxu0 %v3436
        %v3630 = vpop.f32.mrf.mxu0
        %v3631 = vadd.f32 %v3582, %v3630
        %v3632 = vpop.f32.mrf.mxu0
        %v3633 = vpop.f32.mrf.mxu0
        %v3634 = vadd.f32 %v3585, %v3633
        %v3635 = vpop.f32.mrf.mxu0
        %3636 = vmatprep.mubr.bf16.mxu0 0
        %3637 = vmatmul.mubr.bf16.gmra.mxu0 %v3439
        %v3638 = vpop.f32.mrf.mxu0
        %v3639 = vadd.f32 %v3590, %v3638
        %v3640 = vpop.f32.mrf.mxu0
        %v3641 = vpop.f32.mrf.mxu0
        %v3642 = vadd.f32 %v3593, %v3641
        %v3643 = vpop.f32.mrf.mxu0
        %3644 = vdwg.mxu0
        %vm3645 = vcmp.ge.f32.partialorder %v3529, 0.0
        %vm3646 = vcmp.ge.f32.partialorder %v3531, 0.0
        %vm3647 = vcmp.ge.f32.partialorder %v3631, 0.0
        %vm3648 = vcmp.ge.f32.partialorder %v3533, 0.0
        %vm3649 = vcmp.ge.f32.partialorder %v3535, 0.0
        %vm3650 = vcmp.ge.f32.partialorder %v3634, 0.0
        %vm3651 = vcmp.ge.f32.partialorder %v3539, 0.0
        %vm3652 = vcmp.ge.f32.partialorder %v3541, 0.0
        %vm3653 = vcmp.ge.f32.partialorder %v3639, 0.0
        %vm3654 = vcmp.ge.f32.partialorder %v3543, 0.0
        %vm3655 = vcmp.ge.f32.partialorder %v3545, 0.0
        %vm3656 = vcmp.ge.f32.partialorder %v3642, 0.0
        %v3657 = vmul.f32 %v3529, 0.1
        %v3658 = vmul.f32 %v3531, 0.1
        %v3659 = vmul.f32 %v3631, 0.1
        %v3660 = vmul.f32 %v3533, 0.1
        %v3661 = vmul.f32 %v3535, 0.1
        %v3662 = vmul.f32 %v3634, 0.1
        %v3663 = vmul.f32 %v3539, 0.1
        %v3664 = vmul.f32 %v3541, 0.1
        %v3665 = vmul.f32 %v3639, 0.1
        %v3666 = vmul.f32 %v3543, 0.1
        %v3667 = vmul.f32 %v3545, 0.1
        %v3668 = vmul.f32 %v3642, 0.1
        %v3669 = vsel %vm3645, %v3529, %v3657
        %v3670 = vsel %vm3646, %v3531, %v3658
        %v3671 = vsel %vm3647, %v3631, %v3659
        %v3672 = vsel %vm3648, %v3533, %v3660
        %v3673 = vsel %vm3649, %v3535, %v3661
        %v3674 = vsel %vm3650, %v3634, %v3662
        %v3675 = vsel %vm3651, %v3539, %v3663
        %v3676 = vsel %vm3652, %v3541, %v3664
        %v3677 = vsel %vm3653, %v3639, %v3665
        %v3678 = vsel %vm3654, %v3543, %v3666
        %v3679 = vsel %vm3655, %v3545, %v3667
        %v3680 = vsel %vm3656, %v3642, %v3668
        %v3681 = vsel %vm1133, %v3669, 0.0
        %v3682 = vsel %vm1134, %v3670, 0.0
        %v3683 = vsel %vm1135, %v3671, 0.0
        %v3684 = vsel %vm1133, %v3672, 0.0
        %v3685 = vsel %vm1134, %v3673, 0.0
        %v3686 = vsel %vm1135, %v3674, 0.0
        %v3687 = vsel %vm1133, %v3675, 0.0
        %v3688 = vsel %vm1134, %v3676, 0.0
        %v3689 = vsel %vm1135, %v3677, 0.0
        %v3690 = vsel %vm1133, %v3678, 0.0
        %v3691 = vsel %vm1134, %v3679, 0.0
        %v3692 = vsel %vm1135, %v3680, 0.0
        %v3693 = vpack.c.bf16 %v3684, %v3681
        %v3694 = vpack.c.bf16 %v3685, %v3682
        %v3695 = vpack.c.bf16 %v3686, %v3683
        %v3696 = vpack.c.bf16 %v3690, %v3687
        %v3697 = vpack.c.bf16 %v3691, %v3688
        %v3698 = vpack.c.bf16 %v3692, %v3689
        %v3705 = vunpack.c.l.b16 %v3693
        %v3706 = vunpack.c.l.b16 %v3694
        %v3707 = vunpack.c.l.b16 %v3695
        %v3708 = vunpack.c.h.b16 %v3693
        %v3709 = vunpack.c.h.b16 %v3694
        %v3710 = vunpack.c.h.b16 %v3695
        %v3711 = vunpack.c.l.b16 %v3696
        %v3712 = vunpack.c.l.b16 %v3697
        %v3713 = vunpack.c.l.b16 %v3698
        %v3714 = vunpack.c.h.b16 %v3696
        %v3715 = vunpack.c.h.b16 %v3697
        %v3716 = vunpack.c.h.b16 %v3698
        %v3717 = vpack.c.b16 %v3706, %v3705
        %v3718 = vpack.c.b16 %v3707, %v3707
        %v3719 = vpack.c.b16 %v3709, %v3708
        %v3720 = vpack.c.b16 %v3710, %v3710
        %v3721 = vpack.c.b16 %v3712, %v3711
        %v3722 = vpack.c.b16 %v3713, %v3713
        %v3723 = vpack.c.b16 %v3715, %v3714
        %v3724 = vpack.c.b16 %v3716, %v3716
        %3733 = vst [vmem:[#allocation2 + $0x4] sm:$0xff] %v3717
        %3734 = vst.msk [vmem:[#allocation2 + $0xc] sm:$0xf] %vm562, %v3718
        %3735 = vst [vmem:[#allocation2 + $0x14] sm:$0xff] %v3719
        %3736 = vst.msk [vmem:[#allocation2 + $0x1c] sm:$0xf] %vm562, %v3720
        %3737 = vst [vmem:[#allocation2 + $0x24] sm:$0xff] %v3721
        %3738 = vst.msk [vmem:[#allocation2 + $0x2c] sm:$0xf] %vm562, %v3722
        %3739 = vst [vmem:[#allocation2 + $0x34] sm:$0xff] %v3723
        %3740 = vst.msk [vmem:[#allocation2 + $0x3c] sm:$0xf] %vm562, %v3724
        %v3741 = vld [vmem:[#allocation2] sm:$0xff]
        %v3742 = vld [vmem:[#allocation2 + $0x8] sm:$0xff]
        %v3743 = vld [vmem:[#allocation2 + $0x10] sm:$0xff]
        %v3744 = vld [vmem:[#allocation2 + $0x18] sm:$0xff]
        %v3745 = vld [vmem:[#allocation2 + $0x20] sm:$0xff]
        %v3746 = vld [vmem:[#allocation2 + $0x28] sm:$0xff]
        %v3747 = vld [vmem:[#allocation2 + $0x30] sm:$0xff]
        %v3748 = vld [vmem:[#allocation2 + $0x38] sm:$0xff]
        %3757 = vrot.lane.b32.xlu0 %v3741, 19
        %v3758 = vpop.permute.xlu0 %3757
        %3759 = vrot.lane.b32.xlu0 %v3742, 19
        %v3760 = vpop.permute.xlu0 %3759
        %3761 = vrot.lane.b32.xlu0 %v3743, 19
        %v3762 = vpop.permute.xlu0 %3761
        %3763 = vrot.lane.b32.xlu0 %v3744, 19
        %v3764 = vpop.permute.xlu0 %3763
        %3765 = vrot.lane.b32.xlu0 %v3745, 19
        %v3766 = vpop.permute.xlu0 %3765
        %3767 = vrot.lane.b32.xlu0 %v3746, 19
        %v3768 = vpop.permute.xlu0 %3767
        %3769 = vrot.lane.b32.xlu0 %v3747, 19
        %v3770 = vpop.permute.xlu0 %3769
        %3771 = vrot.lane.b32.xlu0 %v3748, 19
        %v3772 = vpop.permute.xlu0 %3771
        %v3773 = vrot.slane %v3758, 4
        %v3774 = vrot.slane %v3760, 4
        %v3775 = vrot.slane %v3762, 4
        %v3776 = vrot.slane %v3764, 4
        %v3777 = vrot.slane %v3766, 4
        %v3778 = vrot.slane %v3768, 4
        %v3779 = vrot.slane %v3770, 4
        %v3780 = vrot.slane %v3772, 4
        %v3781 = vsel %vm549, %v3773, %v3774
        %v3782 = vsel %vm551, %v3758, %v3781
        %v3783 = vsel %vm551, %v3760, %v3774
        %v3784 = vsel %vm549, %v3775, %v3776
        %v3785 = vsel %vm551, %v3762, %v3784
        %v3786 = vsel %vm551, %v3764, %v3776
        %v3787 = vsel %vm549, %v3777, %v3778
        %v3788 = vsel %vm551, %v3766, %v3787
        %v3789 = vsel %vm551, %v3768, %v3778
        %v3790 = vsel %vm549, %v3779, %v3780
        %v3791 = vsel %vm551, %v3770, %v3790
        %v3792 = vsel %vm551, %v3772, %v3780
        %3801 = vst [vmem:[#allocation3] sm:$0xff] %v3782
        %3802 = vst.msk [vmem:[#allocation3 + $0x8] sm:$0xf] %vm562, %v3783
        %3803 = vst [vmem:[#allocation3 + $0xc] sm:$0xff] %v3785
        %3804 = vst.msk [vmem:[#allocation3 + $0x14] sm:$0xf] %vm562, %v3786
        %3805 = vst [vmem:[#allocation3 + $0x18] sm:$0xff] %v3788
        %3806 = vst.msk [vmem:[#allocation3 + $0x20] sm:$0xf] %vm562, %v3789
        %3807 = vst [vmem:[#allocation3 + $0x24] sm:$0xff] %v3791
        %3808 = vst.msk [vmem:[#allocation3 + $0x2c] sm:$0xf] %vm562, %v3792
        %v3809 = vld [vmem:[#allocation2] sm:$0xff]
        %v3810 = vld [vmem:[#allocation2 + $0x8] sm:$0xff]
        %v3811 = vld [vmem:[#allocation2 + $0x10] sm:$0xff]
        %v3812 = vld [vmem:[#allocation2 + $0x18] sm:$0xff]
        %v3813 = vld [vmem:[#allocation2 + $0x20] sm:$0xff]
        %v3814 = vld [vmem:[#allocation2 + $0x28] sm:$0xff]
        %v3815 = vld [vmem:[#allocation2 + $0x30] sm:$0xff]
        %v3816 = vld [vmem:[#allocation2 + $0x38] sm:$0xff]
        %3825 = vrot.lane.b32.xlu0 %v3809, 18
        %v3826 = vpop.permute.xlu0 %3825
        %3827 = vrot.lane.b32.xlu0 %v3810, 18
        %v3828 = vpop.permute.xlu0 %3827
        %3829 = vrot.lane.b32.xlu0 %v3811, 18
        %v3830 = vpop.permute.xlu0 %3829
        %3831 = vrot.lane.b32.xlu0 %v3812, 18
        %v3832 = vpop.permute.xlu0 %3831
        %3833 = vrot.lane.b32.xlu0 %v3813, 18
        %v3834 = vpop.permute.xlu0 %3833
        %3835 = vrot.lane.b32.xlu0 %v3814, 18
        %v3836 = vpop.permute.xlu0 %3835
        %3837 = vrot.lane.b32.xlu0 %v3815, 18
        %v3838 = vpop.permute.xlu0 %3837
        %3839 = vrot.lane.b32.xlu0 %v3816, 18
        %v3840 = vpop.permute.xlu0 %3839
        %v3841 = vrot.slane %v3826, 4
        %v3842 = vrot.slane %v3828, 4
        %v3843 = vrot.slane %v3830, 4
        %v3844 = vrot.slane %v3832, 4
        %v3845 = vrot.slane %v3834, 4
        %v3846 = vrot.slane %v3836, 4
        %v3847 = vrot.slane %v3838, 4
        %v3848 = vrot.slane %v3840, 4
        %v3849 = vsel %vm549, %v3841, %v3842
        %v3850 = vsel %vm579, %v3826, %v3849
        %v3851 = vsel %vm579, %v3828, %v3842
        %v3852 = vsel %vm549, %v3843, %v3844
        %v3853 = vsel %vm579, %v3830, %v3852
        %v3854 = vsel %vm579, %v3832, %v3844
        %v3855 = vsel %vm549, %v3845, %v3846
        %v3856 = vsel %vm579, %v3834, %v3855
        %v3857 = vsel %vm579, %v3836, %v3846
        %v3858 = vsel %vm549, %v3847, %v3848
        %v3859 = vsel %vm579, %v3838, %v3858
        %v3860 = vsel %vm579, %v3840, %v3848
        %3869 = vst [vmem:[#allocation3 + $0x30] sm:$0xff] %v3850
        %3870 = vst.msk [vmem:[#allocation3 + $0x38] sm:$0xf] %vm562, %v3851
        %3871 = vst [vmem:[#allocation3 + $0x3c] sm:$0xff] %v3853
        %3872 = vst.msk [vmem:[#allocation3 + $0x44] sm:$0xf] %vm562, %v3854
        %3873 = vst [vmem:[#allocation3 + $0x48] sm:$0xff] %v3856
        %3874 = vst.msk [vmem:[#allocation3 + $0x50] sm:$0xf] %vm562, %v3857
        %3875 = vst [vmem:[#allocation3 + $0x54] sm:$0xff] %v3859
        %3876 = vst.msk [vmem:[#allocation3 + $0x5c] sm:$0xf] %vm562, %v3860
        %v3877 = vld [vmem:[#allocation2] sm:$0xff]
        %v3878 = vld [vmem:[#allocation2 + $0x8] sm:$0xff]
        %v3879 = vld [vmem:[#allocation2 + $0x10] sm:$0xff]
        %v3880 = vld [vmem:[#allocation2 + $0x18] sm:$0xff]
        %v3881 = vld [vmem:[#allocation2 + $0x20] sm:$0xff]
        %v3882 = vld [vmem:[#allocation2 + $0x28] sm:$0xff]
        %v3883 = vld [vmem:[#allocation2 + $0x30] sm:$0xff]
        %v3884 = vld [vmem:[#allocation2 + $0x38] sm:$0xff]
        %3893 = vrot.lane.b32.xlu0 %v3877, 17
        %v3894 = vpop.permute.xlu0 %3893
        %3895 = vrot.lane.b32.xlu0 %v3878, 17
        %v3896 = vpop.permute.xlu0 %3895
        %3897 = vrot.lane.b32.xlu0 %v3879, 17
        %v3898 = vpop.permute.xlu0 %3897
        %3899 = vrot.lane.b32.xlu0 %v3880, 17
        %v3900 = vpop.permute.xlu0 %3899
        %3901 = vrot.lane.b32.xlu0 %v3881, 17
        %v3902 = vpop.permute.xlu0 %3901
        %3903 = vrot.lane.b32.xlu0 %v3882, 17
        %v3904 = vpop.permute.xlu0 %3903
        %3905 = vrot.lane.b32.xlu0 %v3883, 17
        %v3906 = vpop.permute.xlu0 %3905
        %3907 = vrot.lane.b32.xlu0 %v3884, 17
        %v3908 = vpop.permute.xlu0 %3907
        %v3909 = vrot.slane %v3894, 4
        %v3910 = vrot.slane %v3896, 4
        %v3911 = vrot.slane %v3898, 4
        %v3912 = vrot.slane %v3900, 4
        %v3913 = vrot.slane %v3902, 4
        %v3914 = vrot.slane %v3904, 4
        %v3915 = vrot.slane %v3906, 4
        %v3916 = vrot.slane %v3908, 4
        %v3917 = vsel %vm549, %v3909, %v3910
        %v3918 = vsel %vm606, %v3894, %v3917
        %v3919 = vsel %vm606, %v3896, %v3910
        %v3920 = vsel %vm549, %v3911, %v3912
        %v3921 = vsel %vm606, %v3898, %v3920
        %v3922 = vsel %vm606, %v3900, %v3912
        %v3923 = vsel %vm549, %v3913, %v3914
        %v3924 = vsel %vm606, %v3902, %v3923
        %v3925 = vsel %vm606, %v3904, %v3914
        %v3926 = vsel %vm549, %v3915, %v3916
        %v3927 = vsel %vm606, %v3906, %v3926
        %v3928 = vsel %vm606, %v3908, %v3916
        %3937 = vst [vmem:[#allocation3 + $0x60] sm:$0xff] %v3918
        %3938 = vst.msk [vmem:[#allocation3 + $0x68] sm:$0xf] %vm562, %v3919
        %3939 = vst [vmem:[#allocation3 + $0x6c] sm:$0xff] %v3921
        %3940 = vst.msk [vmem:[#allocation3 + $0x74] sm:$0xf] %vm562, %v3922
        %3941 = vst [vmem:[#allocation3 + $0x78] sm:$0xff] %v3924
        %3942 = vst.msk [vmem:[#allocation3 + $0x80] sm:$0xf] %vm562, %v3925
        %3943 = vst [vmem:[#allocation3 + $0x84] sm:$0xff] %v3927
        %3944 = vst.msk [vmem:[#allocation3 + $0x8c] sm:$0xf] %vm562, %v3928
        %v3945 = vld [vmem:[#allocation2] sm:$0xff]
        %v3946 = vld [vmem:[#allocation2 + $0x8] sm:$0xff]
        %v3947 = vld [vmem:[#allocation2 + $0x10] sm:$0xff]
        %v3948 = vld [vmem:[#allocation2 + $0x18] sm:$0xff]
        %v3949 = vld [vmem:[#allocation2 + $0x20] sm:$0xff]
        %v3950 = vld [vmem:[#allocation2 + $0x28] sm:$0xff]
        %v3951 = vld [vmem:[#allocation2 + $0x30] sm:$0xff]
        %v3952 = vld [vmem:[#allocation2 + $0x38] sm:$0xff]
        %3961 = vrot.lane.b32.xlu0 %v3945, 1
        %v3962 = vpop.permute.xlu0 %3961
        %3963 = vrot.lane.b32.xlu0 %v3946, 1
        %v3964 = vpop.permute.xlu0 %3963
        %3965 = vrot.lane.b32.xlu0 %v3947, 1
        %v3966 = vpop.permute.xlu0 %3965
        %3967 = vrot.lane.b32.xlu0 %v3948, 1
        %v3968 = vpop.permute.xlu0 %3967
        %3969 = vrot.lane.b32.xlu0 %v3949, 1
        %v3970 = vpop.permute.xlu0 %3969
        %3971 = vrot.lane.b32.xlu0 %v3950, 1
        %v3972 = vpop.permute.xlu0 %3971
        %3973 = vrot.lane.b32.xlu0 %v3951, 1
        %v3974 = vpop.permute.xlu0 %3973
        %3975 = vrot.lane.b32.xlu0 %v3952, 1
        %v3976 = vpop.permute.xlu0 %3975
        %v3977 = vrot.slane %v3962, 4
        %v3978 = vrot.slane %v3964, 4
        %v3979 = vrot.slane %v3966, 4
        %v3980 = vrot.slane %v3968, 4
        %v3981 = vrot.slane %v3970, 4
        %v3982 = vrot.slane %v3972, 4
        %v3983 = vrot.slane %v3974, 4
        %v3984 = vrot.slane %v3976, 4
        %v3985 = vsel %vm549, %v3977, %v3978
        %v3986 = vsel %vm633, %v3962, %v3985
        %v3987 = vsel %vm633, %v3964, %v3978
        %v3988 = vsel %vm549, %v3979, %v3980
        %v3989 = vsel %vm633, %v3966, %v3988
        %v3990 = vsel %vm633, %v3968, %v3980
        %v3991 = vsel %vm549, %v3981, %v3982
        %v3992 = vsel %vm633, %v3970, %v3991
        %v3993 = vsel %vm633, %v3972, %v3982
        %v3994 = vsel %vm549, %v3983, %v3984
        %v3995 = vsel %vm633, %v3974, %v3994
        %v3996 = vsel %vm633, %v3976, %v3984
        %4005 = vst [vmem:[#allocation3 + $0x90] sm:$0xff] %v3986
        %4006 = vst.msk [vmem:[#allocation3 + $0x98] sm:$0xf] %vm562, %v3987
        %4007 = vst [vmem:[#allocation3 + $0x9c] sm:$0xff] %v3989
        %4008 = vst.msk [vmem:[#allocation3 + $0xa4] sm:$0xf] %vm562, %v3990
        %4009 = vst [vmem:[#allocation3 + $0xa8] sm:$0xff] %v3992
        %4010 = vst.msk [vmem:[#allocation3 + $0xb0] sm:$0xf] %vm562, %v3993
        %4011 = vst [vmem:[#allocation3 + $0xb4] sm:$0xff] %v3995
        %4012 = vst.msk [vmem:[#allocation3 + $0xbc] sm:$0xf] %vm562, %v3996
        %v4013 = vld [vmem:[#allocation2 + $0x4] sm:$0xff]
        %v4014 = vld [vmem:[#allocation2 + $0xc] sm:$0xf]
        %v4015 = vld [vmem:[#allocation2 + $0x14] sm:$0xff]
        %v4016 = vld [vmem:[#allocation2 + $0x1c] sm:$0xf]
        %v4017 = vld [vmem:[#allocation2 + $0x24] sm:$0xff]
        %v4018 = vld [vmem:[#allocation2 + $0x2c] sm:$0xf]
        %v4019 = vld [vmem:[#allocation2 + $0x34] sm:$0xff]
        %v4020 = vld [vmem:[#allocation2 + $0x3c] sm:$0xf]
        %4021 = vst [vmem:[#allocation3 + $0xc0] sm:$0xff] %v4013
        %4022 = vst.msk [vmem:[#allocation3 + $0xc8] sm:$0xf] %vm562, %v4014
        %4023 = vst [vmem:[#allocation3 + $0xcc] sm:$0xff] %v4015
        %4024 = vst.msk [vmem:[#allocation3 + $0xd4] sm:$0xf] %vm562, %v4016
        %4025 = vst [vmem:[#allocation3 + $0xd8] sm:$0xff] %v4017
        %4026 = vst.msk [vmem:[#allocation3 + $0xe0] sm:$0xf] %vm562, %v4018
        %4027 = vst [vmem:[#allocation3 + $0xe4] sm:$0xff] %v4019
        %4028 = vst.msk [vmem:[#allocation3 + $0xec] sm:$0xf] %vm562, %v4020
        %v4029 = vld [vmem:[#allocation2 + $0x4] sm:$0xff]
        %v4030 = vld [vmem:[#allocation2 + $0xc] sm:$0xf]
        %v4031 = vld [vmem:[#allocation2 + $0x14] sm:$0xff]
        %v4032 = vld [vmem:[#allocation2 + $0x1c] sm:$0xf]
        %v4033 = vld [vmem:[#allocation2 + $0x24] sm:$0xff]
        %v4034 = vld [vmem:[#allocation2 + $0x2c] sm:$0xf]
        %v4035 = vld [vmem:[#allocation2 + $0x34] sm:$0xff]
        %v4036 = vld [vmem:[#allocation2 + $0x3c] sm:$0xf]
        %4045 = vrot.lane.b32.xlu0 %v4029, 127
        %v4046 = vpop.permute.xlu0 %4045
        %4047 = vrot.lane.b32.xlu0 %v4030, 127
        %v4048 = vpop.permute.xlu0 %4047
        %4049 = vrot.lane.b32.xlu0 %v4031, 127
        %v4050 = vpop.permute.xlu0 %4049
        %4051 = vrot.lane.b32.xlu0 %v4032, 127
        %v4052 = vpop.permute.xlu0 %4051
        %4053 = vrot.lane.b32.xlu0 %v4033, 127
        %v4054 = vpop.permute.xlu0 %4053
        %4055 = vrot.lane.b32.xlu0 %v4034, 127
        %v4056 = vpop.permute.xlu0 %4055
        %4057 = vrot.lane.b32.xlu0 %v4035, 127
        %v4058 = vpop.permute.xlu0 %4057
        %4059 = vrot.lane.b32.xlu0 %v4036, 127
        %v4060 = vpop.permute.xlu0 %4059
        %v4061 = vrot.slane %v4046, 4
        %v4062 = vrot.slane %v4048, 4
        %v4063 = vrot.slane %v4050, 4
        %v4064 = vrot.slane %v4052, 4
        %v4065 = vrot.slane %v4054, 4
        %v4066 = vrot.slane %v4056, 4
        %v4067 = vrot.slane %v4058, 4
        %v4068 = vrot.slane %v4060, 4
        %v4069 = vsel %vm549, %v4061, %v4062
        %v4070 = vsel %vm672, %v4046, %v4069
        %v4071 = vsel %vm549, %v4063, %v4064
        %v4072 = vsel %vm672, %v4050, %v4071
        %v4073 = vsel %vm549, %v4065, %v4066
        %v4074 = vsel %vm672, %v4054, %v4073
        %v4075 = vsel %vm549, %v4067, %v4068
        %v4076 = vsel %vm672, %v4058, %v4075
        %4085 = vst [vmem:[#allocation3 + $0xf0] sm:$0xff] %v4070
        %4086 = vst.msk [vmem:[#allocation3 + $0xf8] sm:$0xf] %vm562, %v4048
        %4087 = vst [vmem:[#allocation3 + $0xfc] sm:$0xff] %v4072
        %4088 = vst.msk [vmem:[#allocation3 + $0x104] sm:$0xf] %vm562, %v4052
        %4089 = vst [vmem:[#allocation3 + $0x108] sm:$0xff] %v4074
        %4090 = vst.msk [vmem:[#allocation3 + $0x110] sm:$0xf] %vm562, %v4056
        %4091 = vst [vmem:[#allocation3 + $0x114] sm:$0xff] %v4076
        %4092 = vst.msk [vmem:[#allocation3 + $0x11c] sm:$0xf] %vm562, %v4060
        %v4093 = vld [vmem:[#allocation2 + $0x4] sm:$0xff]
        %v4094 = vld [vmem:[#allocation2 + $0xc] sm:$0xf]
        %v4095 = vld [vmem:[#allocation2 + $0x14] sm:$0xff]
        %v4096 = vld [vmem:[#allocation2 + $0x1c] sm:$0xf]
        %v4097 = vld [vmem:[#allocation2 + $0x24] sm:$0xff]
        %v4098 = vld [vmem:[#allocation2 + $0x2c] sm:$0xf]
        %v4099 = vld [vmem:[#allocation2 + $0x34] sm:$0xff]
        %v4100 = vld [vmem:[#allocation2 + $0x3c] sm:$0xf]
        %4109 = vrot.lane.b32.xlu0 %v4093, 111
        %v4110 = vpop.permute.xlu0 %4109
        %4111 = vrot.lane.b32.xlu0 %v4094, 111
        %v4112 = vpop.permute.xlu0 %4111
        %4113 = vrot.lane.b32.xlu0 %v4095, 111
        %v4114 = vpop.permute.xlu0 %4113
        %4115 = vrot.lane.b32.xlu0 %v4096, 111
        %v4116 = vpop.permute.xlu0 %4115
        %4117 = vrot.lane.b32.xlu0 %v4097, 111
        %v4118 = vpop.permute.xlu0 %4117
        %4119 = vrot.lane.b32.xlu0 %v4098, 111
        %v4120 = vpop.permute.xlu0 %4119
        %4121 = vrot.lane.b32.xlu0 %v4099, 111
        %v4122 = vpop.permute.xlu0 %4121
        %4123 = vrot.lane.b32.xlu0 %v4100, 111
        %v4124 = vpop.permute.xlu0 %4123
        %v4125 = vrot.slane %v4110, 4
        %v4126 = vrot.slane %v4112, 4
        %v4127 = vrot.slane %v4114, 4
        %v4128 = vrot.slane %v4116, 4
        %v4129 = vrot.slane %v4118, 4
        %v4130 = vrot.slane %v4120, 4
        %v4131 = vrot.slane %v4122, 4
        %v4132 = vrot.slane %v4124, 4
        %v4133 = vsel %vm549, %v4125, %v4126
        %v4134 = vsel %vm697, %v4110, %v4133
        %v4135 = vsel %vm549, %v4127, %v4128
        %v4136 = vsel %vm697, %v4114, %v4135
        %v4137 = vsel %vm549, %v4129, %v4130
        %v4138 = vsel %vm697, %v4118, %v4137
        %v4139 = vsel %vm549, %v4131, %v4132
        %v4140 = vsel %vm697, %v4122, %v4139
        %4149 = vst [vmem:[#allocation3 + $0x120] sm:$0xff] %v4134
        %4150 = vst.msk [vmem:[#allocation3 + $0x128] sm:$0xf] %vm562, %v4112
        %4151 = vst [vmem:[#allocation3 + $0x12c] sm:$0xff] %v4136
        %4152 = vst.msk [vmem:[#allocation3 + $0x134] sm:$0xf] %vm562, %v4116
        %4153 = vst [vmem:[#allocation3 + $0x138] sm:$0xff] %v4138
        %4154 = vst.msk [vmem:[#allocation3 + $0x140] sm:$0xf] %vm562, %v4120
        %4155 = vst [vmem:[#allocation3 + $0x144] sm:$0xff] %v4140
        %4156 = vst.msk [vmem:[#allocation3 + $0x14c] sm:$0xf] %vm562, %v4124
        %v4157 = vld [vmem:[#allocation2 + $0x4] sm:$0xff]
        %v4158 = vld [vmem:[#allocation2 + $0xc] sm:$0xf]
        %v4159 = vld [vmem:[#allocation2 + $0x14] sm:$0xff]
        %v4160 = vld [vmem:[#allocation2 + $0x1c] sm:$0xf]
        %v4161 = vld [vmem:[#allocation2 + $0x24] sm:$0xff]
        %v4162 = vld [vmem:[#allocation2 + $0x2c] sm:$0xf]
        %v4163 = vld [vmem:[#allocation2 + $0x34] sm:$0xff]
        %v4164 = vld [vmem:[#allocation2 + $0x3c] sm:$0xf]
        %4173 = vrot.lane.b32.xlu0 %v4157, 110
        %v4174 = vpop.permute.xlu0 %4173
        %4175 = vrot.lane.b32.xlu0 %v4158, 110
        %v4176 = vpop.permute.xlu0 %4175
        %4177 = vrot.lane.b32.xlu0 %v4159, 110
        %v4178 = vpop.permute.xlu0 %4177
        %4179 = vrot.lane.b32.xlu0 %v4160, 110
        %v4180 = vpop.permute.xlu0 %4179
        %4181 = vrot.lane.b32.xlu0 %v4161, 110
        %v4182 = vpop.permute.xlu0 %4181
        %4183 = vrot.lane.b32.xlu0 %v4162, 110
        %v4184 = vpop.permute.xlu0 %4183
        %4185 = vrot.lane.b32.xlu0 %v4163, 110
        %v4186 = vpop.permute.xlu0 %4185
        %4187 = vrot.lane.b32.xlu0 %v4164, 110
        %v4188 = vpop.permute.xlu0 %4187
        %v4189 = vrot.slane %v4174, 4
        %v4190 = vrot.slane %v4176, 4
        %v4191 = vrot.slane %v4178, 4
        %v4192 = vrot.slane %v4180, 4
        %v4193 = vrot.slane %v4182, 4
        %v4194 = vrot.slane %v4184, 4
        %v4195 = vrot.slane %v4186, 4
        %v4196 = vrot.slane %v4188, 4
        %v4197 = vsel %vm549, %v4189, %v4190
        %v4198 = vsel %vm722, %v4174, %v4197
        %v4199 = vsel %vm549, %v4191, %v4192
        %v4200 = vsel %vm722, %v4178, %v4199
        %v4201 = vsel %vm549, %v4193, %v4194
        %v4202 = vsel %vm722, %v4182, %v4201
        %v4203 = vsel %vm549, %v4195, %v4196
        %v4204 = vsel %vm722, %v4186, %v4203
        %4213 = vst [vmem:[#allocation3 + $0x150] sm:$0xff] %v4198
        %4214 = vst.msk [vmem:[#allocation3 + $0x158] sm:$0xf] %vm562, %v4176
        %4215 = vst [vmem:[#allocation3 + $0x15c] sm:$0xff] %v4200
        %4216 = vst.msk [vmem:[#allocation3 + $0x164] sm:$0xf] %vm562, %v4180
        %4217 = vst [vmem:[#allocation3 + $0x168] sm:$0xff] %v4202
        %4218 = vst.msk [vmem:[#allocation3 + $0x170] sm:$0xf] %vm562, %v4184
        %4219 = vst [vmem:[#allocation3 + $0x174] sm:$0xff] %v4204
        %4220 = vst.msk [vmem:[#allocation3 + $0x17c] sm:$0xf] %vm562, %v4188
        %v4221 = vld [vmem:[#allocation2 + $0x4] sm:$0xff]
        %v4222 = vld [vmem:[#allocation2 + $0xc] sm:$0xf]
        %v4223 = vld [vmem:[#allocation2 + $0x14] sm:$0xff]
        %v4224 = vld [vmem:[#allocation2 + $0x1c] sm:$0xf]
        %v4225 = vld [vmem:[#allocation2 + $0x24] sm:$0xff]
        %v4226 = vld [vmem:[#allocation2 + $0x2c] sm:$0xf]
        %v4227 = vld [vmem:[#allocation2 + $0x34] sm:$0xff]
        %v4228 = vld [vmem:[#allocation2 + $0x3c] sm:$0xf]
        %4237 = vrot.lane.b32.xlu0 %v4221, 109
        %v4238 = vpop.permute.xlu0 %4237
        %4239 = vrot.lane.b32.xlu0 %v4222, 109
        %v4240 = vpop.permute.xlu0 %4239
        %4241 = vrot.lane.b32.xlu0 %v4223, 109
        %v4242 = vpop.permute.xlu0 %4241
        %4243 = vrot.lane.b32.xlu0 %v4224, 109
        %v4244 = vpop.permute.xlu0 %4243
        %4245 = vrot.lane.b32.xlu0 %v4225, 109
        %v4246 = vpop.permute.xlu0 %4245
        %4247 = vrot.lane.b32.xlu0 %v4226, 109
        %v4248 = vpop.permute.xlu0 %4247
        %4249 = vrot.lane.b32.xlu0 %v4227, 109
        %v4250 = vpop.permute.xlu0 %4249
        %4251 = vrot.lane.b32.xlu0 %v4228, 109
        %v4252 = vpop.permute.xlu0 %4251
        %v4253 = vrot.slane %v4238, 4
        %v4254 = vrot.slane %v4240, 4
        %v4255 = vrot.slane %v4242, 4
        %v4256 = vrot.slane %v4244, 4
        %v4257 = vrot.slane %v4246, 4
        %v4258 = vrot.slane %v4248, 4
        %v4259 = vrot.slane %v4250, 4
        %v4260 = vrot.slane %v4252, 4
        %v4261 = vsel %vm549, %v4253, %v4254
        %v4262 = vsel %vm747, %v4238, %v4261
        %v4263 = vsel %vm549, %v4255, %v4256
        %v4264 = vsel %vm747, %v4242, %v4263
        %v4265 = vsel %vm549, %v4257, %v4258
        %v4266 = vsel %vm747, %v4246, %v4265
        %v4267 = vsel %vm549, %v4259, %v4260
        %v4268 = vsel %vm747, %v4250, %v4267
        %4277 = vst [vmem:[#allocation3 + $0x180] sm:$0xff] %v4262
        %4278 = vst.msk [vmem:[#allocation3 + $0x188] sm:$0xf] %vm562, %v4240
        %4279 = vst [vmem:[#allocation3 + $0x18c] sm:$0xff] %v4264
        %4280 = vst.msk [vmem:[#allocation3 + $0x194] sm:$0xf] %vm562, %v4244
        %4281 = vst [vmem:[#allocation3 + $0x198] sm:$0xff] %v4266
        %4282 = vst.msk [vmem:[#allocation3 + $0x1a0] sm:$0xf] %vm562, %v4248
        %4283 = vst [vmem:[#allocation3 + $0x1a4] sm:$0xff] %v4268
        %4284 = vst.msk [vmem:[#allocation3 + $0x1ac] sm:$0xf] %vm562, %v4252
        %v4285 = vld [vmem:[#allocation10] sm:$0xff]
        %v4286 = vld [vmem:[#allocation10 + $0x8] sm:$0xf]
        %v4287 = vld [vmem:[#allocation10 + $0xc] sm:$0xff]
        %v4288 = vld [vmem:[#allocation10 + $0x14] sm:$0xf]
        %v4289 = vld [vmem:[#allocation10 + $0x18] sm:$0xff]
        %v4290 = vld [vmem:[#allocation10 + $0x20] sm:$0xf]
        %v4291 = vld [vmem:[#allocation10 + $0x24] sm:$0xff]
        %v4292 = vld [vmem:[#allocation10 + $0x2c] sm:$0xf]
        %v4293 = vld [vmem:[#allocation3] sm:$0xff]
        %v4294 = vld [vmem:[#allocation3 + $0x8] sm:$0xf]
        %v4295 = vld [vmem:[#allocation3 + $0xc] sm:$0xff]
        %v4296 = vld [vmem:[#allocation3 + $0x14] sm:$0xf]
        %v4297 = vld [vmem:[#allocation3 + $0x18] sm:$0xff]
        %v4298 = vld [vmem:[#allocation3 + $0x20] sm:$0xf]
        %v4299 = vld [vmem:[#allocation3 + $0x24] sm:$0xff]
        %v4300 = vld [vmem:[#allocation3 + $0x2c] sm:$0xf]
        %v4301 = vld [vmem:[#allocation3 + $0x30] sm:$0xff]
        %v4302 = vld [vmem:[#allocation3 + $0x38] sm:$0xf]
        %v4303 = vld [vmem:[#allocation3 + $0x3c] sm:$0xff]
        %v4304 = vld [vmem:[#allocation3 + $0x44] sm:$0xf]
        %v4305 = vld [vmem:[#allocation3 + $0x48] sm:$0xff]
        %v4306 = vld [vmem:[#allocation3 + $0x50] sm:$0xf]
        %v4307 = vld [vmem:[#allocation3 + $0x54] sm:$0xff]
        %v4308 = vld [vmem:[#allocation3 + $0x5c] sm:$0xf]
        %v4309 = vld [vmem:[#allocation3 + $0x60] sm:$0xff]
        %v4310 = vld [vmem:[#allocation3 + $0x68] sm:$0xf]
        %v4311 = vld [vmem:[#allocation3 + $0x6c] sm:$0xff]
        %v4312 = vld [vmem:[#allocation3 + $0x74] sm:$0xf]
        %v4313 = vld [vmem:[#allocation3 + $0x78] sm:$0xff]
        %v4314 = vld [vmem:[#allocation3 + $0x80] sm:$0xf]
        %v4315 = vld [vmem:[#allocation3 + $0x84] sm:$0xff]
        %v4316 = vld [vmem:[#allocation3 + $0x8c] sm:$0xf]
        %v4317 = vld [vmem:[#allocation3 + $0x90] sm:$0xff]
        %v4318 = vld [vmem:[#allocation3 + $0x98] sm:$0xf]
        %v4319 = vld [vmem:[#allocation3 + $0x9c] sm:$0xff]
        %v4320 = vld [vmem:[#allocation3 + $0xa4] sm:$0xf]
        %v4321 = vld [vmem:[#allocation3 + $0xa8] sm:$0xff]
        %v4322 = vld [vmem:[#allocation3 + $0xb0] sm:$0xf]
        %v4323 = vld [vmem:[#allocation3 + $0xb4] sm:$0xff]
        %v4324 = vld [vmem:[#allocation3 + $0xbc] sm:$0xf]
        %v4325 = vld [vmem:[#allocation3 + $0xc0] sm:$0xff]
        %v4326 = vld [vmem:[#allocation3 + $0xc8] sm:$0xf]
        %v4327 = vld [vmem:[#allocation3 + $0xcc] sm:$0xff]
        %v4328 = vld [vmem:[#allocation3 + $0xd4] sm:$0xf]
        %v4329 = vld [vmem:[#allocation3 + $0xd8] sm:$0xff]
        %v4330 = vld [vmem:[#allocation3 + $0xe0] sm:$0xf]
        %v4331 = vld [vmem:[#allocation3 + $0xe4] sm:$0xff]
        %v4332 = vld [vmem:[#allocation3 + $0xec] sm:$0xf]
        %v4333 = vld [vmem:[#allocation3 + $0xf0] sm:$0xff]
        %v4334 = vld [vmem:[#allocation3 + $0xf8] sm:$0xf]
        %v4335 = vld [vmem:[#allocation3 + $0xfc] sm:$0xff]
        %v4336 = vld [vmem:[#allocation3 + $0x104] sm:$0xf]
        %v4337 = vld [vmem:[#allocation3 + $0x108] sm:$0xff]
        %v4338 = vld [vmem:[#allocation3 + $0x110] sm:$0xf]
        %v4339 = vld [vmem:[#allocation3 + $0x114] sm:$0xff]
        %v4340 = vld [vmem:[#allocation3 + $0x11c] sm:$0xf]
        %v4341 = vld [vmem:[#allocation3 + $0x120] sm:$0xff]
        %v4342 = vld [vmem:[#allocation3 + $0x128] sm:$0xf]
        %v4343 = vld [vmem:[#allocation3 + $0x12c] sm:$0xff]
        %v4344 = vld [vmem:[#allocation3 + $0x134] sm:$0xf]
        %v4345 = vld [vmem:[#allocation3 + $0x138] sm:$0xff]
        %v4346 = vld [vmem:[#allocation3 + $0x140] sm:$0xf]
        %v4347 = vld [vmem:[#allocation3 + $0x144] sm:$0xff]
        %v4348 = vld [vmem:[#allocation3 + $0x14c] sm:$0xf]
        %v4349 = vld [vmem:[#allocation3 + $0x150] sm:$0xff]
        %v4350 = vld [vmem:[#allocation3 + $0x158] sm:$0xf]
        %v4351 = vld [vmem:[#allocation3 + $0x15c] sm:$0xff]
        %v4352 = vld [vmem:[#allocation3 + $0x164] sm:$0xf]
        %v4353 = vld [vmem:[#allocation3 + $0x168] sm:$0xff]
        %v4354 = vld [vmem:[#allocation3 + $0x170] sm:$0xf]
        %v4355 = vld [vmem:[#allocation3 + $0x174] sm:$0xff]
        %v4356 = vld [vmem:[#allocation3 + $0x17c] sm:$0xf]
        %v4357 = vld [vmem:[#allocation3 + $0x180] sm:$0xff]
        %v4358 = vld [vmem:[#allocation3 + $0x188] sm:$0xf]
        %v4359 = vld [vmem:[#allocation3 + $0x18c] sm:$0xff]
        %v4360 = vld [vmem:[#allocation3 + $0x194] sm:$0xf]
        %v4361 = vld [vmem:[#allocation3 + $0x198] sm:$0xff]
        %v4362 = vld [vmem:[#allocation3 + $0x1a0] sm:$0xf]
        %v4363 = vld [vmem:[#allocation3 + $0x1a4] sm:$0xff]
        %v4364 = vld [vmem:[#allocation3 + $0x1ac] sm:$0xf]
        %v4365 = vld [vmem:[%s8] sm:$0xff]
        %v4366 = vld [vmem:[%s8 + $0x8] sm:$0xff]
        %v4367 = vld [vmem:[%s8 + $0x10] sm:$0xff]
        %v4368 = vld [vmem:[%s8 + $0x18] sm:$0xff]
        %4370 = vset.pattern.permute.xlu0 0
        %4371 = vperm.xlu0 %4370, %v4365
        %v4372 = vpop.permute.xlu0 %4371
        %4375 = vset.pattern.permute.xlu0 0
        %4376 = vperm.xlu0 %4375, %v4366
        %v4377 = vpop.permute.xlu0 %4376
        %4380 = vset.pattern.permute.xlu0 0
        %4381 = vperm.xlu0 %4380, %v4367
        %v4382 = vpop.permute.xlu0 %4381
        %4385 = vset.pattern.permute.xlu0 0
        %4386 = vperm.xlu0 %4385, %v4368
        %v4387 = vpop.permute.xlu0 %4386
        %v4397 = vunpack.c.l.b16 %v4285
        %v4398 = vunpack.c.h.b16 %v4285
        %v4399 = vunpack.c.l.b16 %v4286
        %v4400 = vunpack.c.l.b16 %v4287
        %v4401 = vunpack.c.h.b16 %v4287
        %v4402 = vunpack.c.l.b16 %v4288
        %v4403 = vunpack.c.l.b16 %v4289
        %v4404 = vunpack.c.h.b16 %v4289
        %v4405 = vunpack.c.l.b16 %v4290
        %v4406 = vunpack.c.l.b16 %v4291
        %v4407 = vunpack.c.h.b16 %v4291
        %v4408 = vunpack.c.l.b16 %v4292
        %v4409 = vpack.c.b16 %v4400, %v4397
        %v4410 = vpack.c.b16 %v4401, %v4398
        %v4411 = vpack.c.b16 %v4402, %v4399
        %v4412 = vpack.c.b16 %v4406, %v4403
        %v4413 = vpack.c.b16 %v4407, %v4404
        %v4414 = vpack.c.b16 %v4408, %v4405
        %v4491 = vunpack.c.l.b16 %v4293
        %v4492 = vunpack.c.h.b16 %v4293
        %v4493 = vunpack.c.l.b16 %v4294
        %v4494 = vunpack.c.l.b16 %v4295
        %v4495 = vunpack.c.h.b16 %v4295
        %v4496 = vunpack.c.l.b16 %v4296
        %v4497 = vunpack.c.l.b16 %v4297
        %v4498 = vunpack.c.h.b16 %v4297
        %v4499 = vunpack.c.l.b16 %v4298
        %v4500 = vunpack.c.l.b16 %v4299
        %v4501 = vunpack.c.h.b16 %v4299
        %v4502 = vunpack.c.l.b16 %v4300
        %v4503 = vunpack.c.l.b16 %v4301
        %v4504 = vunpack.c.h.b16 %v4301
        %v4505 = vunpack.c.l.b16 %v4302
        %v4506 = vunpack.c.l.b16 %v4303
        %v4507 = vunpack.c.h.b16 %v4303
        %v4508 = vunpack.c.l.b16 %v4304
        %v4509 = vunpack.c.l.b16 %v4305
        %v4510 = vunpack.c.h.b16 %v4305
        %v4511 = vunpack.c.l.b16 %v4306
        %v4512 = vunpack.c.l.b16 %v4307
        %v4513 = vunpack.c.h.b16 %v4307
        %v4514 = vunpack.c.l.b16 %v4308
        %v4515 = vunpack.c.l.b16 %v4309
        %v4516 = vunpack.c.h.b16 %v4309
        %v4517 = vunpack.c.l.b16 %v4310
        %v4518 = vunpack.c.l.b16 %v4311
        %v4519 = vunpack.c.h.b16 %v4311
        %v4520 = vunpack.c.l.b16 %v4312
        %v4521 = vunpack.c.l.b16 %v4313
        %v4522 = vunpack.c.h.b16 %v4313
        %v4523 = vunpack.c.l.b16 %v4314
        %v4524 = vunpack.c.l.b16 %v4315
        %v4525 = vunpack.c.h.b16 %v4315
        %v4526 = vunpack.c.l.b16 %v4316
        %v4527 = vunpack.c.l.b16 %v4317
        %v4528 = vunpack.c.h.b16 %v4317
        %v4529 = vunpack.c.l.b16 %v4318
        %v4530 = vunpack.c.l.b16 %v4319
        %v4531 = vunpack.c.h.b16 %v4319
        %v4532 = vunpack.c.l.b16 %v4320
        %v4533 = vunpack.c.l.b16 %v4321
        %v4534 = vunpack.c.h.b16 %v4321
        %v4535 = vunpack.c.l.b16 %v4322
        %v4536 = vunpack.c.l.b16 %v4323
        %v4537 = vunpack.c.h.b16 %v4323
        %v4538 = vunpack.c.l.b16 %v4324
        %v4539 = vunpack.c.l.b16 %v4325
        %v4540 = vunpack.c.h.b16 %v4325
        %v4541 = vunpack.c.l.b16 %v4326
        %v4542 = vunpack.c.l.b16 %v4327
        %v4543 = vunpack.c.h.b16 %v4327
        %v4544 = vunpack.c.l.b16 %v4328
        %v4545 = vunpack.c.l.b16 %v4329
        %v4546 = vunpack.c.h.b16 %v4329
        %v4547 = vunpack.c.l.b16 %v4330
        %v4548 = vunpack.c.l.b16 %v4331
        %v4549 = vunpack.c.h.b16 %v4331
        %v4550 = vunpack.c.l.b16 %v4332
        %v4551 = vunpack.c.l.b16 %v4333
        %v4552 = vunpack.c.h.b16 %v4333
        %v4553 = vunpack.c.l.b16 %v4334
        %v4554 = vunpack.c.l.b16 %v4335
        %v4555 = vunpack.c.h.b16 %v4335
        %v4556 = vunpack.c.l.b16 %v4336
        %v4557 = vunpack.c.l.b16 %v4337
        %v4558 = vunpack.c.h.b16 %v4337
        %v4559 = vunpack.c.l.b16 %v4338
        %v4560 = vunpack.c.l.b16 %v4339
        %v4561 = vunpack.c.h.b16 %v4339
        %v4562 = vunpack.c.l.b16 %v4340
        %v4563 = vunpack.c.l.b16 %v4341
        %v4564 = vunpack.c.h.b16 %v4341
        %v4565 = vunpack.c.l.b16 %v4342
        %v4566 = vunpack.c.l.b16 %v4343
        %v4567 = vunpack.c.h.b16 %v4343
        %v4568 = vunpack.c.l.b16 %v4344
        %v4569 = vunpack.c.l.b16 %v4345
        %v4570 = vunpack.c.h.b16 %v4345
        %v4571 = vunpack.c.l.b16 %v4346
        %v4572 = vunpack.c.l.b16 %v4347
        %v4573 = vunpack.c.h.b16 %v4347
        %v4574 = vunpack.c.l.b16 %v4348
        %v4575 = vunpack.c.l.b16 %v4349
        %v4576 = vunpack.c.h.b16 %v4349
        %v4577 = vunpack.c.l.b16 %v4350
        %v4578 = vunpack.c.l.b16 %v4351
        %v4579 = vunpack.c.h.b16 %v4351
        %v4580 = vunpack.c.l.b16 %v4352
        %v4581 = vunpack.c.l.b16 %v4353
        %v4582 = vunpack.c.h.b16 %v4353
        %v4583 = vunpack.c.l.b16 %v4354
        %v4584 = vunpack.c.l.b16 %v4355
        %v4585 = vunpack.c.h.b16 %v4355
        %v4586 = vunpack.c.l.b16 %v4356
        %v4587 = vunpack.c.l.b16 %v4357
        %v4588 = vunpack.c.h.b16 %v4357
        %v4589 = vunpack.c.l.b16 %v4358
        %v4590 = vunpack.c.l.b16 %v4359
        %v4591 = vunpack.c.h.b16 %v4359
        %v4592 = vunpack.c.l.b16 %v4360
        %v4593 = vunpack.c.l.b16 %v4361
        %v4594 = vunpack.c.h.b16 %v4361
        %v4595 = vunpack.c.l.b16 %v4362
        %v4596 = vunpack.c.l.b16 %v4363
        %v4597 = vunpack.c.h.b16 %v4363
        %v4598 = vunpack.c.l.b16 %v4364
        %v4599 = vpack.c.b16 %v4494, %v4491
        %v4600 = vpack.c.b16 %v4495, %v4492
        %v4601 = vpack.c.b16 %v4496, %v4493
        %v4602 = vpack.c.b16 %v4500, %v4497
        %v4603 = vpack.c.b16 %v4501, %v4498
        %v4604 = vpack.c.b16 %v4502, %v4499
        %v4605 = vpack.c.b16 %v4506, %v4503
        %v4606 = vpack.c.b16 %v4507, %v4504
        %v4607 = vpack.c.b16 %v4508, %v4505
        %v4608 = vpack.c.b16 %v4512, %v4509
        %v4609 = vpack.c.b16 %v4513, %v4510
        %v4610 = vpack.c.b16 %v4514, %v4511
        %v4611 = vpack.c.b16 %v4518, %v4515
        %v4612 = vpack.c.b16 %v4519, %v4516
        %v4613 = vpack.c.b16 %v4520, %v4517
        %v4614 = vpack.c.b16 %v4524, %v4521
        %v4615 = vpack.c.b16 %v4525, %v4522
        %v4616 = vpack.c.b16 %v4526, %v4523
        %v4617 = vpack.c.b16 %v4530, %v4527
        %v4618 = vpack.c.b16 %v4531, %v4528
        %v4619 = vpack.c.b16 %v4532, %v4529
        %v4620 = vpack.c.b16 %v4536, %v4533
        %v4621 = vpack.c.b16 %v4537, %v4534
        %v4622 = vpack.c.b16 %v4538, %v4535
        %v4623 = vpack.c.b16 %v4542, %v4539
        %v4624 = vpack.c.b16 %v4543, %v4540
        %v4625 = vpack.c.b16 %v4544, %v4541
        %v4626 = vpack.c.b16 %v4548, %v4545
        %v4627 = vpack.c.b16 %v4549, %v4546
        %v4628 = vpack.c.b16 %v4550, %v4547
        %v4629 = vpack.c.b16 %v4554, %v4551
        %v4630 = vpack.c.b16 %v4555, %v4552
        %v4631 = vpack.c.b16 %v4556, %v4553
        %v4632 = vpack.c.b16 %v4560, %v4557
        %v4633 = vpack.c.b16 %v4561, %v4558
        %v4634 = vpack.c.b16 %v4562, %v4559
        %v4635 = vpack.c.b16 %v4566, %v4563
        %v4636 = vpack.c.b16 %v4567, %v4564
        %v4637 = vpack.c.b16 %v4568, %v4565
        %v4638 = vpack.c.b16 %v4572, %v4569
        %v4639 = vpack.c.b16 %v4573, %v4570
        %v4640 = vpack.c.b16 %v4574, %v4571
        %v4641 = vpack.c.b16 %v4578, %v4575
        %v4642 = vpack.c.b16 %v4579, %v4576
        %v4643 = vpack.c.b16 %v4580, %v4577
        %v4644 = vpack.c.b16 %v4584, %v4581
        %v4645 = vpack.c.b16 %v4585, %v4582
        %v4646 = vpack.c.b16 %v4586, %v4583
        %v4647 = vpack.c.b16 %v4590, %v4587
        %v4648 = vpack.c.b16 %v4591, %v4588
        %v4649 = vpack.c.b16 %v4592, %v4589
        %v4650 = vpack.c.b16 %v4596, %v4593
        %v4651 = vpack.c.b16 %v4597, %v4594
        %v4652 = vpack.c.b16 %v4598, %v4595
        %v4708 = vsel %vm2162, %v4411, 0
        %v4711 = vsel %vm2162, %v4414, 0
        %4713 = vmatprep.subr.bf16.mxu0 %v4621
        %4714 = vmatpush1.bf16.msra.mxu0 %v4620
        %4715 = vmatprep.subr.bf16.mxu0 %v4618
        %4716 = vmatpush1.bf16.msra.mxu0 %v4617
        %4717 = vmatprep.subr.bf16.mxu0 %v4615
        %4718 = vmatpush1.bf16.msra.mxu0 %v4614
        %4719 = vmatprep.subr.bf16.mxu0 %v4612
        %4720 = vmatpush1.bf16.msra.mxu0 %v4611
        %4721 = vmatprep.subr.bf16.mxu0 %v4609
        %4722 = vmatpush1.bf16.msra.mxu0 %v4608
        %4723 = vmatprep.subr.bf16.mxu0 %v4606
        %4724 = vmatpush1.bf16.msra.mxu0 %v4605
        %4725 = vmatprep.subr.bf16.mxu0 %v4603
        %4726 = vmatpush1.bf16.msra.mxu0 %v4602
        %4727 = vmatprep.subr.bf16.mxu0 %v4600
        %4728 = vmatpush1.bf16.msra.mxu0 %v4599
        %4729 = vmatprep.subr.bf16.mxu0 %v4645
        %4730 = vmatpush2.bf16.msra.mxu0 %v4644
        %4731 = vmatprep.subr.bf16.mxu0 %v4642
        %4732 = vmatpush2.bf16.msra.mxu0 %v4641
        %4733 = vmatprep.subr.bf16.mxu0 %v4639
        %4734 = vmatpush2.bf16.msra.mxu0 %v4638
        %4735 = vmatprep.subr.bf16.mxu0 %v4636
        %4736 = vmatpush2.bf16.msra.mxu0 %v4635
        %4737 = vmatprep.subr.bf16.mxu0 %v4633
        %4738 = vmatpush2.bf16.msra.mxu0 %v4632
        %4739 = vmatprep.subr.bf16.mxu0 %v4630
        %4740 = vmatpush2.bf16.msra.mxu0 %v4629
        %4741 = vmatprep.subr.bf16.mxu0 %v4627
        %4742 = vmatpush2.bf16.msra.mxu0 %v4626
        %4743 = vmatprep.subr.bf16.mxu0 %v4624
        %4744 = vmatpush2.bf16.msra.mxu0 %v4623
        %4745 = vmatprep.mubr.bf16.mxu0 %v4410
        %4746 = vmatmul.mubr.bf16.gmra.mxu0 %v4409
        %v4747 = vpop.f32.mrf.mxu0
        %v4748 = vadd.f32 %v4372, %v4747
        %v4749 = vpop.f32.mrf.mxu0
        %v4750 = vadd.f32 %v4372, %v4749
        %v4751 = vpop.f32.mrf.mxu0
        %v4752 = vadd.f32 %v4377, %v4751
        %v4753 = vpop.f32.mrf.mxu0
        %v4754 = vadd.f32 %v4377, %v4753
        %4755 = vmatprep.mubr.bf16.mxu0 %v4413
        %4756 = vmatmul.mubr.bf16.gmra.mxu0 %v4412
        %v4757 = vpop.f32.mrf.mxu0
        %v4758 = vadd.f32 %v4382, %v4757
        %v4759 = vpop.f32.mrf.mxu0
        %v4760 = vadd.f32 %v4382, %v4759
        %v4761 = vpop.f32.mrf.mxu0
        %v4762 = vadd.f32 %v4387, %v4761
        %v4763 = vpop.f32.mrf.mxu0
        %v4764 = vadd.f32 %v4387, %v4763
        %4765 = vdwg.mxu0
        %4766 = vmatprep.subr.bf16.mxu0 0
        %4767 = vmatpush1.bf16.msra.mxu0 0
        %4768 = vmatprep.subr.bf16.mxu0 0
        %4769 = vmatpush1.bf16.msra.mxu0 0
        %4770 = vmatprep.subr.bf16.mxu0 0
        %4771 = vmatpush1.bf16.msra.mxu0 0
        %4772 = vmatprep.subr.bf16.mxu0 0
        %4773 = vmatpush1.bf16.msra.mxu0 0
        %4774 = vmatprep.subr.bf16.mxu0 0
        %4775 = vmatpush1.bf16.msra.mxu0 0
        %4776 = vmatprep.subr.bf16.mxu0 0
        %4777 = vmatpush1.bf16.msra.mxu0 0
        %4778 = vmatprep.subr.bf16.mxu0 %v4651
        %4779 = vmatpush1.bf16.msra.mxu0 %v4650
        %4780 = vmatprep.subr.bf16.mxu0 %v4648
        %4781 = vmatpush1.bf16.msra.mxu0 %v4647
        %4782 = vmatprep.subr.bf16.mxu0 0
        %4783 = vmatpush2.bf16.msra.mxu0 0
        %4784 = vmatprep.subr.bf16.mxu0 0
        %4785 = vmatpush2.bf16.msra.mxu0 0
        %4786 = vmatprep.subr.bf16.mxu0 0
        %4787 = vmatpush2.bf16.msra.mxu0 0
        %4788 = vmatprep.subr.bf16.mxu0 0
        %4789 = vmatpush2.bf16.msra.mxu0 0
        %4790 = vmatprep.subr.bf16.mxu0 0
        %4791 = vmatpush2.bf16.msra.mxu0 0
        %4792 = vmatprep.subr.bf16.mxu0 0
        %4793 = vmatpush2.bf16.msra.mxu0 0
        %4794 = vmatprep.subr.bf16.mxu0 0
        %4795 = vmatpush2.bf16.msra.mxu0 0
        %4796 = vmatprep.subr.bf16.mxu0 0
        %4797 = vmatpush2.bf16.msra.mxu0 0
        %4798 = vmatprep.mubr.bf16.mxu0 0
        %4799 = vmatmul.mubr.bf16.gmra.mxu0 %v4708
        %v4800 = vpop.f32.mrf.mxu0
        %v4801 = vadd.f32 %v4748, %v4800
        %v4802 = vpop.f32.mrf.mxu0
        %v4803 = vadd.f32 %v4750, %v4802
        %v4804 = vpop.f32.mrf.mxu0
        %v4805 = vadd.f32 %v4752, %v4804
        %v4806 = vpop.f32.mrf.mxu0
        %v4807 = vadd.f32 %v4754, %v4806
        %4808 = vmatprep.mubr.bf16.mxu0 0
        %4809 = vmatmul.mubr.bf16.gmra.mxu0 %v4711
        %v4810 = vpop.f32.mrf.mxu0
        %v4811 = vadd.f32 %v4758, %v4810
        %v4812 = vpop.f32.mrf.mxu0
        %v4813 = vadd.f32 %v4760, %v4812
        %v4814 = vpop.f32.mrf.mxu0
        %v4815 = vadd.f32 %v4762, %v4814
        %v4816 = vpop.f32.mrf.mxu0
        %v4817 = vadd.f32 %v4764, %v4816
        %4818 = vdwg.mxu0
        %4819 = vmatprep.subr.bf16.mxu0 0
        %4820 = vmatpush1.bf16.msra.mxu0 %v4622
        %4821 = vmatprep.subr.bf16.mxu0 0
        %4822 = vmatpush1.bf16.msra.mxu0 %v4619
        %4823 = vmatprep.subr.bf16.mxu0 0
        %4824 = vmatpush1.bf16.msra.mxu0 %v4616
        %4825 = vmatprep.subr.bf16.mxu0 0
        %4826 = vmatpush1.bf16.msra.mxu0 %v4613
        %4827 = vmatprep.subr.bf16.mxu0 0
        %4828 = vmatpush1.bf16.msra.mxu0 %v4610
        %4829 = vmatprep.subr.bf16.mxu0 0
        %4830 = vmatpush1.bf16.msra.mxu0 %v4607
        %4831 = vmatprep.subr.bf16.mxu0 0
        %4832 = vmatpush1.bf16.msra.mxu0 %v4604
        %4833 = vmatprep.subr.bf16.mxu0 0
        %4834 = vmatpush1.bf16.msra.mxu0 %v4601
        %4835 = vmatprep.subr.bf16.mxu0 0
        %4836 = vmatpush2.bf16.msra.mxu0 %v4646
        %4837 = vmatprep.subr.bf16.mxu0 0
        %4838 = vmatpush2.bf16.msra.mxu0 %v4643
        %4839 = vmatprep.subr.bf16.mxu0 0
        %4840 = vmatpush2.bf16.msra.mxu0 %v4640
        %4841 = vmatprep.subr.bf16.mxu0 0
        %4842 = vmatpush2.bf16.msra.mxu0 %v4637
        %4843 = vmatprep.subr.bf16.mxu0 0
        %4844 = vmatpush2.bf16.msra.mxu0 %v4634
        %4845 = vmatprep.subr.bf16.mxu0 0
        %4846 = vmatpush2.bf16.msra.mxu0 %v4631
        %4847 = vmatprep.subr.bf16.mxu0 0
        %4848 = vmatpush2.bf16.msra.mxu0 %v4628
        %4849 = vmatprep.subr.bf16.mxu0 0
        %4850 = vmatpush2.bf16.msra.mxu0 %v4625
        %4851 = vmatprep.mubr.bf16.mxu0 %v4410
        %4852 = vmatmul.mubr.bf16.gmra.mxu0 %v4409
        %v4853 = vpop.f32.mrf.mxu0
        %v4854 = vadd.f32 %v4372, %v4853
        %v4855 = vpop.f32.mrf.mxu0
        %v4856 = vpop.f32.mrf.mxu0
        %v4857 = vadd.f32 %v4377, %v4856
        %v4858 = vpop.f32.mrf.mxu0
        %4859 = vmatprep.mubr.bf16.mxu0 %v4413
        %4860 = vmatmul.mubr.bf16.gmra.mxu0 %v4412
        %v4861 = vpop.f32.mrf.mxu0
        %v4862 = vadd.f32 %v4382, %v4861
        %v4863 = vpop.f32.mrf.mxu0
        %v4864 = vpop.f32.mrf.mxu0
        %v4865 = vadd.f32 %v4387, %v4864
        %v4866 = vpop.f32.mrf.mxu0
        %4867 = vdwg.mxu0
        %4868 = vmatprep.subr.bf16.mxu0 0
        %4869 = vmatpush1.bf16.msra.mxu0 0
        %4870 = vmatprep.subr.bf16.mxu0 0
        %4871 = vmatpush1.bf16.msra.mxu0 0
        %4872 = vmatprep.subr.bf16.mxu0 0
        %4873 = vmatpush1.bf16.msra.mxu0 0
        %4874 = vmatprep.subr.bf16.mxu0 0
        %4875 = vmatpush1.bf16.msra.mxu0 0
        %4876 = vmatprep.subr.bf16.mxu0 0
        %4877 = vmatpush1.bf16.msra.mxu0 0
        %4878 = vmatprep.subr.bf16.mxu0 0
        %4879 = vmatpush1.bf16.msra.mxu0 0
        %4880 = vmatprep.subr.bf16.mxu0 0
        %4881 = vmatpush1.bf16.msra.mxu0 %v4652
        %4882 = vmatprep.subr.bf16.mxu0 0
        %4883 = vmatpush1.bf16.msra.mxu0 %v4649
        %4884 = vmatprep.subr.bf16.mxu0 0
        %4885 = vmatpush2.bf16.msra.mxu0 0
        %4886 = vmatprep.subr.bf16.mxu0 0
        %4887 = vmatpush2.bf16.msra.mxu0 0
        %4888 = vmatprep.subr.bf16.mxu0 0
        %4889 = vmatpush2.bf16.msra.mxu0 0
        %4890 = vmatprep.subr.bf16.mxu0 0
        %4891 = vmatpush2.bf16.msra.mxu0 0
        %4892 = vmatprep.subr.bf16.mxu0 0
        %4893 = vmatpush2.bf16.msra.mxu0 0
        %4894 = vmatprep.subr.bf16.mxu0 0
        %4895 = vmatpush2.bf16.msra.mxu0 0
        %4896 = vmatprep.subr.bf16.mxu0 0
        %4897 = vmatpush2.bf16.msra.mxu0 0
        %4898 = vmatprep.subr.bf16.mxu0 0
        %4899 = vmatpush2.bf16.msra.mxu0 0
        %4900 = vmatprep.mubr.bf16.mxu0 0
        %4901 = vmatmul.mubr.bf16.gmra.mxu0 %v4708
        %v4902 = vpop.f32.mrf.mxu0
        %v4903 = vadd.f32 %v4854, %v4902
        %v4904 = vpop.f32.mrf.mxu0
        %v4905 = vpop.f32.mrf.mxu0
        %v4906 = vadd.f32 %v4857, %v4905
        %v4907 = vpop.f32.mrf.mxu0
        %4908 = vmatprep.mubr.bf16.mxu0 0
        %4909 = vmatmul.mubr.bf16.gmra.mxu0 %v4711
        %v4910 = vpop.f32.mrf.mxu0
        %v4911 = vadd.f32 %v4862, %v4910
        %v4912 = vpop.f32.mrf.mxu0
        %v4913 = vpop.f32.mrf.mxu0
        %v4914 = vadd.f32 %v4865, %v4913
        %v4915 = vpop.f32.mrf.mxu0
        %4916 = vdwg.mxu0
        %vm4917 = vcmp.ge.f32.partialorder %v4801, 0.0
        %vm4918 = vcmp.ge.f32.partialorder %v4803, 0.0
        %vm4919 = vcmp.ge.f32.partialorder %v4903, 0.0
        %vm4920 = vcmp.ge.f32.partialorder %v4805, 0.0
        %vm4921 = vcmp.ge.f32.partialorder %v4807, 0.0
        %vm4922 = vcmp.ge.f32.partialorder %v4906, 0.0
        %vm4923 = vcmp.ge.f32.partialorder %v4811, 0.0
        %vm4924 = vcmp.ge.f32.partialorder %v4813, 0.0
        %vm4925 = vcmp.ge.f32.partialorder %v4911, 0.0
        %vm4926 = vcmp.ge.f32.partialorder %v4815, 0.0
        %vm4927 = vcmp.ge.f32.partialorder %v4817, 0.0
        %vm4928 = vcmp.ge.f32.partialorder %v4914, 0.0
        %v4929 = vmul.f32 %v4801, 0.1
        %v4930 = vmul.f32 %v4803, 0.1
        %v4931 = vmul.f32 %v4903, 0.1
        %v4932 = vmul.f32 %v4805, 0.1
        %v4933 = vmul.f32 %v4807, 0.1
        %v4934 = vmul.f32 %v4906, 0.1
        %v4935 = vmul.f32 %v4811, 0.1
        %v4936 = vmul.f32 %v4813, 0.1
        %v4937 = vmul.f32 %v4911, 0.1
        %v4938 = vmul.f32 %v4815, 0.1
        %v4939 = vmul.f32 %v4817, 0.1
        %v4940 = vmul.f32 %v4914, 0.1
        %v4941 = vsel %vm4917, %v4801, %v4929
        %v4942 = vsel %vm4918, %v4803, %v4930
        %v4943 = vsel %vm4919, %v4903, %v4931
        %v4944 = vsel %vm4920, %v4805, %v4932
        %v4945 = vsel %vm4921, %v4807, %v4933
        %v4946 = vsel %vm4922, %v4906, %v4934
        %v4947 = vsel %vm4923, %v4811, %v4935
        %v4948 = vsel %vm4924, %v4813, %v4936
        %v4949 = vsel %vm4925, %v4911, %v4937
        %v4950 = vsel %vm4926, %v4815, %v4938
        %v4951 = vsel %vm4927, %v4817, %v4939
        %v4952 = vsel %vm4928, %v4914, %v4940
        %v4953 = vsel %vm1133, %v4941, 0.0
        %v4954 = vsel %vm1134, %v4942, 0.0
        %v4955 = vsel %vm1135, %v4943, 0.0
        %v4956 = vsel %vm1133, %v4944, 0.0
        %v4957 = vsel %vm1134, %v4945, 0.0
        %v4958 = vsel %vm1135, %v4946, 0.0
        %v4959 = vsel %vm1133, %v4947, 0.0
        %v4960 = vsel %vm1134, %v4948, 0.0
        %v4961 = vsel %vm1135, %v4949, 0.0
        %v4962 = vsel %vm1133, %v4950, 0.0
        %v4963 = vsel %vm1134, %v4951, 0.0
        %v4964 = vsel %vm1135, %v4952, 0.0
        %v4965 = vpack.c.bf16 %v4956, %v4953
        %v4966 = vpack.c.bf16 %v4957, %v4954
        %v4967 = vpack.c.bf16 %v4958, %v4955
        %v4968 = vpack.c.bf16 %v4962, %v4959
        %v4969 = vpack.c.bf16 %v4963, %v4960
        %v4970 = vpack.c.bf16 %v4964, %v4961
        %v4977 = vunpack.c.l.b16 %v4965
        %v4978 = vunpack.c.l.b16 %v4966
        %v4979 = vunpack.c.l.b16 %v4967
        %v4980 = vunpack.c.h.b16 %v4965
        %v4981 = vunpack.c.h.b16 %v4966
        %v4982 = vunpack.c.h.b16 %v4967
        %v4983 = vunpack.c.l.b16 %v4968
        %v4984 = vunpack.c.l.b16 %v4969
        %v4985 = vunpack.c.l.b16 %v4970
        %v4986 = vunpack.c.h.b16 %v4968
        %v4987 = vunpack.c.h.b16 %v4969
        %v4988 = vunpack.c.h.b16 %v4970
        %v4989 = vpack.c.b16 %v4978, %v4977
        %v4990 = vpack.c.b16 %v4979, %v4979
        %v4991 = vpack.c.b16 %v4981, %v4980
        %v4992 = vpack.c.b16 %v4982, %v4982
        %v4993 = vpack.c.b16 %v4984, %v4983
        %v4994 = vpack.c.b16 %v4985, %v4985
        %v4995 = vpack.c.b16 %v4987, %v4986
        %v4996 = vpack.c.b16 %v4988, %v4988
        %5005 = vst [vmem:[#allocation2 + $0x4] sm:$0xff] %v4989
        %5006 = vst.msk [vmem:[#allocation2 + $0xc] sm:$0xf] %vm562, %v4990
        %5007 = vst [vmem:[#allocation2 + $0x14] sm:$0xff] %v4991
        %5008 = vst.msk [vmem:[#allocation2 + $0x1c] sm:$0xf] %vm562, %v4992
        %5009 = vst [vmem:[#allocation2 + $0x24] sm:$0xff] %v4993
        %5010 = vst.msk [vmem:[#allocation2 + $0x2c] sm:$0xf] %vm562, %v4994
        %5011 = vst [vmem:[#allocation2 + $0x34] sm:$0xff] %v4995
        %5012 = vst.msk [vmem:[#allocation2 + $0x3c] sm:$0xf] %vm562, %v4996
        %v5013 = vld [vmem:[#allocation2] sm:$0xff]
        %v5014 = vld [vmem:[#allocation2 + $0x8] sm:$0xff]
        %v5015 = vld [vmem:[#allocation2 + $0x10] sm:$0xff]
        %v5016 = vld [vmem:[#allocation2 + $0x18] sm:$0xff]
        %v5017 = vld [vmem:[#allocation2 + $0x20] sm:$0xff]
        %v5018 = vld [vmem:[#allocation2 + $0x28] sm:$0xff]
        %v5019 = vld [vmem:[#allocation2 + $0x30] sm:$0xff]
        %v5020 = vld [vmem:[#allocation2 + $0x38] sm:$0xff]
        %5029 = vrot.lane.b32.xlu0 %v5013, 19
        %v5030 = vpop.permute.xlu0 %5029
        %5031 = vrot.lane.b32.xlu0 %v5014, 19
        %v5032 = vpop.permute.xlu0 %5031
        %5033 = vrot.lane.b32.xlu0 %v5015, 19
        %v5034 = vpop.permute.xlu0 %5033
        %5035 = vrot.lane.b32.xlu0 %v5016, 19
        %v5036 = vpop.permute.xlu0 %5035
        %5037 = vrot.lane.b32.xlu0 %v5017, 19
        %v5038 = vpop.permute.xlu0 %5037
        %5039 = vrot.lane.b32.xlu0 %v5018, 19
        %v5040 = vpop.permute.xlu0 %5039
        %5041 = vrot.lane.b32.xlu0 %v5019, 19
        %v5042 = vpop.permute.xlu0 %5041
        %5043 = vrot.lane.b32.xlu0 %v5020, 19
        %v5044 = vpop.permute.xlu0 %5043
        %v5045 = vrot.slane %v5030, 4
        %v5046 = vrot.slane %v5032, 4
        %v5047 = vrot.slane %v5034, 4
        %v5048 = vrot.slane %v5036, 4
        %v5049 = vrot.slane %v5038, 4
        %v5050 = vrot.slane %v5040, 4
        %v5051 = vrot.slane %v5042, 4
        %v5052 = vrot.slane %v5044, 4
        %v5053 = vsel %vm549, %v5045, %v5046
        %v5054 = vsel %vm551, %v5030, %v5053
        %v5055 = vsel %vm551, %v5032, %v5046
        %v5056 = vsel %vm549, %v5047, %v5048
        %v5057 = vsel %vm551, %v5034, %v5056
        %v5058 = vsel %vm551, %v5036, %v5048
        %v5059 = vsel %vm549, %v5049, %v5050
        %v5060 = vsel %vm551, %v5038, %v5059
        %v5061 = vsel %vm551, %v5040, %v5050
        %v5062 = vsel %vm549, %v5051, %v5052
        %v5063 = vsel %vm551, %v5042, %v5062
        %v5064 = vsel %vm551, %v5044, %v5052
        %5073 = vst [vmem:[#allocation3] sm:$0xff] %v5054
        %5074 = vst.msk [vmem:[#allocation3 + $0x8] sm:$0xf] %vm562, %v5055
        %5075 = vst [vmem:[#allocation3 + $0xc] sm:$0xff] %v5057
        %5076 = vst.msk [vmem:[#allocation3 + $0x14] sm:$0xf] %vm562, %v5058
        %5077 = vst [vmem:[#allocation3 + $0x18] sm:$0xff] %v5060
        %5078 = vst.msk [vmem:[#allocation3 + $0x20] sm:$0xf] %vm562, %v5061
        %5079 = vst [vmem:[#allocation3 + $0x24] sm:$0xff] %v5063
        %5080 = vst.msk [vmem:[#allocation3 + $0x2c] sm:$0xf] %vm562, %v5064
        %v5081 = vld [vmem:[#allocation2] sm:$0xff]
        %v5082 = vld [vmem:[#allocation2 + $0x8] sm:$0xff]
        %v5083 = vld [vmem:[#allocation2 + $0x10] sm:$0xff]
        %v5084 = vld [vmem:[#allocation2 + $0x18] sm:$0xff]
        %v5085 = vld [vmem:[#allocation2 + $0x20] sm:$0xff]
        %v5086 = vld [vmem:[#allocation2 + $0x28] sm:$0xff]
        %v5087 = vld [vmem:[#allocation2 + $0x30] sm:$0xff]
        %v5088 = vld [vmem:[#allocation2 + $0x38] sm:$0xff]
        %5097 = vrot.lane.b32.xlu0 %v5081, 18
        %v5098 = vpop.permute.xlu0 %5097
        %5099 = vrot.lane.b32.xlu0 %v5082, 18
        %v5100 = vpop.permute.xlu0 %5099
        %5101 = vrot.lane.b32.xlu0 %v5083, 18
        %v5102 = vpop.permute.xlu0 %5101
        %5103 = vrot.lane.b32.xlu0 %v5084, 18
        %v5104 = vpop.permute.xlu0 %5103
        %5105 = vrot.lane.b32.xlu0 %v5085, 18
        %v5106 = vpop.permute.xlu0 %5105
        %5107 = vrot.lane.b32.xlu0 %v5086, 18
        %v5108 = vpop.permute.xlu0 %5107
        %5109 = vrot.lane.b32.xlu0 %v5087, 18
        %v5110 = vpop.permute.xlu0 %5109
        %5111 = vrot.lane.b32.xlu0 %v5088, 18
        %v5112 = vpop.permute.xlu0 %5111
        %v5113 = vrot.slane %v5098, 4
        %v5114 = vrot.slane %v5100, 4
        %v5115 = vrot.slane %v5102, 4
        %v5116 = vrot.slane %v5104, 4
        %v5117 = vrot.slane %v5106, 4
        %v5118 = vrot.slane %v5108, 4
        %v5119 = vrot.slane %v5110, 4
        %v5120 = vrot.slane %v5112, 4
        %v5121 = vsel %vm549, %v5113, %v5114
        %v5122 = vsel %vm579, %v5098, %v5121
        %v5123 = vsel %vm579, %v5100, %v5114
        %v5124 = vsel %vm549, %v5115, %v5116
        %v5125 = vsel %vm579, %v5102, %v5124
        %v5126 = vsel %vm579, %v5104, %v5116
        %v5127 = vsel %vm549, %v5117, %v5118
        %v5128 = vsel %vm579, %v5106, %v5127
        %v5129 = vsel %vm579, %v5108, %v5118
        %v5130 = vsel %vm549, %v5119, %v5120
        %v5131 = vsel %vm579, %v5110, %v5130
        %v5132 = vsel %vm579, %v5112, %v5120
        %5141 = vst [vmem:[#allocation3 + $0x30] sm:$0xff] %v5122
        %5142 = vst.msk [vmem:[#allocation3 + $0x38] sm:$0xf] %vm562, %v5123
        %5143 = vst [vmem:[#allocation3 + $0x3c] sm:$0xff] %v5125
        %5144 = vst.msk [vmem:[#allocation3 + $0x44] sm:$0xf] %vm562, %v5126
        %5145 = vst [vmem:[#allocation3 + $0x48] sm:$0xff] %v5128
        %5146 = vst.msk [vmem:[#allocation3 + $0x50] sm:$0xf] %vm562, %v5129
        %5147 = vst [vmem:[#allocation3 + $0x54] sm:$0xff] %v5131
        %5148 = vst.msk [vmem:[#allocation3 + $0x5c] sm:$0xf] %vm562, %v5132
        %v5149 = vld [vmem:[#allocation2] sm:$0xff]
        %v5150 = vld [vmem:[#allocation2 + $0x8] sm:$0xff]
        %v5151 = vld [vmem:[#allocation2 + $0x10] sm:$0xff]
        %v5152 = vld [vmem:[#allocation2 + $0x18] sm:$0xff]
        %v5153 = vld [vmem:[#allocation2 + $0x20] sm:$0xff]
        %v5154 = vld [vmem:[#allocation2 + $0x28] sm:$0xff]
        %v5155 = vld [vmem:[#allocation2 + $0x30] sm:$0xff]
        %v5156 = vld [vmem:[#allocation2 + $0x38] sm:$0xff]
        %5165 = vrot.lane.b32.xlu0 %v5149, 17
        %v5166 = vpop.permute.xlu0 %5165
        %5167 = vrot.lane.b32.xlu0 %v5150, 17
        %v5168 = vpop.permute.xlu0 %5167
        %5169 = vrot.lane.b32.xlu0 %v5151, 17
        %v5170 = vpop.permute.xlu0 %5169
        %5171 = vrot.lane.b32.xlu0 %v5152, 17
        %v5172 = vpop.permute.xlu0 %5171
        %5173 = vrot.lane.b32.xlu0 %v5153, 17
        %v5174 = vpop.permute.xlu0 %5173
        %5175 = vrot.lane.b32.xlu0 %v5154, 17
        %v5176 = vpop.permute.xlu0 %5175
        %5177 = vrot.lane.b32.xlu0 %v5155, 17
        %v5178 = vpop.permute.xlu0 %5177
        %5179 = vrot.lane.b32.xlu0 %v5156, 17
        %v5180 = vpop.permute.xlu0 %5179
        %v5181 = vrot.slane %v5166, 4
        %v5182 = vrot.slane %v5168, 4
        %v5183 = vrot.slane %v5170, 4
        %v5184 = vrot.slane %v5172, 4
        %v5185 = vrot.slane %v5174, 4
        %v5186 = vrot.slane %v5176, 4
        %v5187 = vrot.slane %v5178, 4
        %v5188 = vrot.slane %v5180, 4
        %v5189 = vsel %vm549, %v5181, %v5182
        %v5190 = vsel %vm606, %v5166, %v5189
        %v5191 = vsel %vm606, %v5168, %v5182
        %v5192 = vsel %vm549, %v5183, %v5184
        %v5193 = vsel %vm606, %v5170, %v5192
        %v5194 = vsel %vm606, %v5172, %v5184
        %v5195 = vsel %vm549, %v5185, %v5186
        %v5196 = vsel %vm606, %v5174, %v5195
        %v5197 = vsel %vm606, %v5176, %v5186
        %v5198 = vsel %vm549, %v5187, %v5188
        %v5199 = vsel %vm606, %v5178, %v5198
        %v5200 = vsel %vm606, %v5180, %v5188
        %5209 = vst [vmem:[#allocation3 + $0x60] sm:$0xff] %v5190
        %5210 = vst.msk [vmem:[#allocation3 + $0x68] sm:$0xf] %vm562, %v5191
        %5211 = vst [vmem:[#allocation3 + $0x6c] sm:$0xff] %v5193
        %5212 = vst.msk [vmem:[#allocation3 + $0x74] sm:$0xf] %vm562, %v5194
        %5213 = vst [vmem:[#allocation3 + $0x78] sm:$0xff] %v5196
        %5214 = vst.msk [vmem:[#allocation3 + $0x80] sm:$0xf] %vm562, %v5197
        %5215 = vst [vmem:[#allocation3 + $0x84] sm:$0xff] %v5199
        %5216 = vst.msk [vmem:[#allocation3 + $0x8c] sm:$0xf] %vm562, %v5200
        %v5217 = vld [vmem:[#allocation2] sm:$0xff]
        %v5218 = vld [vmem:[#allocation2 + $0x8] sm:$0xff]
        %v5219 = vld [vmem:[#allocation2 + $0x10] sm:$0xff]
        %v5220 = vld [vmem:[#allocation2 + $0x18] sm:$0xff]
        %v5221 = vld [vmem:[#allocation2 + $0x20] sm:$0xff]
        %v5222 = vld [vmem:[#allocation2 + $0x28] sm:$0xff]
        %v5223 = vld [vmem:[#allocation2 + $0x30] sm:$0xff]
        %v5224 = vld [vmem:[#allocation2 + $0x38] sm:$0xff]
        %5233 = vrot.lane.b32.xlu0 %v5217, 1
        %v5234 = vpop.permute.xlu0 %5233
        %5235 = vrot.lane.b32.xlu0 %v5218, 1
        %v5236 = vpop.permute.xlu0 %5235
        %5237 = vrot.lane.b32.xlu0 %v5219, 1
        %v5238 = vpop.permute.xlu0 %5237
        %5239 = vrot.lane.b32.xlu0 %v5220, 1
        %v5240 = vpop.permute.xlu0 %5239
        %5241 = vrot.lane.b32.xlu0 %v5221, 1
        %v5242 = vpop.permute.xlu0 %5241
        %5243 = vrot.lane.b32.xlu0 %v5222, 1
        %v5244 = vpop.permute.xlu0 %5243
        %5245 = vrot.lane.b32.xlu0 %v5223, 1
        %v5246 = vpop.permute.xlu0 %5245
        %5247 = vrot.lane.b32.xlu0 %v5224, 1
        %v5248 = vpop.permute.xlu0 %5247
        %v5249 = vrot.slane %v5234, 4
        %v5250 = vrot.slane %v5236, 4
        %v5251 = vrot.slane %v5238, 4
        %v5252 = vrot.slane %v5240, 4
        %v5253 = vrot.slane %v5242, 4
        %v5254 = vrot.slane %v5244, 4
        %v5255 = vrot.slane %v5246, 4
        %v5256 = vrot.slane %v5248, 4
        %v5257 = vsel %vm549, %v5249, %v5250
        %v5258 = vsel %vm633, %v5234, %v5257
        %v5259 = vsel %vm633, %v5236, %v5250
        %v5260 = vsel %vm549, %v5251, %v5252
        %v5261 = vsel %vm633, %v5238, %v5260
        %v5262 = vsel %vm633, %v5240, %v5252
        %v5263 = vsel %vm549, %v5253, %v5254
        %v5264 = vsel %vm633, %v5242, %v5263
        %v5265 = vsel %vm633, %v5244, %v5254
        %v5266 = vsel %vm549, %v5255, %v5256
        %v5267 = vsel %vm633, %v5246, %v5266
        %v5268 = vsel %vm633, %v5248, %v5256
        %5277 = vst [vmem:[#allocation3 + $0x90] sm:$0xff] %v5258
        %5278 = vst.msk [vmem:[#allocation3 + $0x98] sm:$0xf] %vm562, %v5259
        %5279 = vst [vmem:[#allocation3 + $0x9c] sm:$0xff] %v5261
        %5280 = vst.msk [vmem:[#allocation3 + $0xa4] sm:$0xf] %vm562, %v5262
        %5281 = vst [vmem:[#allocation3 + $0xa8] sm:$0xff] %v5264
        %5282 = vst.msk [vmem:[#allocation3 + $0xb0] sm:$0xf] %vm562, %v5265
        %5283 = vst [vmem:[#allocation3 + $0xb4] sm:$0xff] %v5267
        %5284 = vst.msk [vmem:[#allocation3 + $0xbc] sm:$0xf] %vm562, %v5268
        %v5285 = vld [vmem:[#allocation2 + $0x4] sm:$0xff]
        %v5286 = vld [vmem:[#allocation2 + $0xc] sm:$0xf]
        %v5287 = vld [vmem:[#allocation2 + $0x14] sm:$0xff]
        %v5288 = vld [vmem:[#allocation2 + $0x1c] sm:$0xf]
        %v5289 = vld [vmem:[#allocation2 + $0x24] sm:$0xff]
        %v5290 = vld [vmem:[#allocation2 + $0x2c] sm:$0xf]
        %v5291 = vld [vmem:[#allocation2 + $0x34] sm:$0xff]
        %v5292 = vld [vmem:[#allocation2 + $0x3c] sm:$0xf]
        %5293 = vst [vmem:[#allocation3 + $0xc0] sm:$0xff] %v5285
        %5294 = vst.msk [vmem:[#allocation3 + $0xc8] sm:$0xf] %vm562, %v5286
        %5295 = vst [vmem:[#allocation3 + $0xcc] sm:$0xff] %v5287
        %5296 = vst.msk [vmem:[#allocation3 + $0xd4] sm:$0xf] %vm562, %v5288
        %5297 = vst [vmem:[#allocation3 + $0xd8] sm:$0xff] %v5289
        %5298 = vst.msk [vmem:[#allocation3 + $0xe0] sm:$0xf] %vm562, %v5290
        %5299 = vst [vmem:[#allocation3 + $0xe4] sm:$0xff] %v5291
        %5300 = vst.msk [vmem:[#allocation3 + $0xec] sm:$0xf] %vm562, %v5292
        %v5301 = vld [vmem:[#allocation2 + $0x4] sm:$0xff]
        %v5302 = vld [vmem:[#allocation2 + $0xc] sm:$0xf]
        %v5303 = vld [vmem:[#allocation2 + $0x14] sm:$0xff]
        %v5304 = vld [vmem:[#allocation2 + $0x1c] sm:$0xf]
        %v5305 = vld [vmem:[#allocation2 + $0x24] sm:$0xff]
        %v5306 = vld [vmem:[#allocation2 + $0x2c] sm:$0xf]
        %v5307 = vld [vmem:[#allocation2 + $0x34] sm:$0xff]
        %v5308 = vld [vmem:[#allocation2 + $0x3c] sm:$0xf]
        %5317 = vrot.lane.b32.xlu0 %v5301, 127
        %v5318 = vpop.permute.xlu0 %5317
        %5319 = vrot.lane.b32.xlu0 %v5302, 127
        %v5320 = vpop.permute.xlu0 %5319
        %5321 = vrot.lane.b32.xlu0 %v5303, 127
        %v5322 = vpop.permute.xlu0 %5321
        %5323 = vrot.lane.b32.xlu0 %v5304, 127
        %v5324 = vpop.permute.xlu0 %5323
        %5325 = vrot.lane.b32.xlu0 %v5305, 127
        %v5326 = vpop.permute.xlu0 %5325
        %5327 = vrot.lane.b32.xlu0 %v5306, 127
        %v5328 = vpop.permute.xlu0 %5327
        %5329 = vrot.lane.b32.xlu0 %v5307, 127
        %v5330 = vpop.permute.xlu0 %5329
        %5331 = vrot.lane.b32.xlu0 %v5308, 127
        %v5332 = vpop.permute.xlu0 %5331
        %v5333 = vrot.slane %v5318, 4
        %v5334 = vrot.slane %v5320, 4
        %v5335 = vrot.slane %v5322, 4
        %v5336 = vrot.slane %v5324, 4
        %v5337 = vrot.slane %v5326, 4
        %v5338 = vrot.slane %v5328, 4
        %v5339 = vrot.slane %v5330, 4
        %v5340 = vrot.slane %v5332, 4
        %v5341 = vsel %vm549, %v5333, %v5334
        %v5342 = vsel %vm672, %v5318, %v5341
        %v5343 = vsel %vm549, %v5335, %v5336
        %v5344 = vsel %vm672, %v5322, %v5343
        %v5345 = vsel %vm549, %v5337, %v5338
        %v5346 = vsel %vm672, %v5326, %v5345
        %v5347 = vsel %vm549, %v5339, %v5340
        %v5348 = vsel %vm672, %v5330, %v5347
        %5357 = vst [vmem:[#allocation3 + $0xf0] sm:$0xff] %v5342
        %5358 = vst.msk [vmem:[#allocation3 + $0xf8] sm:$0xf] %vm562, %v5320
        %5359 = vst [vmem:[#allocation3 + $0xfc] sm:$0xff] %v5344
        %5360 = vst.msk [vmem:[#allocation3 + $0x104] sm:$0xf] %vm562, %v5324
        %5361 = vst [vmem:[#allocation3 + $0x108] sm:$0xff] %v5346
        %5362 = vst.msk [vmem:[#allocation3 + $0x110] sm:$0xf] %vm562, %v5328
        %5363 = vst [vmem:[#allocation3 + $0x114] sm:$0xff] %v5348
        %5364 = vst.msk [vmem:[#allocation3 + $0x11c] sm:$0xf] %vm562, %v5332
        %v5365 = vld [vmem:[#allocation2 + $0x4] sm:$0xff]
        %v5366 = vld [vmem:[#allocation2 + $0xc] sm:$0xf]
        %v5367 = vld [vmem:[#allocation2 + $0x14] sm:$0xff]
        %v5368 = vld [vmem:[#allocation2 + $0x1c] sm:$0xf]
        %v5369 = vld [vmem:[#allocation2 + $0x24] sm:$0xff]
        %v5370 = vld [vmem:[#allocation2 + $0x2c] sm:$0xf]
        %v5371 = vld [vmem:[#allocation2 + $0x34] sm:$0xff]
        %v5372 = vld [vmem:[#allocation2 + $0x3c] sm:$0xf]
        %5381 = vrot.lane.b32.xlu0 %v5365, 111
        %v5382 = vpop.permute.xlu0 %5381
        %5383 = vrot.lane.b32.xlu0 %v5366, 111
        %v5384 = vpop.permute.xlu0 %5383
        %5385 = vrot.lane.b32.xlu0 %v5367, 111
        %v5386 = vpop.permute.xlu0 %5385
        %5387 = vrot.lane.b32.xlu0 %v5368, 111
        %v5388 = vpop.permute.xlu0 %5387
        %5389 = vrot.lane.b32.xlu0 %v5369, 111
        %v5390 = vpop.permute.xlu0 %5389
        %5391 = vrot.lane.b32.xlu0 %v5370, 111
        %v5392 = vpop.permute.xlu0 %5391
        %5393 = vrot.lane.b32.xlu0 %v5371, 111
        %v5394 = vpop.permute.xlu0 %5393
        %5395 = vrot.lane.b32.xlu0 %v5372, 111
        %v5396 = vpop.permute.xlu0 %5395
        %v5397 = vrot.slane %v5382, 4
        %v5398 = vrot.slane %v5384, 4
        %v5399 = vrot.slane %v5386, 4
        %v5400 = vrot.slane %v5388, 4
        %v5401 = vrot.slane %v5390, 4
        %v5402 = vrot.slane %v5392, 4
        %v5403 = vrot.slane %v5394, 4
        %v5404 = vrot.slane %v5396, 4
        %v5405 = vsel %vm549, %v5397, %v5398
        %v5406 = vsel %vm697, %v5382, %v5405
        %v5407 = vsel %vm549, %v5399, %v5400
        %v5408 = vsel %vm697, %v5386, %v5407
        %v5409 = vsel %vm549, %v5401, %v5402
        %v5410 = vsel %vm697, %v5390, %v5409
        %v5411 = vsel %vm549, %v5403, %v5404
        %v5412 = vsel %vm697, %v5394, %v5411
        %5421 = vst [vmem:[#allocation3 + $0x120] sm:$0xff] %v5406
        %5422 = vst.msk [vmem:[#allocation3 + $0x128] sm:$0xf] %vm562, %v5384
        %5423 = vst [vmem:[#allocation3 + $0x12c] sm:$0xff] %v5408
        %5424 = vst.msk [vmem:[#allocation3 + $0x134] sm:$0xf] %vm562, %v5388
        %5425 = vst [vmem:[#allocation3 + $0x138] sm:$0xff] %v5410
        %5426 = vst.msk [vmem:[#allocation3 + $0x140] sm:$0xf] %vm562, %v5392
        %5427 = vst [vmem:[#allocation3 + $0x144] sm:$0xff] %v5412
        %5428 = vst.msk [vmem:[#allocation3 + $0x14c] sm:$0xf] %vm562, %v5396
        %v5429 = vld [vmem:[#allocation2 + $0x4] sm:$0xff]
        %v5430 = vld [vmem:[#allocation2 + $0xc] sm:$0xf]
        %v5431 = vld [vmem:[#allocation2 + $0x14] sm:$0xff]
        %v5432 = vld [vmem:[#allocation2 + $0x1c] sm:$0xf]
        %v5433 = vld [vmem:[#allocation2 + $0x24] sm:$0xff]
        %v5434 = vld [vmem:[#allocation2 + $0x2c] sm:$0xf]
        %v5435 = vld [vmem:[#allocation2 + $0x34] sm:$0xff]
        %v5436 = vld [vmem:[#allocation2 + $0x3c] sm:$0xf]
        %5445 = vrot.lane.b32.xlu0 %v5429, 110
        %v5446 = vpop.permute.xlu0 %5445
        %5447 = vrot.lane.b32.xlu0 %v5430, 110
        %v5448 = vpop.permute.xlu0 %5447
        %5449 = vrot.lane.b32.xlu0 %v5431, 110
        %v5450 = vpop.permute.xlu0 %5449
        %5451 = vrot.lane.b32.xlu0 %v5432, 110
        %v5452 = vpop.permute.xlu0 %5451
        %5453 = vrot.lane.b32.xlu0 %v5433, 110
        %v5454 = vpop.permute.xlu0 %5453
        %5455 = vrot.lane.b32.xlu0 %v5434, 110
        %v5456 = vpop.permute.xlu0 %5455
        %5457 = vrot.lane.b32.xlu0 %v5435, 110
        %v5458 = vpop.permute.xlu0 %5457
        %5459 = vrot.lane.b32.xlu0 %v5436, 110
        %v5460 = vpop.permute.xlu0 %5459
        %v5461 = vrot.slane %v5446, 4
        %v5462 = vrot.slane %v5448, 4
        %v5463 = vrot.slane %v5450, 4
        %v5464 = vrot.slane %v5452, 4
        %v5465 = vrot.slane %v5454, 4
        %v5466 = vrot.slane %v5456, 4
        %v5467 = vrot.slane %v5458, 4
        %v5468 = vrot.slane %v5460, 4
        %v5469 = vsel %vm549, %v5461, %v5462
        %v5470 = vsel %vm722, %v5446, %v5469
        %v5471 = vsel %vm549, %v5463, %v5464
        %v5472 = vsel %vm722, %v5450, %v5471
        %v5473 = vsel %vm549, %v5465, %v5466
        %v5474 = vsel %vm722, %v5454, %v5473
        %v5475 = vsel %vm549, %v5467, %v5468
        %v5476 = vsel %vm722, %v5458, %v5475
        %5485 = vst [vmem:[#allocation3 + $0x150] sm:$0xff] %v5470
        %5486 = vst.msk [vmem:[#allocation3 + $0x158] sm:$0xf] %vm562, %v5448
        %5487 = vst [vmem:[#allocation3 + $0x15c] sm:$0xff] %v5472
        %5488 = vst.msk [vmem:[#allocation3 + $0x164] sm:$0xf] %vm562, %v5452
        %5489 = vst [vmem:[#allocation3 + $0x168] sm:$0xff] %v5474
        %5490 = vst.msk [vmem:[#allocation3 + $0x170] sm:$0xf] %vm562, %v5456
        %5491 = vst [vmem:[#allocation3 + $0x174] sm:$0xff] %v5476
        %5492 = vst.msk [vmem:[#allocation3 + $0x17c] sm:$0xf] %vm562, %v5460
        %v5493 = vld [vmem:[#allocation2 + $0x4] sm:$0xff]
        %v5494 = vld [vmem:[#allocation2 + $0xc] sm:$0xf]
        %v5495 = vld [vmem:[#allocation2 + $0x14] sm:$0xff]
        %v5496 = vld [vmem:[#allocation2 + $0x1c] sm:$0xf]
        %v5497 = vld [vmem:[#allocation2 + $0x24] sm:$0xff]
        %v5498 = vld [vmem:[#allocation2 + $0x2c] sm:$0xf]
        %v5499 = vld [vmem:[#allocation2 + $0x34] sm:$0xff]
        %v5500 = vld [vmem:[#allocation2 + $0x3c] sm:$0xf]
        %5509 = vrot.lane.b32.xlu0 %v5493, 109
        %v5510 = vpop.permute.xlu0 %5509
        %5511 = vrot.lane.b32.xlu0 %v5494, 109
        %v5512 = vpop.permute.xlu0 %5511
        %5513 = vrot.lane.b32.xlu0 %v5495, 109
        %v5514 = vpop.permute.xlu0 %5513
        %5515 = vrot.lane.b32.xlu0 %v5496, 109
        %v5516 = vpop.permute.xlu0 %5515
        %5517 = vrot.lane.b32.xlu0 %v5497, 109
        %v5518 = vpop.permute.xlu0 %5517
        %5519 = vrot.lane.b32.xlu0 %v5498, 109
        %v5520 = vpop.permute.xlu0 %5519
        %5521 = vrot.lane.b32.xlu0 %v5499, 109
        %v5522 = vpop.permute.xlu0 %5521
        %5523 = vrot.lane.b32.xlu0 %v5500, 109
        %v5524 = vpop.permute.xlu0 %5523
        %v5525 = vrot.slane %v5510, 4
        %v5526 = vrot.slane %v5512, 4
        %v5527 = vrot.slane %v5514, 4
        %v5528 = vrot.slane %v5516, 4
        %v5529 = vrot.slane %v5518, 4
        %v5530 = vrot.slane %v5520, 4
        %v5531 = vrot.slane %v5522, 4
        %v5532 = vrot.slane %v5524, 4
        %v5533 = vsel %vm549, %v5525, %v5526
        %v5534 = vsel %vm747, %v5510, %v5533
        %v5535 = vsel %vm549, %v5527, %v5528
        %v5536 = vsel %vm747, %v5514, %v5535
        %v5537 = vsel %vm549, %v5529, %v5530
        %v5538 = vsel %vm747, %v5518, %v5537
        %v5539 = vsel %vm549, %v5531, %v5532
        %v5540 = vsel %vm747, %v5522, %v5539
        %5549 = vst [vmem:[#allocation3 + $0x180] sm:$0xff] %v5534
        %5550 = vst.msk [vmem:[#allocation3 + $0x188] sm:$0xf] %vm562, %v5512
        %5551 = vst [vmem:[#allocation3 + $0x18c] sm:$0xff] %v5536
        %5552 = vst.msk [vmem:[#allocation3 + $0x194] sm:$0xf] %vm562, %v5516
        %5553 = vst [vmem:[#allocation3 + $0x198] sm:$0xff] %v5538
        %5554 = vst.msk [vmem:[#allocation3 + $0x1a0] sm:$0xf] %vm562, %v5520
        %5555 = vst [vmem:[#allocation3 + $0x1a4] sm:$0xff] %v5540
        %5556 = vst.msk [vmem:[#allocation3 + $0x1ac] sm:$0xf] %vm562, %v5524
        %v5557 = vld [vmem:[%s9] sm:$0x7]
        %v5558 = vld [vmem:[#allocation3] sm:$0xff]
        %v5559 = vld [vmem:[#allocation3 + $0x8] sm:$0xf]
        %v5560 = vld [vmem:[#allocation3 + $0xc] sm:$0xff]
        %v5561 = vld [vmem:[#allocation3 + $0x14] sm:$0xf]
        %v5562 = vld [vmem:[#allocation3 + $0x18] sm:$0xff]
        %v5563 = vld [vmem:[#allocation3 + $0x20] sm:$0xf]
        %v5564 = vld [vmem:[#allocation3 + $0x24] sm:$0xff]
        %v5565 = vld [vmem:[#allocation3 + $0x2c] sm:$0xf]
        %v5566 = vld [vmem:[#allocation3 + $0x30] sm:$0xff]
        %v5567 = vld [vmem:[#allocation3 + $0x38] sm:$0xf]
        %v5568 = vld [vmem:[#allocation3 + $0x3c] sm:$0xff]
        %v5569 = vld [vmem:[#allocation3 + $0x44] sm:$0xf]
        %v5570 = vld [vmem:[#allocation3 + $0x48] sm:$0xff]
        %v5571 = vld [vmem:[#allocation3 + $0x50] sm:$0xf]
        %v5572 = vld [vmem:[#allocation3 + $0x54] sm:$0xff]
        %v5573 = vld [vmem:[#allocation3 + $0x5c] sm:$0xf]
        %v5574 = vld [vmem:[#allocation3 + $0x60] sm:$0xff]
        %v5575 = vld [vmem:[#allocation3 + $0x68] sm:$0xf]
        %v5576 = vld [vmem:[#allocation3 + $0x6c] sm:$0xff]
        %v5577 = vld [vmem:[#allocation3 + $0x74] sm:$0xf]
        %v5578 = vld [vmem:[#allocation3 + $0x78] sm:$0xff]
        %v5579 = vld [vmem:[#allocation3 + $0x80] sm:$0xf]
        %v5580 = vld [vmem:[#allocation3 + $0x84] sm:$0xff]
        %v5581 = vld [vmem:[#allocation3 + $0x8c] sm:$0xf]
        %v5582 = vld [vmem:[#allocation3 + $0x90] sm:$0xff]
        %v5583 = vld [vmem:[#allocation3 + $0x98] sm:$0xf]
        %v5584 = vld [vmem:[#allocation3 + $0x9c] sm:$0xff]
        %v5585 = vld [vmem:[#allocation3 + $0xa4] sm:$0xf]
        %v5586 = vld [vmem:[#allocation3 + $0xa8] sm:$0xff]
        %v5587 = vld [vmem:[#allocation3 + $0xb0] sm:$0xf]
        %v5588 = vld [vmem:[#allocation3 + $0xb4] sm:$0xff]
        %v5589 = vld [vmem:[#allocation3 + $0xbc] sm:$0xf]
        %v5590 = vld [vmem:[#allocation3 + $0xc0] sm:$0xff]
        %v5591 = vld [vmem:[#allocation3 + $0xc8] sm:$0xf]
        %v5592 = vld [vmem:[#allocation3 + $0xcc] sm:$0xff]
        %v5593 = vld [vmem:[#allocation3 + $0xd4] sm:$0xf]
        %v5594 = vld [vmem:[#allocation3 + $0xd8] sm:$0xff]
        %v5595 = vld [vmem:[#allocation3 + $0xe0] sm:$0xf]
        %v5596 = vld [vmem:[#allocation3 + $0xe4] sm:$0xff]
        %v5597 = vld [vmem:[#allocation3 + $0xec] sm:$0xf]
        %v5598 = vld [vmem:[#allocation3 + $0xf0] sm:$0xff]
        %v5599 = vld [vmem:[#allocation3 + $0xf8] sm:$0xf]
        %v5600 = vld [vmem:[#allocation3 + $0xfc] sm:$0xff]
        %v5601 = vld [vmem:[#allocation3 + $0x104] sm:$0xf]
        %v5602 = vld [vmem:[#allocation3 + $0x108] sm:$0xff]
        %v5603 = vld [vmem:[#allocation3 + $0x110] sm:$0xf]
        %v5604 = vld [vmem:[#allocation3 + $0x114] sm:$0xff]
        %v5605 = vld [vmem:[#allocation3 + $0x11c] sm:$0xf]
        %v5606 = vld [vmem:[#allocation3 + $0x120] sm:$0xff]
        %v5607 = vld [vmem:[#allocation3 + $0x128] sm:$0xf]
        %v5608 = vld [vmem:[#allocation3 + $0x12c] sm:$0xff]
        %v5609 = vld [vmem:[#allocation3 + $0x134] sm:$0xf]
        %v5610 = vld [vmem:[#allocation3 + $0x138] sm:$0xff]
        %v5611 = vld [vmem:[#allocation3 + $0x140] sm:$0xf]
        %v5612 = vld [vmem:[#allocation3 + $0x144] sm:$0xff]
        %v5613 = vld [vmem:[#allocation3 + $0x14c] sm:$0xf]
        %v5614 = vld [vmem:[#allocation3 + $0x150] sm:$0xff]
        %v5615 = vld [vmem:[#allocation3 + $0x158] sm:$0xf]
        %v5616 = vld [vmem:[#allocation3 + $0x15c] sm:$0xff]
        %v5617 = vld [vmem:[#allocation3 + $0x164] sm:$0xf]
        %v5618 = vld [vmem:[#allocation3 + $0x168] sm:$0xff]
        %v5619 = vld [vmem:[#allocation3 + $0x170] sm:$0xf]
        %v5620 = vld [vmem:[#allocation3 + $0x174] sm:$0xff]
        %v5621 = vld [vmem:[#allocation3 + $0x17c] sm:$0xf]
        %v5622 = vld [vmem:[#allocation3 + $0x180] sm:$0xff]
        %v5623 = vld [vmem:[#allocation3 + $0x188] sm:$0xf]
        %v5624 = vld [vmem:[#allocation3 + $0x18c] sm:$0xff]
        %v5625 = vld [vmem:[#allocation3 + $0x194] sm:$0xf]
        %v5626 = vld [vmem:[#allocation3 + $0x198] sm:$0xff]
        %v5627 = vld [vmem:[#allocation3 + $0x1a0] sm:$0xf]
        %v5628 = vld [vmem:[#allocation3 + $0x1a4] sm:$0xff]
        %v5629 = vld [vmem:[#allocation3 + $0x1ac] sm:$0xf]
        %v5630 = vld [vmem:[%s10] sm:$0x3]
        %5632 = vset.pattern.permute.xlu0 0
        %5633 = vperm.xlu0 %5632, %v5630
        %v5634 = vpop.permute.xlu0 %5633
        %v5638 = vunpack.c.l.s4 1966171168
        %v5639 = vunpack.c.0.s8 %v5638
        %v5640 = vlaneseq
        %v5641 = vshrl.u32 %v5640, 7
        %v5642 = vsub.s32 %v5639, %v5641
        %v5643 = vrot.slane %v5557, %v5642
        %v5644 = vcombine.high %v5643, %v5643
        %v5646 = vunpack.c.l.s4 1966171168
        %v5647 = vunpack.c.0.s8 %v5646
        %v5648 = vlaneseq
        %v5649 = vshrl.u32 %v5648, 7
        %v5650 = vsub.s32 %v5647, %v5649
        %v5651 = vrot.slane %v5643, %v5650
        %v5653 = vunpack.c.l.s4 1966171168
        %v5654 = vunpack.c.0.s8 %v5653
        %v5655 = vlaneseq
        %v5656 = vshrl.u32 %v5655, 7
        %v5657 = vsub.s32 %v5654, %v5656
        %v5658 = vrot.slane %v5644, %v5657
        %v5659 = vcombine.high %v5651, %v5651
        %v5734 = vunpack.c.l.b16 %v5558
        %v5735 = vunpack.c.h.b16 %v5558
        %v5736 = vunpack.c.l.b16 %v5559
        %v5737 = vunpack.c.l.b16 %v5560
        %v5738 = vunpack.c.h.b16 %v5560
        %v5739 = vunpack.c.l.b16 %v5561
        %v5740 = vunpack.c.l.b16 %v5562
        %v5741 = vunpack.c.h.b16 %v5562
        %v5742 = vunpack.c.l.b16 %v5563
        %v5743 = vunpack.c.l.b16 %v5564
        %v5744 = vunpack.c.h.b16 %v5564
        %v5745 = vunpack.c.l.b16 %v5565
        %v5746 = vunpack.c.l.b16 %v5566
        %v5747 = vunpack.c.h.b16 %v5566
        %v5748 = vunpack.c.l.b16 %v5567
        %v5749 = vunpack.c.l.b16 %v5568
        %v5750 = vunpack.c.h.b16 %v5568
        %v5751 = vunpack.c.l.b16 %v5569
        %v5752 = vunpack.c.l.b16 %v5570
        %v5753 = vunpack.c.h.b16 %v5570
        %v5754 = vunpack.c.l.b16 %v5571
        %v5755 = vunpack.c.l.b16 %v5572
        %v5756 = vunpack.c.h.b16 %v5572
        %v5757 = vunpack.c.l.b16 %v5573
        %v5758 = vunpack.c.l.b16 %v5574
        %v5759 = vunpack.c.h.b16 %v5574
        %v5760 = vunpack.c.l.b16 %v5575
        %v5761 = vunpack.c.l.b16 %v5576
        %v5762 = vunpack.c.h.b16 %v5576
        %v5763 = vunpack.c.l.b16 %v5577
        %v5764 = vunpack.c.l.b16 %v5578
        %v5765 = vunpack.c.h.b16 %v5578
        %v5766 = vunpack.c.l.b16 %v5579
        %v5767 = vunpack.c.l.b16 %v5580
        %v5768 = vunpack.c.h.b16 %v5580
        %v5769 = vunpack.c.l.b16 %v5581
        %v5770 = vunpack.c.l.b16 %v5582
        %v5771 = vunpack.c.h.b16 %v5582
        %v5772 = vunpack.c.l.b16 %v5583
        %v5773 = vunpack.c.l.b16 %v5584
        %v5774 = vunpack.c.h.b16 %v5584
        %v5775 = vunpack.c.l.b16 %v5585
        %v5776 = vunpack.c.l.b16 %v5586
        %v5777 = vunpack.c.h.b16 %v5586
        %v5778 = vunpack.c.l.b16 %v5587
        %v5779 = vunpack.c.l.b16 %v5588
        %v5780 = vunpack.c.h.b16 %v5588
        %v5781 = vunpack.c.l.b16 %v5589
        %v5782 = vunpack.c.l.b16 %v5590
        %v5783 = vunpack.c.h.b16 %v5590
        %v5784 = vunpack.c.l.b16 %v5591
        %v5785 = vunpack.c.l.b16 %v5592
        %v5786 = vunpack.c.h.b16 %v5592
        %v5787 = vunpack.c.l.b16 %v5593
        %v5788 = vunpack.c.l.b16 %v5594
        %v5789 = vunpack.c.h.b16 %v5594
        %v5790 = vunpack.c.l.b16 %v5595
        %v5791 = vunpack.c.l.b16 %v5596
        %v5792 = vunpack.c.h.b16 %v5596
        %v5793 = vunpack.c.l.b16 %v5597
        %v5794 = vunpack.c.l.b16 %v5598
        %v5795 = vunpack.c.h.b16 %v5598
        %v5796 = vunpack.c.l.b16 %v5599
        %v5797 = vunpack.c.l.b16 %v5600
        %v5798 = vunpack.c.h.b16 %v5600
        %v5799 = vunpack.c.l.b16 %v5601
        %v5800 = vunpack.c.l.b16 %v5602
        %v5801 = vunpack.c.h.b16 %v5602
        %v5802 = vunpack.c.l.b16 %v5603
        %v5803 = vunpack.c.l.b16 %v5604
        %v5804 = vunpack.c.h.b16 %v5604
        %v5805 = vunpack.c.l.b16 %v5605
        %v5806 = vunpack.c.l.b16 %v5606
        %v5807 = vunpack.c.h.b16 %v5606
        %v5808 = vunpack.c.l.b16 %v5607
        %v5809 = vunpack.c.l.b16 %v5608
        %v5810 = vunpack.c.h.b16 %v5608
        %v5811 = vunpack.c.l.b16 %v5609
        %v5812 = vunpack.c.l.b16 %v5610
        %v5813 = vunpack.c.h.b16 %v5610
        %v5814 = vunpack.c.l.b16 %v5611
        %v5815 = vunpack.c.l.b16 %v5612
        %v5816 = vunpack.c.h.b16 %v5612
        %v5817 = vunpack.c.l.b16 %v5613
        %v5818 = vunpack.c.l.b16 %v5614
        %v5819 = vunpack.c.h.b16 %v5614
        %v5820 = vunpack.c.l.b16 %v5615
        %v5821 = vunpack.c.l.b16 %v5616
        %v5822 = vunpack.c.h.b16 %v5616
        %v5823 = vunpack.c.l.b16 %v5617
        %v5824 = vunpack.c.l.b16 %v5618
        %v5825 = vunpack.c.h.b16 %v5618
        %v5826 = vunpack.c.l.b16 %v5619
        %v5827 = vunpack.c.l.b16 %v5620
        %v5828 = vunpack.c.h.b16 %v5620
        %v5829 = vunpack.c.l.b16 %v5621
        %v5830 = vunpack.c.l.b16 %v5622
        %v5831 = vunpack.c.h.b16 %v5622
        %v5832 = vunpack.c.l.b16 %v5623
        %v5833 = vunpack.c.l.b16 %v5624
        %v5834 = vunpack.c.h.b16 %v5624
        %v5835 = vunpack.c.l.b16 %v5625
        %v5836 = vunpack.c.l.b16 %v5626
        %v5837 = vunpack.c.h.b16 %v5626
        %v5838 = vunpack.c.l.b16 %v5627
        %v5839 = vunpack.c.l.b16 %v5628
        %v5840 = vunpack.c.h.b16 %v5628
        %v5841 = vunpack.c.l.b16 %v5629
        %v5842 = vpack.c.b16 %v5737, %v5734
        %v5843 = vpack.c.b16 %v5738, %v5735
        %v5844 = vpack.c.b16 %v5739, %v5736
        %v5845 = vpack.c.b16 %v5743, %v5740
        %v5846 = vpack.c.b16 %v5744, %v5741
        %v5847 = vpack.c.b16 %v5745, %v5742
        %v5848 = vpack.c.b16 %v5749, %v5746
        %v5849 = vpack.c.b16 %v5750, %v5747
        %v5850 = vpack.c.b16 %v5751, %v5748
        %v5851 = vpack.c.b16 %v5755, %v5752
        %v5852 = vpack.c.b16 %v5756, %v5753
        %v5853 = vpack.c.b16 %v5757, %v5754
        %v5854 = vpack.c.b16 %v5761, %v5758
        %v5855 = vpack.c.b16 %v5762, %v5759
        %v5856 = vpack.c.b16 %v5763, %v5760
        %v5857 = vpack.c.b16 %v5767, %v5764
        %v5858 = vpack.c.b16 %v5768, %v5765
        %v5859 = vpack.c.b16 %v5769, %v5766
        %v5860 = vpack.c.b16 %v5773, %v5770
        %v5861 = vpack.c.b16 %v5774, %v5771
        %v5862 = vpack.c.b16 %v5775, %v5772
        %v5863 = vpack.c.b16 %v5779, %v5776
        %v5864 = vpack.c.b16 %v5780, %v5777
        %v5865 = vpack.c.b16 %v5781, %v5778
        %v5866 = vpack.c.b16 %v5785, %v5782
        %v5867 = vpack.c.b16 %v5786, %v5783
        %v5868 = vpack.c.b16 %v5787, %v5784
        %v5869 = vpack.c.b16 %v5791, %v5788
        %v5870 = vpack.c.b16 %v5792, %v5789
        %v5871 = vpack.c.b16 %v5793, %v5790
        %v5872 = vpack.c.b16 %v5797, %v5794
        %v5873 = vpack.c.b16 %v5798, %v5795
        %v5874 = vpack.c.b16 %v5799, %v5796
        %v5875 = vpack.c.b16 %v5803, %v5800
        %v5876 = vpack.c.b16 %v5804, %v5801
        %v5877 = vpack.c.b16 %v5805, %v5802
        %v5878 = vpack.c.b16 %v5809, %v5806
        %v5879 = vpack.c.b16 %v5810, %v5807
        %v5880 = vpack.c.b16 %v5811, %v5808
        %v5881 = vpack.c.b16 %v5815, %v5812
        %v5882 = vpack.c.b16 %v5816, %v5813
        %v5883 = vpack.c.b16 %v5817, %v5814
        %v5884 = vpack.c.b16 %v5821, %v5818
        %v5885 = vpack.c.b16 %v5822, %v5819
        %v5886 = vpack.c.b16 %v5823, %v5820
        %v5887 = vpack.c.b16 %v5827, %v5824
        %v5888 = vpack.c.b16 %v5828, %v5825
        %v5889 = vpack.c.b16 %v5829, %v5826
        %v5890 = vpack.c.b16 %v5833, %v5830
        %v5891 = vpack.c.b16 %v5834, %v5831
        %v5892 = vpack.c.b16 %v5835, %v5832
        %v5893 = vpack.c.b16 %v5839, %v5836
        %v5894 = vpack.c.b16 %v5840, %v5837
        %v5895 = vpack.c.b16 %v5841, %v5838
        %v5951 = vsel %vm2162, %v5659, 0
        %5953 = vmatprep.subr.bf16.mxu0 %v5864
        %5954 = vmatpush1.bf16.msra.mxu0 %v5863
        %5955 = vmatprep.subr.bf16.mxu0 %v5861
        %5956 = vmatpush1.bf16.msra.mxu0 %v5860
        %5957 = vmatprep.subr.bf16.mxu0 %v5858
        %5958 = vmatpush1.bf16.msra.mxu0 %v5857
        %5959 = vmatprep.subr.bf16.mxu0 %v5855
        %5960 = vmatpush1.bf16.msra.mxu0 %v5854
        %5961 = vmatprep.subr.bf16.mxu0 %v5852
        %5962 = vmatpush1.bf16.msra.mxu0 %v5851
        %5963 = vmatprep.subr.bf16.mxu0 %v5849
        %5964 = vmatpush1.bf16.msra.mxu0 %v5848
        %5965 = vmatprep.subr.bf16.mxu0 %v5846
        %5966 = vmatpush1.bf16.msra.mxu0 %v5845
        %5967 = vmatprep.subr.bf16.mxu0 %v5843
        %5968 = vmatpush1.bf16.msra.mxu0 %v5842
        %5969 = vmatprep.subr.bf16.mxu0 %v5888
        %5970 = vmatpush2.bf16.msra.mxu0 %v5887
        %5971 = vmatprep.subr.bf16.mxu0 %v5885
        %5972 = vmatpush2.bf16.msra.mxu0 %v5884
        %5973 = vmatprep.subr.bf16.mxu0 %v5882
        %5974 = vmatpush2.bf16.msra.mxu0 %v5881
        %5975 = vmatprep.subr.bf16.mxu0 %v5879
        %5976 = vmatpush2.bf16.msra.mxu0 %v5878
        %5977 = vmatprep.subr.bf16.mxu0 %v5876
        %5978 = vmatpush2.bf16.msra.mxu0 %v5875
        %5979 = vmatprep.subr.bf16.mxu0 %v5873
        %5980 = vmatpush2.bf16.msra.mxu0 %v5872
        %5981 = vmatprep.subr.bf16.mxu0 %v5870
        %5982 = vmatpush2.bf16.msra.mxu0 %v5869
        %5983 = vmatprep.subr.bf16.mxu0 %v5867
        %5984 = vmatpush2.bf16.msra.mxu0 %v5866
        %5985 = vmatprep.mubr.bf16.mxu0 %v5658
        %5986 = vmatmul.mubr.bf16.gmra.mxu0 %v5651
        %v5987 = vpop.f32.mrf.mxu0
        %v5988 = vadd.f32 %v5634, %v5987
        %v5989 = vpop.f32.mrf.mxu0
        %v5990 = vadd.f32 %v5634, %v5989
        %v5991 = vpop.f32.mrf.mxu0
        %v5992 = vpop.f32.mrf.mxu0
        %5993 = vdwg.mxu0
        %5994 = vmatprep.subr.bf16.mxu0 0
        %5995 = vmatpush1.bf16.msra.mxu0 0
        %5996 = vmatprep.subr.bf16.mxu0 0
        %5997 = vmatpush1.bf16.msra.mxu0 0
        %5998 = vmatprep.subr.bf16.mxu0 0
        %5999 = vmatpush1.bf16.msra.mxu0 0
        %6000 = vmatprep.subr.bf16.mxu0 0
        %6001 = vmatpush1.bf16.msra.mxu0 0
        %6002 = vmatprep.subr.bf16.mxu0 0
        %6003 = vmatpush1.bf16.msra.mxu0 0
        %6004 = vmatprep.subr.bf16.mxu0 0
        %6005 = vmatpush1.bf16.msra.mxu0 0
        %6006 = vmatprep.subr.bf16.mxu0 %v5894
        %6007 = vmatpush1.bf16.msra.mxu0 %v5893
        %6008 = vmatprep.subr.bf16.mxu0 %v5891
        %6009 = vmatpush1.bf16.msra.mxu0 %v5890
        %6010 = vmatprep.subr.bf16.mxu0 0
        %6011 = vmatpush2.bf16.msra.mxu0 0
        %6012 = vmatprep.subr.bf16.mxu0 0
        %6013 = vmatpush2.bf16.msra.mxu0 0
        %6014 = vmatprep.subr.bf16.mxu0 0
        %6015 = vmatpush2.bf16.msra.mxu0 0
        %6016 = vmatprep.subr.bf16.mxu0 0
        %6017 = vmatpush2.bf16.msra.mxu0 0
        %6018 = vmatprep.subr.bf16.mxu0 0
        %6019 = vmatpush2.bf16.msra.mxu0 0
        %6020 = vmatprep.subr.bf16.mxu0 0
        %6021 = vmatpush2.bf16.msra.mxu0 0
        %6022 = vmatprep.subr.bf16.mxu0 0
        %6023 = vmatpush2.bf16.msra.mxu0 0
        %6024 = vmatprep.subr.bf16.mxu0 0
        %6025 = vmatpush2.bf16.msra.mxu0 0
        %6026 = vmatprep.mubr.bf16.mxu0 0
        %6027 = vmatmul.mubr.bf16.gmra.mxu0 %v5951
        %v6028 = vpop.f32.mrf.mxu0
        %v6029 = vadd.f32 %v5988, %v6028
        %v6030 = vpop.f32.mrf.mxu0
        %v6031 = vadd.f32 %v5990, %v6030
        %v6032 = vpop.f32.mrf.mxu0
        %v6033 = vpop.f32.mrf.mxu0
        %6034 = vdwg.mxu0
        %6035 = vmatprep.subr.bf16.mxu0 0
        %6036 = vmatpush1.bf16.msra.mxu0 %v5865
        %6037 = vmatprep.subr.bf16.mxu0 0
        %6038 = vmatpush1.bf16.msra.mxu0 %v5862
        %6039 = vmatprep.subr.bf16.mxu0 0
        %6040 = vmatpush1.bf16.msra.mxu0 %v5859
        %6041 = vmatprep.subr.bf16.mxu0 0
        %6042 = vmatpush1.bf16.msra.mxu0 %v5856
        %6043 = vmatprep.subr.bf16.mxu0 0
        %6044 = vmatpush1.bf16.msra.mxu0 %v5853
        %6045 = vmatprep.subr.bf16.mxu0 0
        %6046 = vmatpush1.bf16.msra.mxu0 %v5850
        %6047 = vmatprep.subr.bf16.mxu0 0
        %6048 = vmatpush1.bf16.msra.mxu0 %v5847
        %6049 = vmatprep.subr.bf16.mxu0 0
        %6050 = vmatpush1.bf16.msra.mxu0 %v5844
        %6051 = vmatprep.subr.bf16.mxu0 0
        %6052 = vmatpush2.bf16.msra.mxu0 %v5889
        %6053 = vmatprep.subr.bf16.mxu0 0
        %6054 = vmatpush2.bf16.msra.mxu0 %v5886
        %6055 = vmatprep.subr.bf16.mxu0 0
        %6056 = vmatpush2.bf16.msra.mxu0 %v5883
        %6057 = vmatprep.subr.bf16.mxu0 0
        %6058 = vmatpush2.bf16.msra.mxu0 %v5880
        %6059 = vmatprep.subr.bf16.mxu0 0
        %6060 = vmatpush2.bf16.msra.mxu0 %v5877
        %6061 = vmatprep.subr.bf16.mxu0 0
        %6062 = vmatpush2.bf16.msra.mxu0 %v5874
        %6063 = vmatprep.subr.bf16.mxu0 0
        %6064 = vmatpush2.bf16.msra.mxu0 %v5871
        %6065 = vmatprep.subr.bf16.mxu0 0
        %6066 = vmatpush2.bf16.msra.mxu0 %v5868
        %6067 = vmatprep.mubr.bf16.mxu0 %v5658
        %6068 = vmatmul.mubr.bf16.gmra.mxu0 %v5651
        %v6069 = vpop.f32.mrf.mxu0
        %v6070 = vadd.f32 %v5634, %v6069
        %v6071 = vpop.f32.mrf.mxu0
        %v6072 = vpop.f32.mrf.mxu0
        %v6073 = vpop.f32.mrf.mxu0
        %6074 = vdwg.mxu0
        %6075 = vmatprep.subr.bf16.mxu0 0
        %6076 = vmatpush1.bf16.msra.mxu0 0
        %6077 = vmatprep.subr.bf16.mxu0 0
        %6078 = vmatpush1.bf16.msra.mxu0 0
        %6079 = vmatprep.subr.bf16.mxu0 0
        %6080 = vmatpush1.bf16.msra.mxu0 0
        %6081 = vmatprep.subr.bf16.mxu0 0
        %6082 = vmatpush1.bf16.msra.mxu0 0
        %6083 = vmatprep.subr.bf16.mxu0 0
        %6084 = vmatpush1.bf16.msra.mxu0 0
        %6085 = vmatprep.subr.bf16.mxu0 0
        %6086 = vmatpush1.bf16.msra.mxu0 0
        %6087 = vmatprep.subr.bf16.mxu0 0
        %6088 = vmatpush1.bf16.msra.mxu0 %v5895
        %6089 = vmatprep.subr.bf16.mxu0 0
        %6090 = vmatpush1.bf16.msra.mxu0 %v5892
        %6091 = vmatprep.subr.bf16.mxu0 0
        %6092 = vmatpush2.bf16.msra.mxu0 0
        %6093 = vmatprep.subr.bf16.mxu0 0
        %6094 = vmatpush2.bf16.msra.mxu0 0
        %6095 = vmatprep.subr.bf16.mxu0 0
        %6096 = vmatpush2.bf16.msra.mxu0 0
        %6097 = vmatprep.subr.bf16.mxu0 0
        %6098 = vmatpush2.bf16.msra.mxu0 0
        %6099 = vmatprep.subr.bf16.mxu0 0
        %6100 = vmatpush2.bf16.msra.mxu0 0
        %6101 = vmatprep.subr.bf16.mxu0 0
        %6102 = vmatpush2.bf16.msra.mxu0 0
        %6103 = vmatprep.subr.bf16.mxu0 0
        %6104 = vmatpush2.bf16.msra.mxu0 0
        %6105 = vmatprep.subr.bf16.mxu0 0
        %6106 = vmatpush2.bf16.msra.mxu0 0
        %6107 = vmatprep.mubr.bf16.mxu0 0
        %6108 = vmatmul.mubr.bf16.gmra.mxu0 %v5951
        %v6109 = vpop.f32.mrf.mxu0
        %v6110 = vadd.f32 %v6070, %v6109
        %v6111 = vpop.f32.mrf.mxu0
        %v6112 = vpop.f32.mrf.mxu0
        %v6113 = vpop.f32.mrf.mxu0
        %6114 = vdwg.mxu0
        %v6115 = vadd.f32 %v6029, %v510
        %v6116 = vadd.f32 %v6031, %v511
        %v6117 = vadd.f32 %v6110, %v512
        %v6121 = vcombine.low %v6115, %v6116
        %v6123 = vunpack.c.l.s4 1983009808
        %v6124 = vunpack.c.0.s8 %v6123
        %v6125 = vlaneseq
        %v6126 = vshrl.u32 %v6125, 7
        %v6127 = vsub.s32 %v6124, %v6126
        %v6128 = vrot.slane %v6121, %v6127
        %v6130 = vunpack.c.l.s4 1983009808
        %v6131 = vunpack.c.0.s8 %v6130
        %v6132 = vlaneseq
        %v6133 = vshrl.u32 %v6132, 7
        %v6134 = vsub.s32 %v6131, %v6133
        %v6135 = vrot.slane %v6117, %v6134
        %v6136 = vcombine.low %v6128, %v6135
        %vm6138 = vcmask 1041408
        %vm6139 = vcmask 1043458
        %vm6140 = vmor %vm6139, %vm6138
        %vm6141 = vcmask 259076
        %vm6142 = vmor %vm6141, %vm6140
        %6143 = vst.msk [vmem:[%s438] sm:$0x3f] %vm6142, %v6136
        %s6144 = sand.u32 %s272, 1
        %s6145 = scalar_lea.sflag [#allocation6], %s6144
        %s6146 = sand.u32 %s272, 1
        %s6147 = smul.addr %s6146, 6
        %s6148 = scalar_lea.vmem [#allocation12], %s6147
        // Predicated region
        $region81: #{tpu_custom_call.1} parent=63 // pred_check
          %p6149 = pneg %p282
        $region82: #{tpu_custom_call.1} parent=63 // pred_check_branch
          %6151 = sbr.rel (%p6149) target = $region84
        $region83: #{tpu_custom_call.1} parent=63 // pred_region
          %s6153 = ssub.s32 96, 96
          %6154 = vsyncadd %s6145, %s6153
          %s6155 = smul.addr %s28, 3
          %s6156 = smul.addr %s6155, 32
          %s6157 = scalar_lea.hbm %s11, %s6156
          %s6159 = sshll.u32 %s6148, 4
          %s6160 = int_to_ptr.vmem [resolvable:$true] %s6159
          %6162 = dma.vmem_to_hbm [thread:$0]  %s6160, 96, %s6157, %s6145
        $region84: #{tpu_custom_call.1} parent=63 // pred_fallthru
          _
      $region64: #{tpu_custom_call.1} parent=5 // pred_fallthru
        _
      %p6163 = scmp.le.s32.totalorder 2, %s23
      // Predicated region
      $region85: #{tpu_custom_call.1} parent=5 // pred_check
        %p6164 = pneg %p6163
      $region86: #{tpu_custom_call.1} parent=5 // pred_check_branch
        %6166 = sbr.rel (%p6164) target = $region88
      $region87: #{tpu_custom_call.1} parent=5 // pred_region
        %s6167 = ssub.s32 %s23, 2
        // Predicated region
        $region89: #{tpu_custom_call.1} parent=87 // pred_check
          %p6168 = pneg %p288
        $region90: #{tpu_custom_call.1} parent=87 // pred_check_branch
          %6170 = sbr.rel (%p6168) target = $region92
        $region91: #{tpu_custom_call.1} parent=87 // pred_region
          %s6171 = sand.u32 %s273, 1
          %s6172 = scalar_lea.sflag [#allocation6], %s6171
          %s6173 = sand.u32 %s273, 1
          %s6174 = smul.addr %s6173, 6
          %s6175 = scalar_lea.vmem [#allocation12], %s6174
          %6176 = dma.done %s6172, 96
        $region92: #{tpu_custom_call.1} parent=87 // pred_fallthru
          _
      $region88: #{tpu_custom_call.1} parent=5 // pred_fallthru
        _
    $region6: #{tpu_custom_call.1} parent=1 // loop_footer
      %s27 = sadd.s32 1, %s23
    $region7: #{tpu_custom_call.1} parent=1 // loop_footer_branch
      %22 = sbr.rel target = $region3
    $region8: #{tpu_custom_call.1} parent=1 // loop_exit
      _
    %6177 = vsyncpa [#allocation5], 1
    %s6178 = scalar_lea.sflag [#allocation5], 1
    %6179 = vsyncpa %s6178, 1
    %6180 = vsyncpa [#allocation8], 1
    %6181 = vsyncpa [#allocation11], 1
    %6182 = vsyncpa [#allocation6], 1
    %s6183 = scalar_lea.sflag [#allocation6], 1
    %6184 = vsyncpa %s6183, 1

</llo_original>
